<compile_context>
chip_gen: v7x
topology: tpu7x:2x2x1
jax: 0.10.0
libtpu: 0.0.40
codegen_flags: <defaults>
</compile_context>

<pallas_src>
import functools
import math

import jax
import jax.numpy as jnp
from jax.experimental import pallas as pl
from jax.experimental.pallas import tpu as pltpu


def _round_up(a, b):
    return (a + b - 1) // b * b


_MASK_NEG = -1e30   # large finite additive mask (not -inf / finfo.min)


def _vmem_limit(block_bytes_est):
    """Explicit scoped-VMEM limit sized from the actual block shapes.

    Defaults are 16 MiB (v5e) / 32 MiB (v6e, v7x); we request 2x the block
    estimate plus headroom, floored at 32 MiB and capped below physical VMEM.
    """
    return int(min(max(2 * int(block_bytes_est) + (8 << 20), 32 << 20), 96 << 20))


# ---------------- single-buffered weight specs (probe once) ------------------

def _probe_single_buffer_support():
    """Check whether pl.BlockSpec(pipeline_mode=pl.Buffered(1)) compiles/runs."""
    try:
        def k(x_ref, w_ref, o_ref):
            o_ref[...] = x_ref[...] + w_ref[...]
        f = pl.pallas_call(
            k,
            out_shape=jax.ShapeDtypeStruct((8, 128), jnp.float32),
            grid=(2,),
            in_specs=[pl.BlockSpec((8, 128), lambda i: (0, 0)),
                      pl.BlockSpec((8, 128), lambda i: (0, 0),
                                   pipeline_mode=pl.Buffered(1))],
            out_specs=pl.BlockSpec((8, 128), lambda i: (0, 0)),
        )
        z = jnp.zeros((8, 128), jnp.float32)
        jax.block_until_ready(f(z, z))
        return True
    except Exception:   # pipeline_mode / Buffered(1) unavailable on this JAX
        return False


_SINGLE_BUFFER_WEIGHTS = _probe_single_buffer_support()


def _weight_spec(block_shape, index_map):
    """BlockSpec for a grid-invariant weight: single-buffered when supported."""
    if _SINGLE_BUFFER_WEIGHTS:
        return pl.BlockSpec(block_shape, index_map, pipeline_mode=pl.Buffered(1))
    return pl.BlockSpec(block_shape, index_map)


# --------------------------- in-kernel helpers ------------------------------

def _ln_f32(x, g, b, eps):
    mu = jnp.mean(x, axis=-1, keepdims=True)
    var = jnp.mean(jnp.square(x - mu), axis=-1, keepdims=True)
    return (x - mu) * jax.lax.rsqrt(var + eps) * g + b


def _activate(y, activation):
    if activation is None:
        return y
    if activation == "relu":
        return jnp.maximum(y, 0.0)
    if activation == "quick_gelu":           # CLIP MLP activation
        return y * jax.nn.sigmoid(1.702 * y)
    if activation == "gelu":
        # TODO(synk): DistilBERT uses exact erf GELU; tanh approximation here.
        return 0.5 * y * (1.0 + jnp.tanh(0.7978845608028654 *
                                         (y + 0.044715 * y * y * y)))
    raise ValueError(activation)


# ----------------------------- linear kernel --------------------------------

def _linear_kernel(*refs, activation, has_bias, nk):
    if nk == 1:
        if has_bias:
            x_ref, w_ref, b_ref, o_ref = refs
        else:
            x_ref, w_ref, o_ref = refs
            b_ref = None
        y = jnp.dot(x_ref[...].astype(jnp.bfloat16), w_ref[...],
                    preferred_element_type=jnp.float32)
        if b_ref is not None:
            y = y + b_ref[...]
        o_ref[...] = _activate(y, activation).astype(o_ref.dtype)
    else:
        if has_bias:
            x_ref, w_ref, b_ref, o_ref, acc_ref = refs
        else:
            x_ref, w_ref, o_ref, acc_ref = refs
            b_ref = None
        k = pl.program_id(2)

        @pl.when(k == 0)
        def _():
            acc_ref[...] = jnp.zeros_like(acc_ref)

        acc_ref[...] += jnp.dot(x_ref[...].astype(jnp.bfloat16), w_ref[...],
                                preferred_element_type=jnp.float32)

        @pl.when(k == nk - 1)
        def _():
            y = acc_ref[...]
            if b_ref is not None:
                y = y + b_ref[...]
            o_ref[...] = _activate(y, activation).astype(o_ref.dtype)


def linear(x, w, b=None, activation=None):
    """x: (..., K), w: (K, N), b: (N,) or None -> (..., N).

    bf16 MXU matmul with f32 accumulation.  N is padded to a multiple of 128
    (lane-dense stores / real vocab sizes); K is tiled with an f32 VMEM
    accumulator when large; tm is capped when K is large (v5e scoped VMEM).
    """
    K, N = w.shape
    lead = x.shape[:-1]
    x2 = x.reshape(-1, K)
    M = x2.shape[0]

    # ---- N: pad to lane-dense multiple of 128, pick a column tile.
    Np = _round_up(N, 128)
    w16 = w.astype(jnp.bfloat16)
    if Np != N:
        w16 = jnp.pad(w16, ((0, 0), (0, Np - N)))
    bp = None
    if b is not None:
        bp = b.reshape(1, N).astype(jnp.float32)
        if Np != N:
            bp = jnp.pad(bp, ((0, 0), (0, Np - N)))
    if Np <= 512:
        tn = Np
    elif Np % 512 == 0:
        tn = 512
    elif Np % 256 == 0:
        tn = 256
    else:
        tn = 128

    # ---- K: tile with an accumulator when large.
    if K > 2048:
        tk = 512
        Kp = _round_up(K, tk)
    else:
        tk = K
        Kp = K
    if Kp != K:
        x2 = jnp.pad(x2, ((0, 0), (0, Kp - K)))
        w16 = jnp.pad(w16, ((0, Kp - K), (0, 0)))
    nk = Kp // tk

    # ---- M: row tiles (cap at 256 when K blocks are big - v5e VMEM budget).
    m8 = _round_up(M, 8)
    tm = min(m8, 256 if K >= 2048 else 512)
    Mp = _round_up(M, tm)
    if Mp != M:
        x2 = jnp.pad(x2, ((0, Mp - M), (0, 0)))

    grid = (Mp // tm, Np // tn, nk)
    in_specs = [pl.BlockSpec((tm, tk), lambda i, j, k: (i, k)),
                pl.BlockSpec((tk, tn), lambda i, j, k: (k, j))]
    args = [x2, w16]
    if bp is not None:
        in_specs.append(pl.BlockSpec((1, tn), lambda i, j, k: (0, j)))
        args.append(bp)
    scratch = [pltpu.VMEM((tm, tn), jnp.float32)] if nk > 1 else []

    est = tm * tk * 4 + tk * tn * 2 + tn * 4 + tm * tn * 8
    out = pl.pallas_call(
        functools.partial(_linear_kernel, activation=activation,
                          has_bias=bp is not None, nk=nk),
        out_shape=jax.ShapeDtypeStruct((Mp, Np), x.dtype),
        grid=grid,
        in_specs=in_specs,
        out_specs=pl.BlockSpec((tm, tn), lambda i, j, k: (i, j)),
        scratch_shapes=scratch,
        compiler_params=pltpu.CompilerParams(
            dimension_semantics=("parallel", "parallel", "arbitrary"),
            vmem_limit_bytes=_vmem_limit(est)),
    )(*args)
    return out[:M, :N].reshape(lead + (N,))


# ----------------------------- layernorm kernel ------------------------------

def _layernorm_kernel(x_ref, g_ref, b_ref, o_ref, *, eps):
    x = x_ref[...].astype(jnp.float32)
    o_ref[...] = _ln_f32(x, g_ref[...], b_ref[...], eps).astype(o_ref.dtype)


def layernorm(x, gamma, beta, eps=1e-5):
    # TODO(synk): the standalone pre-LN / embedding-LN kernels could be fused
    # into the first attn_block, but that changes the residual input there.
    D = x.shape[-1]
    lead = x.shape[:-1]
    x2 = x.reshape(-1, D)
    M = x2.shape[0]
    m8 = _round_up(M, 8)
    tm = min(m8, 512)
    Mp = _round_up(M, tm)
    if Mp != M:
        x2 = jnp.pad(x2, ((0, Mp - M), (0, 0)))
    est = tm * D * 8 + D * 8
    out = pl.pallas_call(
        functools.partial(_layernorm_kernel, eps=eps),
        out_shape=jax.ShapeDtypeStruct((Mp, D), x.dtype),
        grid=(Mp // tm,),
        in_specs=[pl.BlockSpec((tm, D), lambda i: (i, 0)),
                  pl.BlockSpec((1, D), lambda i: (0, 0)),
                  pl.BlockSpec((1, D), lambda i: (0, 0))],
        out_specs=pl.BlockSpec((tm, D), lambda i: (i, 0)),
        compiler_params=pltpu.CompilerParams(
            dimension_semantics=("parallel",),
            vmem_limit_bytes=_vmem_limit(est)),
    )(x2, gamma.reshape(1, D), beta.reshape(1, D))
    if Mp != M:
        out = out[:M]
    return out.reshape(lead + (D,))


# ------------------------- fused attention block -----------------------------

def _attn_block_kernel(x_ref, bias_ref, lng_ref, lnb_ref, wqkv_ref, bqkv_ref,
                       wo_ref, bo_ref, o_ref, *, num_heads, tq, prenorm, eps):
    """(LN) + QKV proj + multi-head attention + out-proj + residual (+ LN).

    Grid is (batch, query-tile); keys/values use the full (padded) sequence.
    Scale is pre-folded into the Q columns of wqkv; the mask is an additive
    bias; per-head outputs accumulate through sublane row-slices of wo.
    """
    qi = pl.program_id(1)
    q_start = pl.multiple_of(qi * tq, 8)

    x_all = x_ref[0].astype(jnp.float32)                       # (S, D)
    xq = x_ref[0, pl.ds(q_start, tq), :].astype(jnp.float32)   # (tq, D)
    D = x_all.shape[-1]
    d = D // num_heads

    g = lng_ref[...]
    bt = lnb_ref[...]
    if prenorm:
        h_all = _ln_f32(x_all, g, bt, eps)
        h_q = _ln_f32(xq, g, bt, eps)
    else:
        h_all = x_all
        h_q = xq

    h_all16 = h_all.astype(jnp.bfloat16)
    h_q16 = h_q.astype(jnp.bfloat16)

    # Q only for this query tile; K/V for the whole sequence.
    q = jnp.dot(h_q16, wqkv_ref[:, :D],
                preferred_element_type=jnp.float32) + bqkv_ref[:, :D]    # (tq, D)
    kv = jnp.dot(h_all16, wqkv_ref[:, D:],
                 preferred_element_type=jnp.float32) + bqkv_ref[:, D:]   # (S, 2D)

    bias = bias_ref[0]                                         # (1, S) additive

    # TODO(synk): per-head lane slices are narrower than 128 lanes (d=16 here,
    # 64 at ViT-B/DistilBERT sizes); padding each head to 128 lanes in the
    # wqkv/wo layout would remove the remaining lane-shuffle copies.
    acc = jnp.zeros((tq, D), jnp.float32)
    for hd in range(num_heads):
        q_h = q[:, hd * d:(hd + 1) * d].astype(jnp.bfloat16)            # (tq, d)
        k_h = kv[:, hd * d:(hd + 1) * d].astype(jnp.bfloat16)           # (S, d)
        v_h = kv[:, D + hd * d:D + (hd + 1) * d].astype(jnp.bfloat16)   # (S, d)
        s = jax.lax.dot_general(q_h, k_h, (((1,), (1,)), ((), ())),
                                preferred_element_type=jnp.float32)     # (tq, S)
        s = s + bias
        s = s - jnp.max(s, axis=-1, keepdims=True)
        p = jnp.exp(s)
        p = p * pl.reciprocal(jnp.sum(p, axis=-1, keepdims=True), approx=True)
        hv = jnp.dot(p.astype(jnp.bfloat16), v_h,
                     preferred_element_type=jnp.float32)                # (tq, d)
        acc = acc + jnp.dot(hv.astype(jnp.bfloat16),
                            wo_ref[hd * d:(hd + 1) * d, :],
                            preferred_element_type=jnp.float32)         # (tq, D)

    y = xq + acc + bo_ref[...]
    if not prenorm:
        y = _ln_f32(y, g, bt, eps)
    o_ref[0] = y.astype(o_ref.dtype)


def attn_block(x, key_bias, ln_g, ln_b, ap, num_heads, *, prenorm, eps):
    """x: (B, S, D), key_bias: (B, 1, S) additive mask. Returns (B, S, D)."""
    B, S, D = x.shape
    if S <= 256:
        tq = S
    else:
        tq = 8
        for cand in (256, 128, 64, 32, 16, 8):
            if S % cand == 0:
                tq = cand
                break
    nq = S // tq

    est = (S * D * 4 + S * 4 + D * 3 * D * 2 + D * D * 2 + 6 * D * 4
           + tq * D * 4 + S * 3 * D * 4 + tq * S * 8)
    kernel = functools.partial(_attn_block_kernel, num_heads=num_heads,
                               tq=tq, prenorm=prenorm, eps=eps)
    return pl.pallas_call(
        kernel,
        out_shape=jax.ShapeDtypeStruct((B, S, D), x.dtype),
        grid=(B, nq),
        in_specs=[
            pl.BlockSpec((1, S, D), lambda b, q: (b, 0, 0)),
            pl.BlockSpec((1, 1, S), lambda b, q: (b, 0, 0)),
            pl.BlockSpec((1, D), lambda b, q: (0, 0)),
            pl.BlockSpec((1, D), lambda b, q: (0, 0)),
            _weight_spec((D, 3 * D), lambda b, q: (0, 0)),
            pl.BlockSpec((1, 3 * D), lambda b, q: (0, 0)),
            _weight_spec((D, D), lambda b, q: (0, 0)),
            pl.BlockSpec((1, D), lambda b, q: (0, 0)),
        ],
        out_specs=pl.BlockSpec((1, tq, D), lambda b, q: (b, q, 0)),
        compiler_params=pltpu.CompilerParams(
            dimension_semantics=("parallel", "parallel"),
            vmem_limit_bytes=_vmem_limit(est)),
    )(x, key_bias, ln_g.reshape(1, D), ln_b.reshape(1, D),
      ap["wqkv"], ap["bqkv"], ap["wo"], ap["bo"])


# ----------------------------- fused FFN block -------------------------------

def _ffn_block_kernel(x_ref, lng_ref, lnb_ref, w1_ref, b1_ref, w2_ref, b2_ref,
                      o_ref, *, activation, prenorm, eps):
    """(LN) + FC1 + activation + FC2 + residual (+ LN) on a tile of rows."""
    x = x_ref[...].astype(jnp.float32)
    h = _ln_f32(x, lng_ref[...], lnb_ref[...], eps) if prenorm else x
    h = jnp.dot(h.astype(jnp.bfloat16), w1_ref[...],
                preferred_element_type=jnp.float32) + b1_ref[...]
    h = _activate(h, activation)
    h = jnp.dot(h.astype(jnp.bfloat16), w2_ref[...],
                preferred_element_type=jnp.float32) + b2_ref[...]
    y = x + h
    if not prenorm:
        y = _ln_f32(y, lng_ref[...], lnb_ref[...], eps)
    o_ref[...] = y.astype(o_ref.dtype)


def ffn_block(x, ln_g, ln_b, w1, b1, w2, b2, *, activation, prenorm, eps):
    B, S, D = x.shape
    F = w1.shape[1]
    x2 = x.reshape(B * S, D)
    M = B * S
    m8 = _round_up(M, 8)
    tr = min(m8, 256)
    Mp = _round_up(M, tr)
    if Mp != M:
        x2 = jnp.pad(x2, ((0, Mp - M), (0, 0)))

    est = tr * D * 8 + D * F * 2 + F * D * 2 + F * 4 + 3 * D * 4 + tr * F * 4
    kernel = functools.partial(_ffn_block_kernel, activation=activation,
                               prenorm=prenorm, eps=eps)
    out = pl.pallas_call(
        kernel,
        out_shape=jax.ShapeDtypeStruct((Mp, D), x.dtype),
        grid=(Mp // tr,),
        in_specs=[
            pl.BlockSpec((tr, D), lambda i: (i, 0)),
            pl.BlockSpec((1, D), lambda i: (0, 0)),
            pl.BlockSpec((1, D), lambda i: (0, 0)),
            _weight_spec((D, F), lambda i: (0, 0)),
            pl.BlockSpec((1, F), lambda i: (0, 0)),
            _weight_spec((F, D), lambda i: (0, 0)),
            pl.BlockSpec((1, D), lambda i: (0, 0)),
        ],
        out_specs=pl.BlockSpec((tr, D), lambda i: (i, 0)),
        compiler_params=pltpu.CompilerParams(
            dimension_semantics=("parallel",),
            vmem_limit_bytes=_vmem_limit(est)),
    )(x2, ln_g.reshape(1, D), ln_b.reshape(1, D),
      w1, b1.reshape(1, F), w2, b2.reshape(1, D))
    if Mp != M:
        out = out[:M]
    return out.reshape(B, S, D)


# ------------------------- model building blocks ---------------------------

def clip_encoder_layer(x, p, key_bias, num_heads):
    # CLIP-style pre-LayerNorm block (two fused kernels).
    x = attn_block(x, key_bias, p["ln1_g"], p["ln1_b"], p["attn"], num_heads,
                   prenorm=True, eps=1e-5)
    x = ffn_block(x, p["ln2_g"], p["ln2_b"], p["fc1_w"], p["fc1_b"],
                  p["fc2_w"], p["fc2_b"],
                  activation="quick_gelu", prenorm=True, eps=1e-5)
    return x


def clip_vision_forward(p, pixel_values, num_heads):
    # pixel_values: NCHW (B, C, H, W).  Conv2d(kernel=stride=P, bias=False) ==
    # non-overlapping patch extraction (C, Ph, Pw order) + matmul.
    B, C, H, W = pixel_values.shape
    P = p["patch_size"]
    gh, gw = H // P, W // P
    patches = pixel_values.reshape(B, C, gh, P, gw, P)
    patches = patches.transpose(0, 2, 4, 1, 3, 5).reshape(B, gh * gw, C * P * P)
    patch_emb = linear(patches, p["patch_w"])
    cls = jnp.broadcast_to(p["cls"], (B, 1, patch_emb.shape[-1]))
    x = jnp.concatenate([cls, patch_emb], axis=1)
    S = x.shape[1]
    x = x + p["pos_emb"][None, :S]

    # pad sequence to a multiple of 8; carry padding in the additive key bias
    Sp = _round_up(S, 8)
    if Sp != S:
        x = jnp.pad(x, ((0, 0), (0, Sp - S), (0, 0)))
    key_bias = jnp.where(jnp.arange(Sp) < S, 0.0, _MASK_NEG).astype(jnp.float32)
    key_bias = jnp.broadcast_to(key_bias[None, None, :], (B, 1, Sp))

    x = layernorm(x, p["pre_ln_g"], p["pre_ln_b"], eps=1e-5)
    for lyr in p["layers"]:
        x = clip_encoder_layer(x, lyr, key_bias, num_heads)
    return x[:, :S]                                      # last_hidden_state


def mapping_forward(layers, x):
    # NOTE: ReLU follows every Linear (including the last), matching the
    # PyTorch CLIPQA mapping construction `mlp_layers += [linear, relu]`.
    for w, b in layers:
        x = linear(x, w, b, activation="relu")
    return x


def distilbert_embeddings(p, input_ids):
    we = p["word_emb"][input_ids]
    pe = p["pos_emb"][None, : input_ids.shape[1]]
    return layernorm(we + pe, p["emb_ln_g"], p["emb_ln_b"], eps=1e-12)


def distilbert_layer(x, p, key_bias, num_heads):
    # DistilBERT-style post-LayerNorm block (two fused kernels).
    x = attn_block(x, key_bias, p["sa_ln_g"], p["sa_ln_b"], p["attn"], num_heads,
                   prenorm=False, eps=1e-12)
    x = ffn_block(x, p["out_ln_g"], p["out_ln_b"], p["ffn1_w"], p["ffn1_b"],
                  p["ffn2_w"], p["ffn2_b"],
                  activation="gelu", prenorm=False, eps=1e-12)
    return x


def clipqa_forward(params, input_img, input_ids, attn_mask):
    # 1) image encoder
    clip_output = clip_vision_forward(params["img"], input_img, params["img_heads"])
    # 2) MLP mapping (num_mlp_layers > 0)
    img_embedding = mapping_forward(params["mapping"], clip_output)
    # 3) text embeddings
    txt_embedding = distilbert_embeddings(params["txt"], input_ids)
    # 4) torch.hstack on 3D tensors == concat along seq dim (dim=1)
    input_embeds = jnp.concatenate([txt_embedding, img_embedding], axis=1)
    extra_attn = jnp.ones(img_embedding.shape[:-1], attn_mask.dtype)
    input_attn_mask = jnp.concatenate([attn_mask, extra_attn], axis=1)

    # pad combined sequence to a multiple of 8; carry pad in the additive bias
    S = input_embeds.shape[1]
    Sp = _round_up(S, 8)
    if Sp != S:
        input_embeds = jnp.pad(input_embeds, ((0, 0), (0, Sp - S), (0, 0)))
        input_attn_mask = jnp.pad(input_attn_mask, ((0, 0), (0, Sp - S)))
    key_bias = jnp.where(input_attn_mask > 0.5, 0.0, _MASK_NEG)
    key_bias = key_bias.astype(jnp.float32)[:, None, :]          # (B, 1, Sp)

    # 5) text encoder over concatenated embeddings
    x = input_embeds
    for lyr in params["txt"]["layers"]:
        x = distilbert_layer(x, lyr, key_bias, params["txt_heads"])
    # 6) lm_head (Linear, bias=False) on padded rows, slice back afterwards
    logits = linear(x, params["lm_head_w"])
    return logits[:, :S]


# ---------------------------- parameter setup -------------------------------

def init_params(key, *, img_hidden=32, txt_dim=32, vocab=64, patch=8,
                img_channels=3, img_size=16, num_mlp_layers=2, mlp_hidden_dim=32,
                img_layers=1, txt_layers=1, img_heads=2, txt_heads=2,
                img_ffn=64, txt_ffn=64, max_pos=32):
    keys = iter(jax.random.split(key, 256))

    def nrm(shape, scale=0.02):
        return (scale * jax.random.normal(next(keys), shape)).astype(jnp.float32)

    zeros = lambda s: jnp.zeros(s, jnp.float32)
    ones = lambda s: jnp.ones(s, jnp.float32)

    def attn_params(dim):
        return dict(wq=nrm((dim, dim)), bq=zeros((dim,)),
                    wk=nrm((dim, dim)), bk=zeros((dim,)),
                    wv=nrm((dim, dim)), bv=zeros((dim,)),
                    wo=nrm((dim, dim)), bo=zeros((dim,)))

    num_patches = (img_size // patch) ** 2
    img = dict(
        patch_size=patch,
        patch_w=nrm((img_channels * patch * patch, img_hidden)),
        cls=nrm((1, img_hidden)),
        pos_emb=nrm((num_patches + 1, img_hidden)),
        pre_ln_g=ones((img_hidden,)), pre_ln_b=zeros((img_hidden,)),
        layers=[dict(ln1_g=ones((img_hidden,)), ln1_b=zeros((img_hidden,)),
                     ln2_g=ones((img_hidden,)), ln2_b=zeros((img_hidden,)),
                     attn=attn_params(img_hidden),
                     fc1_w=nrm((img_hidden, img_ffn)), fc1_b=zeros((img_ffn,)),
                     fc2_w=nrm((img_ffn, img_hidden)), fc2_b=zeros((img_hidden,)))
                for _ in range(img_layers)],
    )

    txt = dict(
        word_emb=nrm((vocab, txt_dim)),
        pos_emb=nrm((max_pos, txt_dim)),
        emb_ln_g=ones((txt_dim,)), emb_ln_b=zeros((txt_dim,)),
        layers=[dict(attn=attn_params(txt_dim),
                     sa_ln_g=ones((txt_dim,)), sa_ln_b=zeros((txt_dim,)),
                     ffn1_w=nrm((txt_dim, txt_ffn)), ffn1_b=zeros((txt_ffn,)),
                     ffn2_w=nrm((txt_ffn, txt_dim)), ffn2_b=zeros((txt_dim,)),
                     out_ln_g=ones((txt_dim,)), out_ln_b=zeros((txt_dim,)))
                for _ in range(txt_layers)],
    )

    mapping = []
    for i in range(num_mlp_layers):
        in_dim = img_hidden if i == 0 else mlp_hidden_dim
        out_dim = txt_dim if i + 1 == num_mlp_layers else mlp_hidden_dim
        mapping.append((nrm((in_dim, out_dim)), zeros((out_dim,))))

    return dict(img=img, txt=txt, mapping=mapping,
                lm_head_w=nrm((txt_dim, vocab)),
                img_heads=img_heads, txt_heads=txt_heads)


def prepare_params(p):
    """One-time parameter prep: fuse QKV (1/sqrt(d) folded into the Q columns
    and bias) and cast all matmul weights to bf16 (halves weight DMA; MXU runs
    bf16 x bf16 -> f32 accumulation)."""
    def prep_attn(ap, num_heads):
        dim = ap["wq"].shape[0]
        scale = 1.0 / math.sqrt(dim // num_heads)
        wqkv = jnp.concatenate([ap["wq"] * scale, ap["wk"], ap["wv"]], axis=1)
        bqkv = jnp.concatenate([ap["bq"] * scale, ap["bk"], ap["bv"]])
        return dict(wqkv=wqkv.astype(jnp.bfloat16),
                    bqkv=bqkv.reshape(1, -1).astype(jnp.float32),
                    wo=ap["wo"].astype(jnp.bfloat16),
                    bo=ap["bo"].reshape(1, -1).astype(jnp.float32))

    out = dict(p)

    img = dict(p["img"])
    img["patch_w"] = img["patch_w"].astype(jnp.bfloat16)
    img["layers"] = [dict(lyr,
                          attn=prep_attn(lyr["attn"], p["img_heads"]),
                          fc1_w=lyr["fc1_w"].astype(jnp.bfloat16),
                          fc2_w=lyr["fc2_w"].astype(jnp.bfloat16))
                     for lyr in img["layers"]]
    out["img"] = img

    txt = dict(p["txt"])
    txt["layers"] = [dict(lyr,
                          attn=prep_attn(lyr["attn"], p["txt_heads"]),
                          ffn1_w=lyr["ffn1_w"].astype(jnp.bfloat16),
                          ffn2_w=lyr["ffn2_w"].astype(jnp.bfloat16))
                     for lyr in txt["layers"]]
    out["txt"] = txt

    out["mapping"] = [(w.astype(jnp.bfloat16), b) for w, b in p["mapping"]]
    out["lm_head_w"] = p["lm_head_w"].astype(jnp.bfloat16)
    return out


# ---------------------------------- main ------------------------------------

if __name__ == "__main__":
    key = jax.random.PRNGKey(0)
    pkey, ikey, tkey, mkey = jax.random.split(key, 4)

    B, C, HW, P = 2, 3, 16, 8
    SEQ, VOCAB = 8, 64
    params = init_params(pkey, img_size=HW, patch=P, img_channels=C,
                         vocab=VOCAB)
    params = prepare_params(params)

    input_img = jax.random.normal(ikey, (B, C, HW, HW), jnp.float32)   # NCHW
    input_ids = jax.random.randint(tkey, (B, SEQ), 0, VOCAB)
    attn_mask = (jax.random.uniform(mkey, (B, SEQ)) > 0.2).astype(jnp.float32)

    @jax.jit
    def forward(img, ids, mask):
        return clipqa_forward(params, img, ids, mask)

    logits = forward(input_img, input_ids, attn_mask)
    logits = jax.block_until_ready(logits)

    num_img_tokens = (HW // P) ** 2 + 1   # patches + CLS
    assert logits.shape == (B, SEQ + num_img_tokens, VOCAB), logits.shape
    assert bool(jnp.all(jnp.isfinite(logits)))
    print("KERNEL_OK")
</pallas_src>

<mosaic_0001>
module attributes {stable_mosaic.version = 11 : i64} {
  func.func @k(%arg0: i32, %arg1: memref<8x128xf32, #tpu.memory_space<vmem>>, %arg2: memref<8x128xf32, #tpu.memory_space<vmem>>, %arg3: memref<8x128xf32, #tpu.memory_space<vmem>>) attributes {dimension_semantics = [#tpu.dimension_semantics<arbitrary>], iteration_bounds = array<i64: 2>, scalar_prefetch = 0 : i64, scratch_operands = 0 : i64, tpu.core_type = #tpu.core_type<tc>, window_params = [{pipeline_mode = #tpu.pipeline_mode<synchronous>, transform_indices = @transform_0, window_bounds = array<i64: 8, 128>}, {pipeline_mode = #tpu.pipeline_mode<synchronous>, transform_indices = @transform_1, window_bounds = array<i64: 8, 128>}, {pipeline_mode = #tpu.pipeline_mode<synchronous>, transform_indices = @transform_2, window_bounds = array<i64: 8, 128>}]} {
    %c0 = arith.constant 0 : index
    %c0_0 = arith.constant 0 : index
    %0 = vector.load %arg1[%c0, %c0_0] : memref<8x128xf32, #tpu.memory_space<vmem>>, vector<8x128xf32>
    %c0_1 = arith.constant 0 : index
    %c0_2 = arith.constant 0 : index
    %1 = vector.load %arg2[%c0_1, %c0_2] : memref<8x128xf32, #tpu.memory_space<vmem>>, vector<8x128xf32>
    %2 = arith.addf %0, %1 : vector<8x128xf32>
    %c0_3 = arith.constant 0 : index
    %c0_4 = arith.constant 0 : index
    %3 = vector.load %arg3[%c0_3, %c0_4] : memref<8x128xf32, #tpu.memory_space<vmem>>, vector<8x128xf32>
    tpu.vector_store %arg3[%c0_3, %c0_4], %2 {strides = array<i32>} : memref<8x128xf32, #tpu.memory_space<vmem>>, vector<8x128xf32>,
    return
  }
  func.func @transform_0(%arg0: i32) -> (i32, i32) {
    %c0_i32 = arith.constant 0 : i32
    %c0_i32_0 = arith.constant 0 : i32
    %c0_i32_1 = arith.constant 0 : i32
    return %c0_i32, %c0_i32_0 : i32, i32
  }
  func.func @transform_1(%arg0: i32) -> (i32, i32) {
    %c0_i32 = arith.constant 0 : i32
    %c0_i32_0 = arith.constant 0 : i32
    %c0_i32_1 = arith.constant 0 : i32
    return %c0_i32, %c0_i32_0 : i32, i32
  }
  func.func @transform_2(%arg0: i32) -> (i32, i32) {
    %c0_i32 = arith.constant 0 : i32
    %c0_i32_0 = arith.constant 0 : i32
    %c0_i32_1 = arith.constant 0 : i32
    return %c0_i32, %c0_i32_0 : i32, i32
  }
}

module attributes {stable_mosaic.version = 11 : i64} {
  func.func @_linear_kernel(%arg0: i32, %arg1: i32, %arg2: i32, %arg3: memref<8x192xf32, #tpu.memory_space<vmem>>, %arg4: memref<192x128xbf16, #tpu.memory_space<vmem>>, %arg5: memref<8x128xf32, #tpu.memory_space<vmem>>) attributes {dimension_semantics = [#tpu.dimension_semantics<parallel>, #tpu.dimension_semantics<parallel>, #tpu.dimension_semantics<arbitrary>], iteration_bounds = array<i64: 1, 1, 1>, scalar_prefetch = 0 : i64, scratch_operands = 0 : i64, tpu.core_type = #tpu.core_type<tc>, window_params = [{transform_indices = @transform_0, window_bounds = array<i64: 8, 192>}, {transform_indices = @transform_1, window_bounds = array<i64: 192, 128>}, {transform_indices = @transform_2, window_bounds = array<i64: 8, 128>}]} {
    %c0 = arith.constant 0 : index
    %c0_0 = arith.constant 0 : index
    %0 = vector.load %arg3[%c0, %c0_0] : memref<8x192xf32, #tpu.memory_space<vmem>>, vector<8x192xf32>
    %1 = arith.truncf %0 : vector<8x192xf32> to vector<8x192xbf16>
    %c0_1 = arith.constant 0 : index
    %c0_2 = arith.constant 0 : index
    %2 = vector.load %arg4[%c0_1, %c0_2] : memref<192x128xbf16, #tpu.memory_space<vmem>>, vector<192x128xbf16>
    %cst = arith.constant dense<0.000000e+00> : vector<8x128xf32>
    %3 = tpu.matmul %1, %2, %cst {dimension_numbers = #tpu.dot_dimension_numbers<[1], [0], [0], [1], [0, 0, 1, 1], [], []>} : vector<8x192xbf16>, vector<192x128xbf16>, vector<8x128xf32> -> vector<8x128xf32>
    %c0_3 = arith.constant 0 : index
    %c0_4 = arith.constant 0 : index
    %4 = vector.load %arg5[%c0_3, %c0_4] : memref<8x128xf32, #tpu.memory_space<vmem>>, vector<8x128xf32>
    tpu.vector_store %arg5[%c0_3, %c0_4], %3 {strides = array<i32>} : memref<8x128xf32, #tpu.memory_space<vmem>>, vector<8x128xf32>,
    return
  }
  func.func @transform_0(%arg0: i32, %arg1: i32, %arg2: i32) -> (i32, i32) {
    %c0_i32 = arith.constant 0 : i32
    return %arg0, %arg2 : i32, i32
  }
  func.func @transform_1(%arg0: i32, %arg1: i32, %arg2: i32) -> (i32, i32) {
    %c0_i32 = arith.constant 0 : i32
    return %arg2, %arg1 : i32, i32
  }
  func.func @transform_2(%arg0: i32, %arg1: i32, %arg2: i32) -> (i32, i32) {
    %c0_i32 = arith.constant 0 : i32
    return %arg0, %arg1 : i32, i32
  }
}

module attributes {stable_mosaic.version = 11 : i64} {
  func.func @_layernorm_kernel(%arg0: i32, %arg1: memref<16x32xf32, #tpu.memory_space<vmem>>, %arg2: memref<1x32xf32, #tpu.memory_space<vmem>>, %arg3: memref<1x32xf32, #tpu.memory_space<vmem>>, %arg4: memref<16x32xf32, #tpu.memory_space<vmem>>) attributes {dimension_semantics = [#tpu.dimension_semantics<parallel>], iteration_bounds = array<i64: 1>, scalar_prefetch = 0 : i64, scratch_operands = 0 : i64, tpu.core_type = #tpu.core_type<tc>, window_params = [{transform_indices = @transform_0, window_bounds = array<i64: 16, 32>}, {pipeline_mode = #tpu.pipeline_mode<synchronous>, transform_indices = @transform_1, window_bounds = array<i64: 1, 32>}, {pipeline_mode = #tpu.pipeline_mode<synchronous>, transform_indices = @transform_2, window_bounds = array<i64: 1, 32>}, {transform_indices = @transform_3, window_bounds = array<i64: 16, 32>}]} {
    %c0 = arith.constant 0 : index
    %c0_0 = arith.constant 0 : index
    %0 = vector.load %arg1[%c0, %c0_0] : memref<16x32xf32, #tpu.memory_space<vmem>>, vector<16x32xf32>
    %c0_1 = arith.constant 0 : index
    %c0_2 = arith.constant 0 : index
    %1 = vector.load %arg2[%c0_1, %c0_2] : memref<1x32xf32, #tpu.memory_space<vmem>>, vector<1x32xf32>
    %c0_3 = arith.constant 0 : index
    %c0_4 = arith.constant 0 : index
    %2 = vector.load %arg3[%c0_3, %c0_4] : memref<1x32xf32, #tpu.memory_space<vmem>>, vector<1x32xf32>
    %cst = arith.constant dense<0.000000e+00> : vector<16xf32>
    %3 = vector.multi_reduction <add>, %0, %cst [1] : vector<16x32xf32> to vector<16xf32>
    %4 = vector.shape_cast %3 : vector<16xf32> to vector<16x1xf32>
    %cst_5 = arith.constant 3.200000e+01 : f32
    %5 = vector.broadcast %cst_5 : f32 to vector<16x1xf32>
    %6 = arith.divf %4, %5 : vector<16x1xf32>
    %7 = vector.broadcast %6 : vector<16x1xf32> to vector<16x32xf32>
    %8 = arith.subf %0, %7 : vector<16x32xf32>
    %9 = arith.mulf %8, %8 : vector<16x32xf32>
    %cst_6 = arith.constant dense<0.000000e+00> : vector<16xf32>
    %10 = vector.multi_reduction <add>, %9, %cst_6 [1] : vector<16x32xf32> to vector<16xf32>
    %11 = vector.shape_cast %10 : vector<16xf32> to vector<16x1xf32>
    %cst_7 = arith.constant 3.200000e+01 : f32
    %12 = vector.broadcast %cst_7 : f32 to vector<16x1xf32>
    %13 = arith.divf %11, %12 : vector<16x1xf32>
    %14 = vector.broadcast %6 : vector<16x1xf32> to vector<16x32xf32>
    %15 = arith.subf %0, %14 : vector<16x32xf32>
    %cst_8 = arith.constant 9.99999974E-6 : f32
    %16 = vector.broadcast %cst_8 : f32 to vector<16x1xf32>
    %17 = arith.addf %13, %16 : vector<16x1xf32>
    %18 = math.rsqrt %17 : vector<16x1xf32>
    %19 = vector.broadcast %18 : vector<16x1xf32> to vector<16x32xf32>
    %20 = arith.mulf %15, %19 : vector<16x32xf32>
    %21 = vector.broadcast %1 : vector<1x32xf32> to vector<16x32xf32>
    %22 = arith.mulf %20, %21 : vector<16x32xf32>
    %23 = vector.broadcast %2 : vector<1x32xf32> to vector<16x32xf32>
    %24 = arith.addf %22, %23 : vector<16x32xf32>
    %c0_9 = arith.constant 0 : index
    %c0_10 = arith.constant 0 : index
    %25 = vector.load %arg4[%c0_9, %c0_10] : memref<16x32xf32, #tpu.memory_space<vmem>>, vector<16x32xf32>
    tpu.vector_store %arg4[%c0_9, %c0_10], %24 {strides = array<i32>} : memref<16x32xf32, #tpu.memory_space<vmem>>, vector<16x32xf32>,
    return
  }
  func.func @transform_0(%arg0: i32) -> (i32, i32) {
    %c0_i32 = arith.constant 0 : i32
    %c0_i32_0 = arith.constant 0 : i32
    return %arg0, %c0_i32 : i32, i32
  }
  func.func @transform_1(%arg0: i32) -> (i32, i32) {
    %c0_i32 = arith.constant 0 : i32
    %c0_i32_0 = arith.constant 0 : i32
    %c0_i32_1 = arith.constant 0 : i32
    return %c0_i32, %c0_i32_0 : i32, i32
  }
  func.func @transform_2(%arg0: i32) -> (i32, i32) {
    %c0_i32 = arith.constant 0 : i32
    %c0_i32_0 = arith.constant 0 : i32
    %c0_i32_1 = arith.constant 0 : i32
    return %c0_i32, %c0_i32_0 : i32, i32
  }
  func.func @transform_3(%arg0: i32) -> (i32, i32) {
    %c0_i32 = arith.constant 0 : i32
    %c0_i32_0 = arith.constant 0 : i32
    return %arg0, %c0_i32 : i32, i32
  }
}

module attributes {stable_mosaic.version = 11 : i64} {
  func.func @_ffn_block_kernel(%arg0: i32, %arg1: memref<16x32xf32, #tpu.memory_space<vmem>>, %arg2: memref<1x32xf32, #tpu.memory_space<vmem>>, %arg3: memref<1x32xf32, #tpu.memory_space<vmem>>, %arg4: memref<32x64xbf16, #tpu.memory_space<vmem>>, %arg5: memref<1x64xf32, #tpu.memory_space<vmem>>, %arg6: memref<64x32xbf16, #tpu.memory_space<vmem>>, %arg7: memref<1x32xf32, #tpu.memory_space<vmem>>, %arg8: memref<16x32xf32, #tpu.memory_space<vmem>>) attributes {dimension_semantics = [#tpu.dimension_semantics<parallel>], iteration_bounds = array<i64: 1>, scalar_prefetch = 0 : i64, scratch_operands = 0 : i64, tpu.core_type = #tpu.core_type<tc>, window_params = [{transform_indices = @transform_0, window_bounds = array<i64: 16, 32>}, {pipeline_mode = #tpu.pipeline_mode<synchronous>, transform_indices = @transform_1, window_bounds = array<i64: 1, 32>}, {pipeline_mode = #tpu.pipeline_mode<synchronous>, transform_indices = @transform_2, window_bounds = array<i64: 1, 32>}, {pipeline_mode = #tpu.pipeline_mode<synchronous>, transform_indices = @transform_3, window_bounds = array<i64: 32, 64>}, {pipeline_mode = #tpu.pipeline_mode<synchronous>, transform_indices = @transform_4, window_bounds = array<i64: 1, 64>}, {pipeline_mode = #tpu.pipeline_mode<synchronous>, transform_indices = @transform_5, window_bounds = array<i64: 64, 32>}, {pipeline_mode = #tpu.pipeline_mode<synchronous>, transform_indices = @transform_6, window_bounds = array<i64: 1, 32>}, {transform_indices = @transform_7, window_bounds = array<i64: 16, 32>}]} {
    %c0 = arith.constant 0 : index
    %c0_0 = arith.constant 0 : index
    %0 = vector.load %arg1[%c0, %c0_0] : memref<16x32xf32, #tpu.memory_space<vmem>>, vector<16x32xf32>
    %c0_1 = arith.constant 0 : index
    %c0_2 = arith.constant 0 : index
    %1 = vector.load %arg2[%c0_1, %c0_2] : memref<1x32xf32, #tpu.memory_space<vmem>>, vector<1x32xf32>
    %c0_3 = arith.constant 0 : index
    %c0_4 = arith.constant 0 : index
    %2 = vector.load %arg3[%c0_3, %c0_4] : memref<1x32xf32, #tpu.memory_space<vmem>>, vector<1x32xf32>
    %cst = arith.constant dense<0.000000e+00> : vector<16xf32>
    %3 = vector.multi_reduction <add>, %0, %cst [1] : vector<16x32xf32> to vector<16xf32>
    %4 = vector.shape_cast %3 : vector<16xf32> to vector<16x1xf32>
    %cst_5 = arith.constant 3.200000e+01 : f32
    %5 = vector.broadcast %cst_5 : f32 to vector<16x1xf32>
    %6 = arith.divf %4, %5 : vector<16x1xf32>
    %7 = vector.broadcast %6 : vector<16x1xf32> to vector<16x32xf32>
    %8 = arith.subf %0, %7 : vector<16x32xf32>
    %9 = arith.mulf %8, %8 : vector<16x32xf32>
    %cst_6 = arith.constant dense<0.000000e+00> : vector<16xf32>
    %10 = vector.multi_reduction <add>, %9, %cst_6 [1] : vector<16x32xf32> to vector<16xf32>
    %11 = vector.shape_cast %10 : vector<16xf32> to vector<16x1xf32>
    %cst_7 = arith.constant 3.200000e+01 : f32
    %12 = vector.broadcast %cst_7 : f32 to vector<16x1xf32>
    %13 = arith.divf %11, %12 : vector<16x1xf32>
    %14 = vector.broadcast %6 : vector<16x1xf32> to vector<16x32xf32>
    %15 = arith.subf %0, %14 : vector<16x32xf32>
    %cst_8 = arith.constant 9.99999974E-6 : f32
    %16 = vector.broadcast %cst_8 : f32 to vector<16x1xf32>
    %17 = arith.addf %13, %16 : vector<16x1xf32>
    %18 = math.rsqrt %17 : vector<16x1xf32>
    %19 = vector.broadcast %18 : vector<16x1xf32> to vector<16x32xf32>
    %20 = arith.mulf %15, %19 : vector<16x32xf32>
    %21 = vector.broadcast %1 : vector<1x32xf32> to vector<16x32xf32>
    %22 = arith.mulf %20, %21 : vector<16x32xf32>
    %23 = vector.broadcast %2 : vector<1x32xf32> to vector<16x32xf32>
    %24 = arith.addf %22, %23 : vector<16x32xf32>
    %25 = arith.truncf %24 : vector<16x32xf32> to vector<16x32xbf16>
    %c0_9 = arith.constant 0 : index
    %c0_10 = arith.constant 0 : index
    %26 = vector.load %arg4[%c0_9, %c0_10] : memref<32x64xbf16, #tpu.memory_space<vmem>>, vector<32x64xbf16>
    %cst_11 = arith.constant dense<0.000000e+00> : vector<16x64xf32>
    %27 = tpu.matmul %25, %26, %cst_11 {dimension_numbers = #tpu.dot_dimension_numbers<[1], [0], [0], [1], [0, 0, 1, 1], [], []>} : vector<16x32xbf16>, vector<32x64xbf16>, vector<16x64xf32> -> vector<16x64xf32>
    %c0_12 = arith.constant 0 : index
    %c0_13 = arith.constant 0 : index
    %28 = vector.load %arg5[%c0_12, %c0_13] : memref<1x64xf32, #tpu.memory_space<vmem>>, vector<1x64xf32>
    %29 = vector.broadcast %28 : vector<1x64xf32> to vector<16x64xf32>
    %30 = arith.addf %27, %29 : vector<16x64xf32>
    %cst_14 = arith.constant 1.702000e+00 : f32
    %31 = vector.broadcast %cst_14 : f32 to vector<16x64xf32>
    %32 = arith.mulf %31, %30 : vector<16x64xf32>
    %33 = arith.negf %32 : vector<16x64xf32>
    %34 = math.exp %33 : vector<16x64xf32>
    %cst_15 = arith.constant 1.000000e+00 : f32
    %35 = vector.broadcast %cst_15 : f32 to vector<16x64xf32>
    %36 = arith.addf %35, %34 : vector<16x64xf32>
    %37 = arith.divf %35, %36 : vector<16x64xf32>
    %38 = arith.mulf %30, %37 : vector<16x64xf32>
    %39 = arith.truncf %38 : vector<16x64xf32> to vector<16x64xbf16>
    %c0_16 = arith.constant 0 : index
    %c0_17 = arith.constant 0 : index
    %40 = vector.load %arg6[%c0_16, %c0_17] : memref<64x32xbf16, #tpu.memory_space<vmem>>, vector<64x32xbf16>
    %cst_18 = arith.constant dense<0.000000e+00> : vector<16x32xf32>
    %41 = tpu.matmul %39, %40, %cst_18 {dimension_numbers = #tpu.dot_dimension_numbers<[1], [0], [0], [1], [0, 0, 1, 1], [], []>} : vector<16x64xbf16>, vector<64x32xbf16>, vector<16x32xf32> -> vector<16x32xf32>
    %c0_19 = arith.constant 0 : index
    %c0_20 = arith.constant 0 : index
    %42 = vector.load %arg7[%c0_19, %c0_20] : memref<1x32xf32, #tpu.memory_space<vmem>>, vector<1x32xf32>
    %43 = vector.broadcast %42 : vector<1x32xf32> to vector<16x32xf32>
    %44 = arith.addf %41, %43 : vector<16x32xf32>
    %45 = arith.addf %0, %44 : vector<16x32xf32>
    %c0_21 = arith.constant 0 : index
    %c0_22 = arith.constant 0 : index
    %46 = vector.load %arg8[%c0_21, %c0_22] : memref<16x32xf32, #tpu.memory_space<vmem>>, vector<16x32xf32>
    tpu.vector_store %arg8[%c0_21, %c0_22], %45 {strides = array<i32>} : memref<16x32xf32, #tpu.memory_space<vmem>>, vector<16x32xf32>,
    return
  }
  func.func @transform_0(%arg0: i32) -> (i32, i32) {
    %c0_i32 = arith.constant 0 : i32
    %c0_i32_0 = arith.constant 0 : i32
    return %arg0, %c0_i32 : i32, i32
  }
  func.func @transform_1(%arg0: i32) -> (i32, i32) {
    %c0_i32 = arith.constant 0 : i32
    %c0_i32_0 = arith.constant 0 : i32
    %c0_i32_1 = arith.constant 0 : i32
    return %c0_i32, %c0_i32_0 : i32, i32
  }
  func.func @transform_2(%arg0: i32) -> (i32, i32) {
    %c0_i32 = arith.constant 0 : i32
    %c0_i32_0 = arith.constant 0 : i32
    %c0_i32_1 = arith.constant 0 : i32
    return %c0_i32, %c0_i32_0 : i32, i32
  }
  func.func @transform_3(%arg0: i32) -> (i32, i32) {
    %c0_i32 = arith.constant 0 : i32
    %c0_i32_0 = arith.constant 0 : i32
    %c0_i32_1 = arith.constant 0 : i32
    return %c0_i32, %c0_i32_0 : i32, i32
  }
  func.func @transform_4(%arg0: i32) -> (i32, i32) {
    %c0_i32 = arith.constant 0 : i32
    %c0_i32_0 = arith.constant 0 : i32
    %c0_i32_1 = arith.constant 0 : i32
    return %c0_i32, %c0_i32_0 : i32, i32
  }
  func.func @transform_5(%arg0: i32) -> (i32, i32) {
    %c0_i32 = arith.constant 0 : i32
    %c0_i32_0 = arith.constant 0 : i32
    %c0_i32_1 = arith.constant 0 : i32
    return %c0_i32, %c0_i32_0 : i32, i32
  }
  func.func @transform_6(%arg0: i32) -> (i32, i32) {
    %c0_i32 = arith.constant 0 : i32
    %c0_i32_0 = arith.constant 0 : i32
    %c0_i32_1 = arith.constant 0 : i32
    return %c0_i32, %c0_i32_0 : i32, i32
  }
  func.func @transform_7(%arg0: i32) -> (i32, i32) {
    %c0_i32 = arith.constant 0 : i32
    %c0_i32_0 = arith.constant 0 : i32
    return %arg0, %c0_i32 : i32, i32
  }
}

module attributes {stable_mosaic.version = 11 : i64} {
  func.func @_attn_block_kernel(%arg0: i32, %arg1: i32, %arg2: memref<1x8x32xf32, #tpu.memory_space<vmem>>, %arg3: memref<1x1x8xf32, #tpu.memory_space<vmem>>, %arg4: memref<1x32xf32, #tpu.memory_space<vmem>>, %arg5: memref<1x32xf32, #tpu.memory_space<vmem>>, %arg6: memref<32x96xbf16, #tpu.memory_space<vmem>>, %arg7: memref<1x96xf32, #tpu.memory_space<vmem>>, %arg8: memref<32x32xbf16, #tpu.memory_space<vmem>>, %arg9: memref<1x32xf32, #tpu.memory_space<vmem>>, %arg10: memref<1x8x32xf32, #tpu.memory_space<vmem>>) attributes {dimension_semantics = [#tpu.dimension_semantics<parallel>, #tpu.dimension_semantics<parallel>], iteration_bounds = array<i64: 2, 1>, scalar_prefetch = 0 : i64, scratch_operands = 0 : i64, tpu.core_type = #tpu.core_type<tc>, window_params = [{transform_indices = @transform_0, window_bounds = array<i64: 1, 8, 32>}, {transform_indices = @transform_1, window_bounds = array<i64: 1, 1, 8>}, {pipeline_mode = #tpu.pipeline_mode<synchronous>, transform_indices = @transform_2, window_bounds = array<i64: 1, 32>}, {pipeline_mode = #tpu.pipeline_mode<synchronous>, transform_indices = @transform_3, window_bounds = array<i64: 1, 32>}, {pipeline_mode = #tpu.pipeline_mode<synchronous>, transform_indices = @transform_4, window_bounds = array<i64: 32, 96>}, {pipeline_mode = #tpu.pipeline_mode<synchronous>, transform_indices = @transform_5, window_bounds = array<i64: 1, 96>}, {pipeline_mode = #tpu.pipeline_mode<synchronous>, transform_indices = @transform_6, window_bounds = array<i64: 32, 32>}, {pipeline_mode = #tpu.pipeline_mode<synchronous>, transform_indices = @transform_7, window_bounds = array<i64: 1, 32>}, {transform_indices = @transform_8, window_bounds = array<i64: 1, 8, 32>}]} {
    %c8_i32 = arith.constant 8 : i32
    %0 = arith.muli %arg1, %c8_i32 : i32
    %1 = tpu.assume_multiple %0, 8 : i32
    %c0 = arith.constant 0 : index
    %c0_0 = arith.constant 0 : index
    %c0_1 = arith.constant 0 : index
    %2 = vector.load %arg2[%c0, %c0_0, %c0_1] : memref<1x8x32xf32, #tpu.memory_space<vmem>>, vector<1x8x32xf32>
    %3 = vector.shape_cast %2 : vector<1x8x32xf32> to vector<8x32xf32>
    %c0_2 = arith.constant 0 : index
    %4 = arith.index_cast %1 : i32 to index
    %c0_3 = arith.constant 0 : index
    %5 = vector.load %arg2[%c0_2, %4, %c0_3] : memref<1x8x32xf32, #tpu.memory_space<vmem>>, vector<1x8x32xf32>
    %6 = vector.shape_cast %5 : vector<1x8x32xf32> to vector<8x32xf32>
    %c0_4 = arith.constant 0 : index
    %c0_5 = arith.constant 0 : index
    %7 = vector.load %arg4[%c0_4, %c0_5] : memref<1x32xf32, #tpu.memory_space<vmem>>, vector<1x32xf32>
    %c0_6 = arith.constant 0 : index
    %c0_7 = arith.constant 0 : index
    %8 = vector.load %arg5[%c0_6, %c0_7] : memref<1x32xf32, #tpu.memory_space<vmem>>, vector<1x32xf32>
    %cst = arith.constant dense<0.000000e+00> : vector<8xf32>
    %9 = vector.multi_reduction <add>, %3, %cst [1] : vector<8x32xf32> to vector<8xf32>
    %10 = vector.shape_cast %9 : vector<8xf32> to vector<8x1xf32>
    %cst_8 = arith.constant 3.200000e+01 : f32
    %11 = vector.broadcast %cst_8 : f32 to vector<8x1xf32>
    %12 = arith.divf %10, %11 : vector<8x1xf32>
    %13 = vector.broadcast %12 : vector<8x1xf32> to vector<8x32xf32>
    %14 = arith.subf %3, %13 : vector<8x32xf32>
    %15 = arith.mulf %14, %14 : vector<8x32xf32>
    %cst_9 = arith.constant dense<0.000000e+00> : vector<8xf32>
    %16 = vector.multi_reduction <add>, %15, %cst_9 [1] : vector<8x32xf32> to vector<8xf32>
    %17 = vector.shape_cast %16 : vector<8xf32> to vector<8x1xf32>
    %cst_10 = arith.constant 3.200000e+01 : f32
    %18 = vector.broadcast %cst_10 : f32 to vector<8x1xf32>
    %19 = arith.divf %17, %18 : vector<8x1xf32>
    %20 = vector.broadcast %12 : vector<8x1xf32> to vector<8x32xf32>
    %21 = arith.subf %3, %20 : vector<8x32xf32>
    %cst_11 = arith.constant 9.99999974E-6 : f32
    %22 = vector.broadcast %cst_11 : f32 to vector<8x1xf32>
    %23 = arith.addf %19, %22 : vector<8x1xf32>
    %24 = math.rsqrt %23 : vector<8x1xf32>
    %25 = vector.broadcast %24 : vector<8x1xf32> to vector<8x32xf32>
    %26 = arith.mulf %21, %25 : vector<8x32xf32>
    %27 = vector.broadcast %7 : vector<1x32xf32> to vector<8x32xf32>
    %28 = arith.mulf %26, %27 : vector<8x32xf32>
    %29 = vector.broadcast %8 : vector<1x32xf32> to vector<8x32xf32>
    %30 = arith.addf %28, %29 : vector<8x32xf32>
    %cst_12 = arith.constant dense<0.000000e+00> : vector<8xf32>
    %31 = vector.multi_reduction <add>, %6, %cst_12 [1] : vector<8x32xf32> to vector<8xf32>
    %32 = vector.shape_cast %31 : vector<8xf32> to vector<8x1xf32>
    %cst_13 = arith.constant 3.200000e+01 : f32
    %33 = vector.broadcast %cst_13 : f32 to vector<8x1xf32>
    %34 = arith.divf %32, %33 : vector<8x1xf32>
    %35 = vector.broadcast %34 : vector<8x1xf32> to vector<8x32xf32>
    %36 = arith.subf %6, %35 : vector<8x32xf32>
    %37 = arith.mulf %36, %36 : vector<8x32xf32>
    %cst_14 = arith.constant dense<0.000000e+00> : vector<8xf32>
    %38 = vector.multi_reduction <add>, %37, %cst_14 [1] : vector<8x32xf32> to vector<8xf32>
    %39 = vector.shape_cast %38 : vector<8xf32> to vector<8x1xf32>
    %cst_15 = arith.constant 3.200000e+01 : f32
    %40 = vector.broadcast %cst_15 : f32 to vector<8x1xf32>
    %41 = arith.divf %39, %40 : vector<8x1xf32>
    %42 = vector.broadcast %34 : vector<8x1xf32> to vector<8x32xf32>
    %43 = arith.subf %6, %42 : vector<8x32xf32>
    %cst_16 = arith.constant 9.99999974E-6 : f32
    %44 = vector.broadcast %cst_16 : f32 to vector<8x1xf32>
    %45 = arith.addf %41, %44 : vector<8x1xf32>
    %46 = math.rsqrt %45 : vector<8x1xf32>
    %47 = vector.broadcast %46 : vector<8x1xf32> to vector<8x32xf32>
    %48 = arith.mulf %43, %47 : vector<8x32xf32>
    %49 = vector.broadcast %7 : vector<1x32xf32> to vector<8x32xf32>
    %50 = arith.mulf %48, %49 : vector<8x32xf32>
    %51 = vector.broadcast %8 : vector<1x32xf32> to vector<8x32xf32>
    %52 = arith.addf %50, %51 : vector<8x32xf32>
    %53 = arith.truncf %30 : vector<8x32xf32> to vector<8x32xbf16>
    %54 = arith.truncf %52 : vector<8x32xf32> to vector<8x32xbf16>
    %c0_17 = arith.constant 0 : index
    %c0_18 = arith.constant 0 : index
    %55 = vector.load %arg6[%c0_17, %c0_18] : memref<32x96xbf16, #tpu.memory_space<vmem>>, vector<32x32xbf16>
    %cst_19 = arith.constant dense<0.000000e+00> : vector<8x32xf32>
    %56 = tpu.matmul %54, %55, %cst_19 {dimension_numbers = #tpu.dot_dimension_numbers<[1], [0], [0], [1], [0, 0, 1, 1], [], []>} : vector<8x32xbf16>, vector<32x32xbf16>, vector<8x32xf32> -> vector<8x32xf32>
    %c0_20 = arith.constant 0 : index
    %c0_21 = arith.constant 0 : index
    %57 = vector.load %arg7[%c0_20, %c0_21] : memref<1x96xf32, #tpu.memory_space<vmem>>, vector<1x32xf32>
    %58 = vector.broadcast %57 : vector<1x32xf32> to vector<8x32xf32>
    %59 = arith.addf %56, %58 : vector<8x32xf32>
    %c0_22 = arith.constant 0 : index
    %c32 = arith.constant 32 : index
    %60 = vector.load %arg6[%c0_22, %c32] : memref<32x96xbf16, #tpu.memory_space<vmem>>, vector<32x64xbf16>
    %cst_23 = arith.constant dense<0.000000e+00> : vector<8x64xf32>
    %61 = tpu.matmul %53, %60, %cst_23 {dimension_numbers = #tpu.dot_dimension_numbers<[1], [0], [0], [1], [0, 0, 1, 1], [], []>} : vector<8x32xbf16>, vector<32x64xbf16>, vector<8x64xf32> -> vector<8x64xf32>
    %c0_24 = arith.constant 0 : index
    %c32_25 = arith.constant 32 : index
    %62 = vector.load %arg7[%c0_24, %c32_25] : memref<1x96xf32, #tpu.memory_space<vmem>>, vector<1x64xf32>
    %63 = vector.broadcast %62 : vector<1x64xf32> to vector<8x64xf32>
    %64 = arith.addf %61, %63 : vector<8x64xf32>
    %c0_26 = arith.constant 0 : index
    %c0_27 = arith.constant 0 : index
    %c0_28 = arith.constant 0 : index
    %65 = vector.load %arg3[%c0_26, %c0_27, %c0_28] : memref<1x1x8xf32, #tpu.memory_space<vmem>>, vector<1x1x8xf32>
    %66 = vector.shape_cast %65 : vector<1x1x8xf32> to vector<1x8xf32>
    %cst_29 = arith.constant 0.000000e+00 : f32
    %67 = vector.broadcast %cst_29 : f32 to vector<8x32xf32>
    %68 = vector.extract_strided_slice %59 {offsets = [0, 0], sizes = [8, 16], strides = [1, 1]} : vector<8x32xf32> to vector<8x16xf32>
    %69 = arith.truncf %68 : vector<8x16xf32> to vector<8x16xbf16>
    %70 = vector.extract_strided_slice %64 {offsets = [0, 0], sizes = [8, 16], strides = [1, 1]} : vector<8x64xf32> to vector<8x16xf32>
    %71 = arith.truncf %70 : vector<8x16xf32> to vector<8x16xbf16>
    %72 = vector.extract_strided_slice %64 {offsets = [0, 32], sizes = [8, 16], strides = [1, 1]} : vector<8x64xf32> to vector<8x16xf32>
    %73 = arith.truncf %72 : vector<8x16xf32> to vector<8x16xbf16>
    %cst_30 = arith.constant dense<0.000000e+00> : vector<8x8xf32>
    %74 = tpu.matmul %69, %71, %cst_30 {dimension_numbers = #tpu.dot_dimension_numbers<[1], [1], [0], [0], [0, 0, 1, 0], [], []>} : vector<8x16xbf16>, vector<8x16xbf16>, vector<8x8xf32> -> vector<8x8xf32>
    %75 = vector.broadcast %66 : vector<1x8xf32> to vector<8x8xf32>
    %76 = arith.addf %74, %75 : vector<8x8xf32>
    %cst_31 = arith.constant dense<0xFF800000> : vector<8xf32>
    %77 = vector.multi_reduction <maximumf>, %76, %cst_31 [1] : vector<8x8xf32> to vector<8xf32>
    %78 = vector.shape_cast %77 : vector<8xf32> to vector<8x1xf32>
    %79 = vector.broadcast %78 : vector<8x1xf32> to vector<8x8xf32>
    %80 = arith.subf %76, %79 : vector<8x8xf32>
    %81 = math.exp %80 : vector<8x8xf32>
    %cst_32 = arith.constant dense<0.000000e+00> : vector<8xf32>
    %82 = vector.multi_reduction <add>, %81, %cst_32 [1] : vector<8x8xf32> to vector<8xf32>
    %83 = vector.shape_cast %82 : vector<8xf32> to vector<8x1xf32>
    %84 = tpu.reciprocal %83 {approx = true} : vector<8x1xf32> -> vector<8x1xf32>
    %85 = vector.broadcast %84 : vector<8x1xf32> to vector<8x8xf32>
    %86 = arith.mulf %81, %85 : vector<8x8xf32>
    %87 = arith.truncf %86 : vector<8x8xf32> to vector<8x8xbf16>
    %cst_33 = arith.constant dense<0.000000e+00> : vector<8x16xf32>
    %88 = tpu.matmul %87, %73, %cst_33 {dimension_numbers = #tpu.dot_dimension_numbers<[1], [0], [0], [1], [0, 0, 1, 1], [], []>} : vector<8x8xbf16>, vector<8x16xbf16>, vector<8x16xf32> -> vector<8x16xf32>
    %89 = arith.truncf %88 : vector<8x16xf32> to vector<8x16xbf16>
    %c0_34 = arith.constant 0 : index
    %c0_35 = arith.constant 0 : index
    %90 = vector.load %arg8[%c0_34, %c0_35] : memref<32x32xbf16, #tpu.memory_space<vmem>>, vector<16x32xbf16>
    %cst_36 = arith.constant dense<0.000000e+00> : vector<8x32xf32>
    %91 = tpu.matmul %89, %90, %cst_36 {dimension_numbers = #tpu.dot_dimension_numbers<[1], [0], [0], [1], [0, 0, 1, 1], [], []>} : vector<8x16xbf16>, vector<16x32xbf16>, vector<8x32xf32> -> vector<8x32xf32>
    %92 = arith.addf %67, %91 : vector<8x32xf32>
    %93 = vector.extract_strided_slice %59 {offsets = [0, 16], sizes = [8, 16], strides = [1, 1]} : vector<8x32xf32> to vector<8x16xf32>
    %94 = arith.truncf %93 : vector<8x16xf32> to vector<8x16xbf16>
    %95 = vector.extract_strided_slice %64 {offsets = [0, 16], sizes = [8, 16], strides = [1, 1]} : vector<8x64xf32> to vector<8x16xf32>
    %96 = arith.truncf %95 : vector<8x16xf32> to vector<8x16xbf16>
    %97 = vector.extract_strided_slice %64 {offsets = [0, 48], sizes = [8, 16], strides = [1, 1]} : vector<8x64xf32> to vector<8x16xf32>
    %98 = arith.truncf %97 : vector<8x16xf32> to vector<8x16xbf16>
    %cst_37 = arith.constant dense<0.000000e+00> : vector<8x8xf32>
    %99 = tpu.matmul %94, %96, %cst_37 {dimension_numbers = #tpu.dot_dimension_numbers<[1], [1], [0], [0], [0, 0, 1, 0], [], []>} : vector<8x16xbf16>, vector<8x16xbf16>, vector<8x8xf32> -> vector<8x8xf32>
    %100 = vector.broadcast %66 : vector<1x8xf32> to vector<8x8xf32>
    %101 = arith.addf %99, %100 : vector<8x8xf32>
    %cst_38 = arith.constant dense<0xFF800000> : vector<8xf32>
    %102 = vector.multi_reduction <maximumf>, %101, %cst_38 [1] : vector<8x8xf32> to vector<8xf32>
    %103 = vector.shape_cast %102 : vector<8xf32> to vector<8x1xf32>
    %104 = vector.broadcast %103 : vector<8x1xf32> to vector<8x8xf32>
    %105 = arith.subf %101, %104 : vector<8x8xf32>
    %106 = math.exp %105 : vector<8x8xf32>
    %cst_39 = arith.constant dense<0.000000e+00> : vector<8xf32>
    %107 = vector.multi_reduction <add>, %106, %cst_39 [1] : vector<8x8xf32> to vector<8xf32>
    %108 = vector.shape_cast %107 : vector<8xf32> to vector<8x1xf32>
    %109 = tpu.reciprocal %108 {approx = true} : vector<8x1xf32> -> vector<8x1xf32>
    %110 = vector.broadcast %109 : vector<8x1xf32> to vector<8x8xf32>
    %111 = arith.mulf %106, %110 : vector<8x8xf32>
    %112 = arith.truncf %111 : vector<8x8xf32> to vector<8x8xbf16>
    %cst_40 = arith.constant dense<0.000000e+00> : vector<8x16xf32>
    %113 = tpu.matmul %112, %98, %cst_40 {dimension_numbers = #tpu.dot_dimension_numbers<[1], [0], [0], [1], [0, 0, 1, 1], [], []>} : vector<8x8xbf16>, vector<8x16xbf16>, vector<8x16xf32> -> vector<8x16xf32>
    %114 = arith.truncf %113 : vector<8x16xf32> to vector<8x16xbf16>
    %c16 = arith.constant 16 : index
    %c0_41 = arith.constant 0 : index
    %115 = vector.load %arg8[%c16, %c0_41] : memref<32x32xbf16, #tpu.memory_space<vmem>>, vector<16x32xbf16>
    %cst_42 = arith.constant dense<0.000000e+00> : vector<8x32xf32>
    %116 = tpu.matmul %114, %115, %cst_42 {dimension_numbers = #tpu.dot_dimension_numbers<[1], [0], [0], [1], [0, 0, 1, 1], [], []>} : vector<8x16xbf16>, vector<16x32xbf16>, vector<8x32xf32> -> vector<8x32xf32>
    %117 = arith.addf %92, %116 : vector<8x32xf32>
    %118 = arith.addf %6, %117 : vector<8x32xf32>
    %c0_43 = arith.constant 0 : index
    %c0_44 = arith.constant 0 : index
    %119 = vector.load %arg9[%c0_43, %c0_44] : memref<1x32xf32, #tpu.memory_space<vmem>>, vector<1x32xf32>
    %120 = vector.broadcast %119 : vector<1x32xf32> to vector<8x32xf32>
    %121 = arith.addf %118, %120 : vector<8x32xf32>
    %c0_45 = arith.constant 0 : index
    %c0_46 = arith.constant 0 : index
    %c0_47 = arith.constant 0 : index
    %122 = vector.load %arg10[%c0_45, %c0_46, %c0_47] : memref<1x8x32xf32, #tpu.memory_space<vmem>>, vector<1x8x32xf32>
    %123 = vector.shape_cast %122 : vector<1x8x32xf32> to vector<8x32xf32>
    %124 = vector.shape_cast %121 : vector<8x32xf32> to vector<1x8x32xf32>
    tpu.vector_store %arg10[%c0_45, %c0_46, %c0_47], %124 {strides = array<i32>} : memref<1x8x32xf32, #tpu.memory_space<vmem>>, vector<1x8x32xf32>,
    return
  }
  func.func @transform_0(%arg0: i32, %arg1: i32) -> (i32, i32, i32) {
    %c0_i32 = arith.constant 0 : i32
    %c0_i32_0 = arith.constant 0 : i32
    %c0_i32_1 = arith.constant 0 : i32
    return %arg0, %c0_i32, %c0_i32_0 : i32, i32, i32
  }
  func.func @transform_1(%arg0: i32, %arg1: i32) -> (i32, i32, i32) {
    %c0_i32 = arith.constant 0 : i32
    %c0_i32_0 = arith.constant 0 : i32
    %c0_i32_1 = arith.constant 0 : i32
    return %arg0, %c0_i32, %c0_i32_0 : i32, i32, i32
  }
  func.func @transform_2(%arg0: i32, %arg1: i32) -> (i32, i32) {
    %c0_i32 = arith.constant 0 : i32
    %c0_i32_0 = arith.constant 0 : i32
    %c0_i32_1 = arith.constant 0 : i32
    return %c0_i32, %c0_i32_0 : i32, i32
  }
  func.func @transform_3(%arg0: i32, %arg1: i32) -> (i32, i32) {
    %c0_i32 = arith.constant 0 : i32
    %c0_i32_0 = arith.constant 0 : i32
    %c0_i32_1 = arith.constant 0 : i32
    return %c0_i32, %c0_i32_0 : i32, i32
  }
  func.func @transform_4(%arg0: i32, %arg1: i32) -> (i32, i32) {
    %c0_i32 = arith.constant 0 : i32
    %c0_i32_0 = arith.constant 0 : i32
    %c0_i32_1 = arith.constant 0 : i32
    return %c0_i32, %c0_i32_0 : i32, i32
  }
  func.func @transform_5(%arg0: i32, %arg1: i32) -> (i32, i32) {
    %c0_i32 = arith.constant 0 : i32
    %c0_i32_0 = arith.constant 0 : i32
    %c0_i32_1 = arith.constant 0 : i32
    return %c0_i32, %c0_i32_0 : i32, i32
  }
  func.func @transform_6(%arg0: i32, %arg1: i32) -> (i32, i32) {
    %c0_i32 = arith.constant 0 : i32
    %c0_i32_0 = arith.constant 0 : i32
    %c0_i32_1 = arith.constant 0 : i32
    return %c0_i32, %c0_i32_0 : i32, i32
  }
  func.func @transform_7(%arg0: i32, %arg1: i32) -> (i32, i32) {
    %c0_i32 = arith.constant 0 : i32
    %c0_i32_0 = arith.constant 0 : i32
    %c0_i32_1 = arith.constant 0 : i32
    return %c0_i32, %c0_i32_0 : i32, i32
  }
  func.func @transform_8(%arg0: i32, %arg1: i32) -> (i32, i32, i32) {
    %c0_i32 = arith.constant 0 : i32
    %c0_i32_0 = arith.constant 0 : i32
    return %arg0, %arg1, %c0_i32 : i32, i32, i32
  }
}

module attributes {stable_mosaic.version = 11 : i64} {
  func.func @_linear_kernel(%arg0: i32, %arg1: i32, %arg2: i32, %arg3: memref<16x32xf32, #tpu.memory_space<vmem>>, %arg4: memref<32x128xbf16, #tpu.memory_space<vmem>>, %arg5: memref<1x128xf32, #tpu.memory_space<vmem>>, %arg6: memref<16x128xf32, #tpu.memory_space<vmem>>) attributes {dimension_semantics = [#tpu.dimension_semantics<parallel>, #tpu.dimension_semantics<parallel>, #tpu.dimension_semantics<arbitrary>], iteration_bounds = array<i64: 1, 1, 1>, scalar_prefetch = 0 : i64, scratch_operands = 0 : i64, tpu.core_type = #tpu.core_type<tc>, window_params = [{transform_indices = @transform_0, window_bounds = array<i64: 16, 32>}, {transform_indices = @transform_1, window_bounds = array<i64: 32, 128>}, {transform_indices = @transform_2, window_bounds = array<i64: 1, 128>}, {transform_indices = @transform_3, window_bounds = array<i64: 16, 128>}]} {
    %c0 = arith.constant 0 : index
    %c0_0 = arith.constant 0 : index
    %0 = vector.load %arg3[%c0, %c0_0] : memref<16x32xf32, #tpu.memory_space<vmem>>, vector<16x32xf32>
    %1 = arith.truncf %0 : vector<16x32xf32> to vector<16x32xbf16>
    %c0_1 = arith.constant 0 : index
    %c0_2 = arith.constant 0 : index
    %2 = vector.load %arg4[%c0_1, %c0_2] : memref<32x128xbf16, #tpu.memory_space<vmem>>, vector<32x128xbf16>
    %cst = arith.constant dense<0.000000e+00> : vector<16x128xf32>
    %3 = tpu.matmul %1, %2, %cst {dimension_numbers = #tpu.dot_dimension_numbers<[1], [0], [0], [1], [0, 0, 1, 1], [], []>} : vector<16x32xbf16>, vector<32x128xbf16>, vector<16x128xf32> -> vector<16x128xf32>
    %c0_3 = arith.constant 0 : index
    %c0_4 = arith.constant 0 : index
    %4 = vector.load %arg5[%c0_3, %c0_4] : memref<1x128xf32, #tpu.memory_space<vmem>>, vector<1x128xf32>
    %5 = vector.broadcast %4 : vector<1x128xf32> to vector<16x128xf32>
    %6 = arith.addf %3, %5 : vector<16x128xf32>
    %cst_5 = arith.constant 0.000000e+00 : f32
    %7 = vector.broadcast %cst_5 : f32 to vector<16x128xf32>
    %8 = arith.maximumf %6, %7 : vector<16x128xf32>
    %c0_6 = arith.constant 0 : index
    %c0_7 = arith.constant 0 : index
    %9 = vector.load %arg6[%c0_6, %c0_7] : memref<16x128xf32, #tpu.memory_space<vmem>>, vector<16x128xf32>
    tpu.vector_store %arg6[%c0_6, %c0_7], %8 {strides = array<i32>} : memref<16x128xf32, #tpu.memory_space<vmem>>, vector<16x128xf32>,
    return
  }
  func.func @transform_0(%arg0: i32, %arg1: i32, %arg2: i32) -> (i32, i32) {
    %c0_i32 = arith.constant 0 : i32
    return %arg0, %arg2 : i32, i32
  }
  func.func @transform_1(%arg0: i32, %arg1: i32, %arg2: i32) -> (i32, i32) {
    %c0_i32 = arith.constant 0 : i32
    return %arg2, %arg1 : i32, i32
  }
  func.func @transform_2(%arg0: i32, %arg1: i32, %arg2: i32) -> (i32, i32) {
    %c0_i32 = arith.constant 0 : i32
    %c0_i32_0 = arith.constant 0 : i32
    return %c0_i32, %arg1 : i32, i32
  }
  func.func @transform_3(%arg0: i32, %arg1: i32, %arg2: i32) -> (i32, i32) {
    %c0_i32 = arith.constant 0 : i32
    return %arg0, %arg1 : i32, i32
  }
}

module attributes {stable_mosaic.version = 11 : i64} {
  func.func @_layernorm_kernel(%arg0: i32, %arg1: memref<16x32xf32, #tpu.memory_space<vmem>>, %arg2: memref<1x32xf32, #tpu.memory_space<vmem>>, %arg3: memref<1x32xf32, #tpu.memory_space<vmem>>, %arg4: memref<16x32xf32, #tpu.memory_space<vmem>>) attributes {dimension_semantics = [#tpu.dimension_semantics<parallel>], iteration_bounds = array<i64: 1>, scalar_prefetch = 0 : i64, scratch_operands = 0 : i64, tpu.core_type = #tpu.core_type<tc>, window_params = [{transform_indices = @transform_0, window_bounds = array<i64: 16, 32>}, {pipeline_mode = #tpu.pipeline_mode<synchronous>, transform_indices = @transform_1, window_bounds = array<i64: 1, 32>}, {pipeline_mode = #tpu.pipeline_mode<synchronous>, transform_indices = @transform_2, window_bounds = array<i64: 1, 32>}, {transform_indices = @transform_3, window_bounds = array<i64: 16, 32>}]} {
    %c0 = arith.constant 0 : index
    %c0_0 = arith.constant 0 : index
    %0 = vector.load %arg1[%c0, %c0_0] : memref<16x32xf32, #tpu.memory_space<vmem>>, vector<16x32xf32>
    %c0_1 = arith.constant 0 : index
    %c0_2 = arith.constant 0 : index
    %1 = vector.load %arg2[%c0_1, %c0_2] : memref<1x32xf32, #tpu.memory_space<vmem>>, vector<1x32xf32>
    %c0_3 = arith.constant 0 : index
    %c0_4 = arith.constant 0 : index
    %2 = vector.load %arg3[%c0_3, %c0_4] : memref<1x32xf32, #tpu.memory_space<vmem>>, vector<1x32xf32>
    %cst = arith.constant dense<0.000000e+00> : vector<16xf32>
    %3 = vector.multi_reduction <add>, %0, %cst [1] : vector<16x32xf32> to vector<16xf32>
    %4 = vector.shape_cast %3 : vector<16xf32> to vector<16x1xf32>
    %cst_5 = arith.constant 3.200000e+01 : f32
    %5 = vector.broadcast %cst_5 : f32 to vector<16x1xf32>
    %6 = arith.divf %4, %5 : vector<16x1xf32>
    %7 = vector.broadcast %6 : vector<16x1xf32> to vector<16x32xf32>
    %8 = arith.subf %0, %7 : vector<16x32xf32>
    %9 = arith.mulf %8, %8 : vector<16x32xf32>
    %cst_6 = arith.constant dense<0.000000e+00> : vector<16xf32>
    %10 = vector.multi_reduction <add>, %9, %cst_6 [1] : vector<16x32xf32> to vector<16xf32>
    %11 = vector.shape_cast %10 : vector<16xf32> to vector<16x1xf32>
    %cst_7 = arith.constant 3.200000e+01 : f32
    %12 = vector.broadcast %cst_7 : f32 to vector<16x1xf32>
    %13 = arith.divf %11, %12 : vector<16x1xf32>
    %14 = vector.broadcast %6 : vector<16x1xf32> to vector<16x32xf32>
    %15 = arith.subf %0, %14 : vector<16x32xf32>
    %cst_8 = arith.constant 9.99999996E-13 : f32
    %16 = vector.broadcast %cst_8 : f32 to vector<16x1xf32>
    %17 = arith.addf %13, %16 : vector<16x1xf32>
    %18 = math.rsqrt %17 : vector<16x1xf32>
    %19 = vector.broadcast %18 : vector<16x1xf32> to vector<16x32xf32>
    %20 = arith.mulf %15, %19 : vector<16x32xf32>
    %21 = vector.broadcast %1 : vector<1x32xf32> to vector<16x32xf32>
    %22 = arith.mulf %20, %21 : vector<16x32xf32>
    %23 = vector.broadcast %2 : vector<1x32xf32> to vector<16x32xf32>
    %24 = arith.addf %22, %23 : vector<16x32xf32>
    %c0_9 = arith.constant 0 : index
    %c0_10 = arith.constant 0 : index
    %25 = vector.load %arg4[%c0_9, %c0_10] : memref<16x32xf32, #tpu.memory_space<vmem>>, vector<16x32xf32>
    tpu.vector_store %arg4[%c0_9, %c0_10], %24 {strides = array<i32>} : memref<16x32xf32, #tpu.memory_space<vmem>>, vector<16x32xf32>,
    return
  }
  func.func @transform_0(%arg0: i32) -> (i32, i32) {
    %c0_i32 = arith.constant 0 : i32
    %c0_i32_0 = arith.constant 0 : i32
    return %arg0, %c0_i32 : i32, i32
  }
  func.func @transform_1(%arg0: i32) -> (i32, i32) {
    %c0_i32 = arith.constant 0 : i32
    %c0_i32_0 = arith.constant 0 : i32
    %c0_i32_1 = arith.constant 0 : i32
    return %c0_i32, %c0_i32_0 : i32, i32
  }
  func.func @transform_2(%arg0: i32) -> (i32, i32) {
    %c0_i32 = arith.constant 0 : i32
    %c0_i32_0 = arith.constant 0 : i32
    %c0_i32_1 = arith.constant 0 : i32
    return %c0_i32, %c0_i32_0 : i32, i32
  }
  func.func @transform_3(%arg0: i32) -> (i32, i32) {
    %c0_i32 = arith.constant 0 : i32
    %c0_i32_0 = arith.constant 0 : i32
    return %arg0, %c0_i32 : i32, i32
  }
}

module attributes {stable_mosaic.version = 11 : i64} {
  func.func @_linear_kernel(%arg0: i32, %arg1: i32, %arg2: i32, %arg3: memref<32x32xf32, #tpu.memory_space<vmem>>, %arg4: memref<32x128xbf16, #tpu.memory_space<vmem>>, %arg5: memref<32x128xf32, #tpu.memory_space<vmem>>) attributes {dimension_semantics = [#tpu.dimension_semantics<parallel>, #tpu.dimension_semantics<parallel>, #tpu.dimension_semantics<arbitrary>], iteration_bounds = array<i64: 1, 1, 1>, scalar_prefetch = 0 : i64, scratch_operands = 0 : i64, tpu.core_type = #tpu.core_type<tc>, window_params = [{transform_indices = @transform_0, window_bounds = array<i64: 32, 32>}, {transform_indices = @transform_1, window_bounds = array<i64: 32, 128>}, {transform_indices = @transform_2, window_bounds = array<i64: 32, 128>}]} {
    %c0 = arith.constant 0 : index
    %c0_0 = arith.constant 0 : index
    %0 = vector.load %arg3[%c0, %c0_0] : memref<32x32xf32, #tpu.memory_space<vmem>>, vector<32x32xf32>
    %1 = arith.truncf %0 : vector<32x32xf32> to vector<32x32xbf16>
    %c0_1 = arith.constant 0 : index
    %c0_2 = arith.constant 0 : index
    %2 = vector.load %arg4[%c0_1, %c0_2] : memref<32x128xbf16, #tpu.memory_space<vmem>>, vector<32x128xbf16>
    %cst = arith.constant dense<0.000000e+00> : vector<32x128xf32>
    %3 = tpu.matmul %1, %2, %cst {dimension_numbers = #tpu.dot_dimension_numbers<[1], [0], [0], [1], [0, 0, 1, 1], [], []>} : vector<32x32xbf16>, vector<32x128xbf16>, vector<32x128xf32> -> vector<32x128xf32>
    %c0_3 = arith.constant 0 : index
    %c0_4 = arith.constant 0 : index
    %4 = vector.load %arg5[%c0_3, %c0_4] : memref<32x128xf32, #tpu.memory_space<vmem>>, vector<32x128xf32>
    tpu.vector_store %arg5[%c0_3, %c0_4], %3 {strides = array<i32>} : memref<32x128xf32, #tpu.memory_space<vmem>>, vector<32x128xf32>,
    return
  }
  func.func @transform_0(%arg0: i32, %arg1: i32, %arg2: i32) -> (i32, i32) {
    %c0_i32 = arith.constant 0 : i32
    return %arg0, %arg2 : i32, i32
  }
  func.func @transform_1(%arg0: i32, %arg1: i32, %arg2: i32) -> (i32, i32) {
    %c0_i32 = arith.constant 0 : i32
    return %arg2, %arg1 : i32, i32
  }
  func.func @transform_2(%arg0: i32, %arg1: i32, %arg2: i32) -> (i32, i32) {
    %c0_i32 = arith.constant 0 : i32
    return %arg0, %arg1 : i32, i32
  }
}

module attributes {stable_mosaic.version = 11 : i64} {
  func.func @_attn_block_kernel(%arg0: i32, %arg1: i32, %arg2: memref<1x16x32xf32, #tpu.memory_space<vmem>>, %arg3: memref<1x1x16xf32, #tpu.memory_space<vmem>>, %arg4: memref<1x32xf32, #tpu.memory_space<vmem>>, %arg5: memref<1x32xf32, #tpu.memory_space<vmem>>, %arg6: memref<32x96xbf16, #tpu.memory_space<vmem>>, %arg7: memref<1x96xf32, #tpu.memory_space<vmem>>, %arg8: memref<32x32xbf16, #tpu.memory_space<vmem>>, %arg9: memref<1x32xf32, #tpu.memory_space<vmem>>, %arg10: memref<1x16x32xf32, #tpu.memory_space<vmem>>) attributes {dimension_semantics = [#tpu.dimension_semantics<parallel>, #tpu.dimension_semantics<parallel>], iteration_bounds = array<i64: 2, 1>, scalar_prefetch = 0 : i64, scratch_operands = 0 : i64, tpu.core_type = #tpu.core_type<tc>, window_params = [{transform_indices = @transform_0, window_bounds = array<i64: 1, 16, 32>}, {transform_indices = @transform_1, window_bounds = array<i64: 1, 1, 16>}, {pipeline_mode = #tpu.pipeline_mode<synchronous>, transform_indices = @transform_2, window_bounds = array<i64: 1, 32>}, {pipeline_mode = #tpu.pipeline_mode<synchronous>, transform_indices = @transform_3, window_bounds = array<i64: 1, 32>}, {pipeline_mode = #tpu.pipeline_mode<synchronous>, transform_indices = @transform_4, window_bounds = array<i64: 32, 96>}, {pipeline_mode = #tpu.pipeline_mode<synchronous>, transform_indices = @transform_5, window_bounds = array<i64: 1, 96>}, {pipeline_mode = #tpu.pipeline_mode<synchronous>, transform_indices = @transform_6, window_bounds = array<i64: 32, 32>}, {pipeline_mode = #tpu.pipeline_mode<synchronous>, transform_indices = @transform_7, window_bounds = array<i64: 1, 32>}, {transform_indices = @transform_8, window_bounds = array<i64: 1, 16, 32>}]} {
    %c16_i32 = arith.constant 16 : i32
    %0 = arith.muli %arg1, %c16_i32 : i32
    %1 = tpu.assume_multiple %0, 8 : i32
    %c0 = arith.constant 0 : index
    %c0_0 = arith.constant 0 : index
    %c0_1 = arith.constant 0 : index
    %2 = vector.load %arg2[%c0, %c0_0, %c0_1] : memref<1x16x32xf32, #tpu.memory_space<vmem>>, vector<1x16x32xf32>
    %3 = vector.shape_cast %2 : vector<1x16x32xf32> to vector<16x32xf32>
    %c0_2 = arith.constant 0 : index
    %4 = arith.index_cast %1 : i32 to index
    %c0_3 = arith.constant 0 : index
    %5 = vector.load %arg2[%c0_2, %4, %c0_3] : memref<1x16x32xf32, #tpu.memory_space<vmem>>, vector<1x16x32xf32>
    %6 = vector.shape_cast %5 : vector<1x16x32xf32> to vector<16x32xf32>
    %c0_4 = arith.constant 0 : index
    %c0_5 = arith.constant 0 : index
    %7 = vector.load %arg4[%c0_4, %c0_5] : memref<1x32xf32, #tpu.memory_space<vmem>>, vector<1x32xf32>
    %c0_6 = arith.constant 0 : index
    %c0_7 = arith.constant 0 : index
    %8 = vector.load %arg5[%c0_6, %c0_7] : memref<1x32xf32, #tpu.memory_space<vmem>>, vector<1x32xf32>
    %9 = arith.truncf %3 : vector<16x32xf32> to vector<16x32xbf16>
    %10 = arith.truncf %6 : vector<16x32xf32> to vector<16x32xbf16>
    %c0_8 = arith.constant 0 : index
    %c0_9 = arith.constant 0 : index
    %11 = vector.load %arg6[%c0_8, %c0_9] : memref<32x96xbf16, #tpu.memory_space<vmem>>, vector<32x32xbf16>
    %cst = arith.constant dense<0.000000e+00> : vector<16x32xf32>
    %12 = tpu.matmul %10, %11, %cst {dimension_numbers = #tpu.dot_dimension_numbers<[1], [0], [0], [1], [0, 0, 1, 1], [], []>} : vector<16x32xbf16>, vector<32x32xbf16>, vector<16x32xf32> -> vector<16x32xf32>
    %c0_10 = arith.constant 0 : index
    %c0_11 = arith.constant 0 : index
    %13 = vector.load %arg7[%c0_10, %c0_11] : memref<1x96xf32, #tpu.memory_space<vmem>>, vector<1x32xf32>
    %14 = vector.broadcast %13 : vector<1x32xf32> to vector<16x32xf32>
    %15 = arith.addf %12, %14 : vector<16x32xf32>
    %c0_12 = arith.constant 0 : index
    %c32 = arith.constant 32 : index
    %16 = vector.load %arg6[%c0_12, %c32] : memref<32x96xbf16, #tpu.memory_space<vmem>>, vector<32x64xbf16>
    %cst_13 = arith.constant dense<0.000000e+00> : vector<16x64xf32>
    %17 = tpu.matmul %9, %16, %cst_13 {dimension_numbers = #tpu.dot_dimension_numbers<[1], [0], [0], [1], [0, 0, 1, 1], [], []>} : vector<16x32xbf16>, vector<32x64xbf16>, vector<16x64xf32> -> vector<16x64xf32>
    %c0_14 = arith.constant 0 : index
    %c32_15 = arith.constant 32 : index
    %18 = vector.load %arg7[%c0_14, %c32_15] : memref<1x96xf32, #tpu.memory_space<vmem>>, vector<1x64xf32>
    %19 = vector.broadcast %18 : vector<1x64xf32> to vector<16x64xf32>
    %20 = arith.addf %17, %19 : vector<16x64xf32>
    %c0_16 = arith.constant 0 : index
    %c0_17 = arith.constant 0 : index
    %c0_18 = arith.constant 0 : index
    %21 = vector.load %arg3[%c0_16, %c0_17, %c0_18] : memref<1x1x16xf32, #tpu.memory_space<vmem>>, vector<1x1x16xf32>
    %22 = vector.shape_cast %21 : vector<1x1x16xf32> to vector<1x16xf32>
    %cst_19 = arith.constant 0.000000e+00 : f32
    %23 = vector.broadcast %cst_19 : f32 to vector<16x32xf32>
    %24 = vector.extract_strided_slice %15 {offsets = [0, 0], sizes = [16, 16], strides = [1, 1]} : vector<16x32xf32> to vector<16x16xf32>
    %25 = arith.truncf %24 : vector<16x16xf32> to vector<16x16xbf16>
    %26 = vector.extract_strided_slice %20 {offsets = [0, 0], sizes = [16, 16], strides = [1, 1]} : vector<16x64xf32> to vector<16x16xf32>
    %27 = arith.truncf %26 : vector<16x16xf32> to vector<16x16xbf16>
    %28 = vector.extract_strided_slice %20 {offsets = [0, 32], sizes = [16, 16], strides = [1, 1]} : vector<16x64xf32> to vector<16x16xf32>
    %29 = arith.truncf %28 : vector<16x16xf32> to vector<16x16xbf16>
    %cst_20 = arith.constant dense<0.000000e+00> : vector<16x16xf32>
    %30 = tpu.matmul %25, %27, %cst_20 {dimension_numbers = #tpu.dot_dimension_numbers<[1], [1], [0], [0], [0, 0, 1, 0], [], []>} : vector<16x16xbf16>, vector<16x16xbf16>, vector<16x16xf32> -> vector<16x16xf32>
    %31 = vector.broadcast %22 : vector<1x16xf32> to vector<16x16xf32>
    %32 = arith.addf %30, %31 : vector<16x16xf32>
    %cst_21 = arith.constant dense<0xFF800000> : vector<16xf32>
    %33 = vector.multi_reduction <maximumf>, %32, %cst_21 [1] : vector<16x16xf32> to vector<16xf32>
    %34 = vector.shape_cast %33 : vector<16xf32> to vector<16x1xf32>
    %35 = vector.broadcast %34 : vector<16x1xf32> to vector<16x16xf32>
    %36 = arith.subf %32, %35 : vector<16x16xf32>
    %37 = math.exp %36 : vector<16x16xf32>
    %cst_22 = arith.constant dense<0.000000e+00> : vector<16xf32>
    %38 = vector.multi_reduction <add>, %37, %cst_22 [1] : vector<16x16xf32> to vector<16xf32>
    %39 = vector.shape_cast %38 : vector<16xf32> to vector<16x1xf32>
    %40 = tpu.reciprocal %39 {approx = true} : vector<16x1xf32> -> vector<16x1xf32>
    %41 = vector.broadcast %40 : vector<16x1xf32> to vector<16x16xf32>
    %42 = arith.mulf %37, %41 : vector<16x16xf32>
    %43 = arith.truncf %42 : vector<16x16xf32> to vector<16x16xbf16>
    %cst_23 = arith.constant dense<0.000000e+00> : vector<16x16xf32>
    %44 = tpu.matmul %43, %29, %cst_23 {dimension_numbers = #tpu.dot_dimension_numbers<[1], [0], [0], [1], [0, 0, 1, 1], [], []>} : vector<16x16xbf16>, vector<16x16xbf16>, vector<16x16xf32> -> vector<16x16xf32>
    %45 = arith.truncf %44 : vector<16x16xf32> to vector<16x16xbf16>
    %c0_24 = arith.constant 0 : index
    %c0_25 = arith.constant 0 : index
    %46 = vector.load %arg8[%c0_24, %c0_25] : memref<32x32xbf16, #tpu.memory_space<vmem>>, vector<16x32xbf16>
    %cst_26 = arith.constant dense<0.000000e+00> : vector<16x32xf32>
    %47 = tpu.matmul %45, %46, %cst_26 {dimension_numbers = #tpu.dot_dimension_numbers<[1], [0], [0], [1], [0, 0, 1, 1], [], []>} : vector<16x16xbf16>, vector<16x32xbf16>, vector<16x32xf32> -> vector<16x32xf32>
    %48 = arith.addf %23, %47 : vector<16x32xf32>
    %49 = vector.extract_strided_slice %15 {offsets = [0, 16], sizes = [16, 16], strides = [1, 1]} : vector<16x32xf32> to vector<16x16xf32>
    %50 = arith.truncf %49 : vector<16x16xf32> to vector<16x16xbf16>
    %51 = vector.extract_strided_slice %20 {offsets = [0, 16], sizes = [16, 16], strides = [1, 1]} : vector<16x64xf32> to vector<16x16xf32>
    %52 = arith.truncf %51 : vector<16x16xf32> to vector<16x16xbf16>
    %53 = vector.extract_strided_slice %20 {offsets = [0, 48], sizes = [16, 16], strides = [1, 1]} : vector<16x64xf32> to vector<16x16xf32>
    %54 = arith.truncf %53 : vector<16x16xf32> to vector<16x16xbf16>
    %cst_27 = arith.constant dense<0.000000e+00> : vector<16x16xf32>
    %55 = tpu.matmul %50, %52, %cst_27 {dimension_numbers = #tpu.dot_dimension_numbers<[1], [1], [0], [0], [0, 0, 1, 0], [], []>} : vector<16x16xbf16>, vector<16x16xbf16>, vector<16x16xf32> -> vector<16x16xf32>
    %56 = vector.broadcast %22 : vector<1x16xf32> to vector<16x16xf32>
    %57 = arith.addf %55, %56 : vector<16x16xf32>
    %cst_28 = arith.constant dense<0xFF800000> : vector<16xf32>
    %58 = vector.multi_reduction <maximumf>, %57, %cst_28 [1] : vector<16x16xf32> to vector<16xf32>
    %59 = vector.shape_cast %58 : vector<16xf32> to vector<16x1xf32>
    %60 = vector.broadcast %59 : vector<16x1xf32> to vector<16x16xf32>
    %61 = arith.subf %57, %60 : vector<16x16xf32>
    %62 = math.exp %61 : vector<16x16xf32>
    %cst_29 = arith.constant dense<0.000000e+00> : vector<16xf32>
    %63 = vector.multi_reduction <add>, %62, %cst_29 [1] : vector<16x16xf32> to vector<16xf32>
    %64 = vector.shape_cast %63 : vector<16xf32> to vector<16x1xf32>
    %65 = tpu.reciprocal %64 {approx = true} : vector<16x1xf32> -> vector<16x1xf32>
    %66 = vector.broadcast %65 : vector<16x1xf32> to vector<16x16xf32>
    %67 = arith.mulf %62, %66 : vector<16x16xf32>
    %68 = arith.truncf %67 : vector<16x16xf32> to vector<16x16xbf16>
    %cst_30 = arith.constant dense<0.000000e+00> : vector<16x16xf32>
    %69 = tpu.matmul %68, %54, %cst_30 {dimension_numbers = #tpu.dot_dimension_numbers<[1], [0], [0], [1], [0, 0, 1, 1], [], []>} : vector<16x16xbf16>, vector<16x16xbf16>, vector<16x16xf32> -> vector<16x16xf32>
    %70 = arith.truncf %69 : vector<16x16xf32> to vector<16x16xbf16>
    %c16 = arith.constant 16 : index
    %c0_31 = arith.constant 0 : index
    %71 = vector.load %arg8[%c16, %c0_31] : memref<32x32xbf16, #tpu.memory_space<vmem>>, vector<16x32xbf16>
    %cst_32 = arith.constant dense<0.000000e+00> : vector<16x32xf32>
    %72 = tpu.matmul %70, %71, %cst_32 {dimension_numbers = #tpu.dot_dimension_numbers<[1], [0], [0], [1], [0, 0, 1, 1], [], []>} : vector<16x16xbf16>, vector<16x32xbf16>, vector<16x32xf32> -> vector<16x32xf32>
    %73 = arith.addf %48, %72 : vector<16x32xf32>
    %74 = arith.addf %6, %73 : vector<16x32xf32>
    %c0_33 = arith.constant 0 : index
    %c0_34 = arith.constant 0 : index
    %75 = vector.load %arg9[%c0_33, %c0_34] : memref<1x32xf32, #tpu.memory_space<vmem>>, vector<1x32xf32>
    %76 = vector.broadcast %75 : vector<1x32xf32> to vector<16x32xf32>
    %77 = arith.addf %74, %76 : vector<16x32xf32>
    %cst_35 = arith.constant dense<0.000000e+00> : vector<16xf32>
    %78 = vector.multi_reduction <add>, %77, %cst_35 [1] : vector<16x32xf32> to vector<16xf32>
    %79 = vector.shape_cast %78 : vector<16xf32> to vector<16x1xf32>
    %cst_36 = arith.constant 3.200000e+01 : f32
    %80 = vector.broadcast %cst_36 : f32 to vector<16x1xf32>
    %81 = arith.divf %79, %80 : vector<16x1xf32>
    %82 = vector.broadcast %81 : vector<16x1xf32> to vector<16x32xf32>
    %83 = arith.subf %77, %82 : vector<16x32xf32>
    %84 = arith.mulf %83, %83 : vector<16x32xf32>
    %cst_37 = arith.constant dense<0.000000e+00> : vector<16xf32>
    %85 = vector.multi_reduction <add>, %84, %cst_37 [1] : vector<16x32xf32> to vector<16xf32>
    %86 = vector.shape_cast %85 : vector<16xf32> to vector<16x1xf32>
    %cst_38 = arith.constant 3.200000e+01 : f32
    %87 = vector.broadcast %cst_38 : f32 to vector<16x1xf32>
    %88 = arith.divf %86, %87 : vector<16x1xf32>
    %89 = vector.broadcast %81 : vector<16x1xf32> to vector<16x32xf32>
    %90 = arith.subf %77, %89 : vector<16x32xf32>
    %cst_39 = arith.constant 9.99999996E-13 : f32
    %91 = vector.broadcast %cst_39 : f32 to vector<16x1xf32>
    %92 = arith.addf %88, %91 : vector<16x1xf32>
    %93 = math.rsqrt %92 : vector<16x1xf32>
    %94 = vector.broadcast %93 : vector<16x1xf32> to vector<16x32xf32>
    %95 = arith.mulf %90, %94 : vector<16x32xf32>
    %96 = vector.broadcast %7 : vector<1x32xf32> to vector<16x32xf32>
    %97 = arith.mulf %95, %96 : vector<16x32xf32>
    %98 = vector.broadcast %8 : vector<1x32xf32> to vector<16x32xf32>
    %99 = arith.addf %97, %98 : vector<16x32xf32>
    %c0_40 = arith.constant 0 : index
    %c0_41 = arith.constant 0 : index
    %c0_42 = arith.constant 0 : index
    %100 = vector.load %arg10[%c0_40, %c0_41, %c0_42] : memref<1x16x32xf32, #tpu.memory_space<vmem>>, vector<1x16x32xf32>
    %101 = vector.shape_cast %100 : vector<1x16x32xf32> to vector<16x32xf32>
    %102 = vector.shape_cast %99 : vector<16x32xf32> to vector<1x16x32xf32>
    tpu.vector_store %arg10[%c0_40, %c0_41, %c0_42], %102 {strides = array<i32>} : memref<1x16x32xf32, #tpu.memory_space<vmem>>, vector<1x16x32xf32>,
    return
  }
  func.func @transform_0(%arg0: i32, %arg1: i32) -> (i32, i32, i32) {
    %c0_i32 = arith.constant 0 : i32
    %c0_i32_0 = arith.constant 0 : i32
    %c0_i32_1 = arith.constant 0 : i32
    return %arg0, %c0_i32, %c0_i32_0 : i32, i32, i32
  }
  func.func @transform_1(%arg0: i32, %arg1: i32) -> (i32, i32, i32) {
    %c0_i32 = arith.constant 0 : i32
    %c0_i32_0 = arith.constant 0 : i32
    %c0_i32_1 = arith.constant 0 : i32
    return %arg0, %c0_i32, %c0_i32_0 : i32, i32, i32
  }
  func.func @transform_2(%arg0: i32, %arg1: i32) -> (i32, i32) {
    %c0_i32 = arith.constant 0 : i32
    %c0_i32_0 = arith.constant 0 : i32
    %c0_i32_1 = arith.constant 0 : i32
    return %c0_i32, %c0_i32_0 : i32, i32
  }
  func.func @transform_3(%arg0: i32, %arg1: i32) -> (i32, i32) {
    %c0_i32 = arith.constant 0 : i32
    %c0_i32_0 = arith.constant 0 : i32
    %c0_i32_1 = arith.constant 0 : i32
    return %c0_i32, %c0_i32_0 : i32, i32
  }
  func.func @transform_4(%arg0: i32, %arg1: i32) -> (i32, i32) {
    %c0_i32 = arith.constant 0 : i32
    %c0_i32_0 = arith.constant 0 : i32
    %c0_i32_1 = arith.constant 0 : i32
    return %c0_i32, %c0_i32_0 : i32, i32
  }
  func.func @transform_5(%arg0: i32, %arg1: i32) -> (i32, i32) {
    %c0_i32 = arith.constant 0 : i32
    %c0_i32_0 = arith.constant 0 : i32
    %c0_i32_1 = arith.constant 0 : i32
    return %c0_i32, %c0_i32_0 : i32, i32
  }
  func.func @transform_6(%arg0: i32, %arg1: i32) -> (i32, i32) {
    %c0_i32 = arith.constant 0 : i32
    %c0_i32_0 = arith.constant 0 : i32
    %c0_i32_1 = arith.constant 0 : i32
    return %c0_i32, %c0_i32_0 : i32, i32
  }
  func.func @transform_7(%arg0: i32, %arg1: i32) -> (i32, i32) {
    %c0_i32 = arith.constant 0 : i32
    %c0_i32_0 = arith.constant 0 : i32
    %c0_i32_1 = arith.constant 0 : i32
    return %c0_i32, %c0_i32_0 : i32, i32
  }
  func.func @transform_8(%arg0: i32, %arg1: i32) -> (i32, i32, i32) {
    %c0_i32 = arith.constant 0 : i32
    %c0_i32_0 = arith.constant 0 : i32
    return %arg0, %arg1, %c0_i32 : i32, i32, i32
  }
}

module attributes {stable_mosaic.version = 11 : i64} {
  func.func @_ffn_block_kernel(%arg0: i32, %arg1: memref<32x32xf32, #tpu.memory_space<vmem>>, %arg2: memref<1x32xf32, #tpu.memory_space<vmem>>, %arg3: memref<1x32xf32, #tpu.memory_space<vmem>>, %arg4: memref<32x64xbf16, #tpu.memory_space<vmem>>, %arg5: memref<1x64xf32, #tpu.memory_space<vmem>>, %arg6: memref<64x32xbf16, #tpu.memory_space<vmem>>, %arg7: memref<1x32xf32, #tpu.memory_space<vmem>>, %arg8: memref<32x32xf32, #tpu.memory_space<vmem>>) attributes {dimension_semantics = [#tpu.dimension_semantics<parallel>], iteration_bounds = array<i64: 1>, scalar_prefetch = 0 : i64, scratch_operands = 0 : i64, tpu.core_type = #tpu.core_type<tc>, window_params = [{transform_indices = @transform_0, window_bounds = array<i64: 32, 32>}, {pipeline_mode = #tpu.pipeline_mode<synchronous>, transform_indices = @transform_1, window_bounds = array<i64: 1, 32>}, {pipeline_mode = #tpu.pipeline_mode<synchronous>, transform_indices = @transform_2, window_bounds = array<i64: 1, 32>}, {pipeline_mode = #tpu.pipeline_mode<synchronous>, transform_indices = @transform_3, window_bounds = array<i64: 32, 64>}, {pipeline_mode = #tpu.pipeline_mode<synchronous>, transform_indices = @transform_4, window_bounds = array<i64: 1, 64>}, {pipeline_mode = #tpu.pipeline_mode<synchronous>, transform_indices = @transform_5, window_bounds = array<i64: 64, 32>}, {pipeline_mode = #tpu.pipeline_mode<synchronous>, transform_indices = @transform_6, window_bounds = array<i64: 1, 32>}, {transform_indices = @transform_7, window_bounds = array<i64: 32, 32>}]} {
    %c0 = arith.constant 0 : index
    %c0_0 = arith.constant 0 : index
    %0 = vector.load %arg1[%c0, %c0_0] : memref<32x32xf32, #tpu.memory_space<vmem>>, vector<32x32xf32>
    %1 = arith.truncf %0 : vector<32x32xf32> to vector<32x32xbf16>
    %c0_1 = arith.constant 0 : index
    %c0_2 = arith.constant 0 : index
    %2 = vector.load %arg4[%c0_1, %c0_2] : memref<32x64xbf16, #tpu.memory_space<vmem>>, vector<32x64xbf16>
    %cst = arith.constant dense<0.000000e+00> : vector<32x64xf32>
    %3 = tpu.matmul %1, %2, %cst {dimension_numbers = #tpu.dot_dimension_numbers<[1], [0], [0], [1], [0, 0, 1, 1], [], []>} : vector<32x32xbf16>, vector<32x64xbf16>, vector<32x64xf32> -> vector<32x64xf32>
    %c0_3 = arith.constant 0 : index
    %c0_4 = arith.constant 0 : index
    %4 = vector.load %arg5[%c0_3, %c0_4] : memref<1x64xf32, #tpu.memory_space<vmem>>, vector<1x64xf32>
    %5 = vector.broadcast %4 : vector<1x64xf32> to vector<32x64xf32>
    %6 = arith.addf %3, %5 : vector<32x64xf32>
    %cst_5 = arith.constant 5.000000e-01 : f32
    %7 = vector.broadcast %cst_5 : f32 to vector<32x64xf32>
    %8 = arith.mulf %7, %6 : vector<32x64xf32>
    %cst_6 = arith.constant 4.471500e-02 : f32
    %9 = vector.broadcast %cst_6 : f32 to vector<32x64xf32>
    %10 = arith.mulf %9, %6 : vector<32x64xf32>
    %11 = arith.mulf %10, %6 : vector<32x64xf32>
    %12 = arith.mulf %11, %6 : vector<32x64xf32>
    %13 = arith.addf %6, %12 : vector<32x64xf32>
    %cst_7 = arith.constant 0.797884583 : f32
    %14 = vector.broadcast %cst_7 : f32 to vector<32x64xf32>
    %15 = arith.mulf %14, %13 : vector<32x64xf32>
    %16 = math.tanh %15 : vector<32x64xf32>
    %cst_8 = arith.constant 1.000000e+00 : f32
    %17 = vector.broadcast %cst_8 : f32 to vector<32x64xf32>
    %18 = arith.addf %17, %16 : vector<32x64xf32>
    %19 = arith.mulf %8, %18 : vector<32x64xf32>
    %20 = arith.truncf %19 : vector<32x64xf32> to vector<32x64xbf16>
    %c0_9 = arith.constant 0 : index
    %c0_10 = arith.constant 0 : index
    %21 = vector.load %arg6[%c0_9, %c0_10] : memref<64x32xbf16, #tpu.memory_space<vmem>>, vector<64x32xbf16>
    %cst_11 = arith.constant dense<0.000000e+00> : vector<32x32xf32>
    %22 = tpu.matmul %20, %21, %cst_11 {dimension_numbers = #tpu.dot_dimension_numbers<[1], [0], [0], [1], [0, 0, 1, 1], [], []>} : vector<32x64xbf16>, vector<64x32xbf16>, vector<32x32xf32> -> vector<32x32xf32>
    %c0_12 = arith.constant 0 : index
    %c0_13 = arith.constant 0 : index
    %23 = vector.load %arg7[%c0_12, %c0_13] : memref<1x32xf32, #tpu.memory_space<vmem>>, vector<1x32xf32>
    %24 = vector.broadcast %23 : vector<1x32xf32> to vector<32x32xf32>
    %25 = arith.addf %22, %24 : vector<32x32xf32>
    %26 = arith.addf %0, %25 : vector<32x32xf32>
    %c0_14 = arith.constant 0 : index
    %c0_15 = arith.constant 0 : index
    %27 = vector.load %arg2[%c0_14, %c0_15] : memref<1x32xf32, #tpu.memory_space<vmem>>, vector<1x32xf32>
    %c0_16 = arith.constant 0 : index
    %c0_17 = arith.constant 0 : index
    %28 = vector.load %arg3[%c0_16, %c0_17] : memref<1x32xf32, #tpu.memory_space<vmem>>, vector<1x32xf32>
    %cst_18 = arith.constant dense<0.000000e+00> : vector<32xf32>
    %29 = vector.multi_reduction <add>, %26, %cst_18 [1] : vector<32x32xf32> to vector<32xf32>
    %30 = vector.shape_cast %29 : vector<32xf32> to vector<32x1xf32>
    %cst_19 = arith.constant 3.200000e+01 : f32
    %31 = vector.broadcast %cst_19 : f32 to vector<32x1xf32>
    %32 = arith.divf %30, %31 : vector<32x1xf32>
    %33 = vector.broadcast %32 : vector<32x1xf32> to vector<32x32xf32>
    %34 = arith.subf %26, %33 : vector<32x32xf32>
    %35 = arith.mulf %34, %34 : vector<32x32xf32>
    %cst_20 = arith.constant dense<0.000000e+00> : vector<32xf32>
    %36 = vector.multi_reduction <add>, %35, %cst_20 [1] : vector<32x32xf32> to vector<32xf32>
    %37 = vector.shape_cast %36 : vector<32xf32> to vector<32x1xf32>
    %cst_21 = arith.constant 3.200000e+01 : f32
    %38 = vector.broadcast %cst_21 : f32 to vector<32x1xf32>
    %39 = arith.divf %37, %38 : vector<32x1xf32>
    %40 = vector.broadcast %32 : vector<32x1xf32> to vector<32x32xf32>
    %41 = arith.subf %26, %40 : vector<32x32xf32>
    %cst_22 = arith.constant 9.99999996E-13 : f32
    %42 = vector.broadcast %cst_22 : f32 to vector<32x1xf32>
    %43 = arith.addf %39, %42 : vector<32x1xf32>
    %44 = math.rsqrt %43 : vector<32x1xf32>
    %45 = vector.broadcast %44 : vector<32x1xf32> to vector<32x32xf32>
    %46 = arith.mulf %41, %45 : vector<32x32xf32>
    %47 = vector.broadcast %27 : vector<1x32xf32> to vector<32x32xf32>
    %48 = arith.mulf %46, %47 : vector<32x32xf32>
    %49 = vector.broadcast %28 : vector<1x32xf32> to vector<32x32xf32>
    %50 = arith.addf %48, %49 : vector<32x32xf32>
    %c0_23 = arith.constant 0 : index
    %c0_24 = arith.constant 0 : index
    %51 = vector.load %arg8[%c0_23, %c0_24] : memref<32x32xf32, #tpu.memory_space<vmem>>, vector<32x32xf32>
    tpu.vector_store %arg8[%c0_23, %c0_24], %50 {strides = array<i32>} : memref<32x32xf32, #tpu.memory_space<vmem>>, vector<32x32xf32>,
    return
  }
  func.func @transform_0(%arg0: i32) -> (i32, i32) {
    %c0_i32 = arith.constant 0 : i32
    %c0_i32_0 = arith.constant 0 : i32
    return %arg0, %c0_i32 : i32, i32
  }
  func.func @transform_1(%arg0: i32) -> (i32, i32) {
    %c0_i32 = arith.constant 0 : i32
    %c0_i32_0 = arith.constant 0 : i32
    %c0_i32_1 = arith.constant 0 : i32
    return %c0_i32, %c0_i32_0 : i32, i32
  }
  func.func @transform_2(%arg0: i32) -> (i32, i32) {
    %c0_i32 = arith.constant 0 : i32
    %c0_i32_0 = arith.constant 0 : i32
    %c0_i32_1 = arith.constant 0 : i32
    return %c0_i32, %c0_i32_0 : i32, i32
  }
  func.func @transform_3(%arg0: i32) -> (i32, i32) {
    %c0_i32 = arith.constant 0 : i32
    %c0_i32_0 = arith.constant 0 : i32
    %c0_i32_1 = arith.constant 0 : i32
    return %c0_i32, %c0_i32_0 : i32, i32
  }
  func.func @transform_4(%arg0: i32) -> (i32, i32) {
    %c0_i32 = arith.constant 0 : i32
    %c0_i32_0 = arith.constant 0 : i32
    %c0_i32_1 = arith.constant 0 : i32
    return %c0_i32, %c0_i32_0 : i32, i32
  }
  func.func @transform_5(%arg0: i32) -> (i32, i32) {
    %c0_i32 = arith.constant 0 : i32
    %c0_i32_0 = arith.constant 0 : i32
    %c0_i32_1 = arith.constant 0 : i32
    return %c0_i32, %c0_i32_0 : i32, i32
  }
  func.func @transform_6(%arg0: i32) -> (i32, i32) {
    %c0_i32 = arith.constant 0 : i32
    %c0_i32_0 = arith.constant 0 : i32
    %c0_i32_1 = arith.constant 0 : i32
    return %c0_i32, %c0_i32_0 : i32, i32
  }
  func.func @transform_7(%arg0: i32) -> (i32, i32) {
    %c0_i32 = arith.constant 0 : i32
    %c0_i32_0 = arith.constant 0 : i32
    return %arg0, %c0_i32 : i32, i32
  }
}

</mosaic_0001>

<llo_original>
// kernel: tpu_custom_call.1
$region0: #{tpu_custom_call.1}
  #allocation0 [shape = 'u32[]', space=smem, size = 0x4, offset = 0x4, fixed_abs, tag = 'smem constant byte address 0x4 - core index']
  #allocation1 [shape = 'u32[144,128]{1,0:T(1,128)}', space=vmem, size = 0x12000, scoped, tag = 'internal scratch']
  %s0 = inlined_call_operand.hbm [shape: f32[8,128], index: 0, kind: input, shape index: {}]
  %s1 = inlined_call_operand.hbm [shape: f32[8,128], index: 1, kind: input, shape index: {}]
  %s2 = inlined_call_operand.hbm [shape: f32[8,128], index: 2, kind: output, shape index: {}]
  %s3 = sld [smem:[#allocation0]]
  $region49: #{tpu_custom_call.1} parent=0
    _
  %s5 = ssub.s32 1, %s3
  %s6 = scalar_select 0, %s5, %s3
  $region1: #{tpu_custom_call.1} parent=0
    #allocation2 [shape = 'u8[4096]{0}', space=vmem, size = 0x1000, scoped, tag = 'input window, operand 0, single buffered']
    #allocation3 [shape = 's32[2]{0}', space=sflag, size = 0x8, scoped, tag = 'scoped memory for tpu_custom_call.1']
    #allocation4 [shape = 's32[2]{0}', space=sflag, size = 0x8, scoped, tag = 'scoped memory for tpu_custom_call.1']
    #allocation5 [shape = 'u8[4096]{0}', space=vmem, size = 0x1000, scoped, tag = 'input window, operand 1, single buffered']
    #allocation6 [shape = 's32[1]{0}', space=sflag, size = 0x4, scoped, tag = 'scoped memory for tpu_custom_call.1']
    #allocation7 [shape = 'u8[4096]{0}', space=vmem, size = 0x1000, scoped, tag = 'output window, operand 0, single buffered']
    %7 = vsyncpa [#allocation3], 0
    %8 = vsyncpa [#allocation6], 0
    %9 = vsyncpa [#allocation4], 0
    loop: start=0, step=1, limit=4
    $region2: #{tpu_custom_call.1} parent=1 // loop_pre_header
      _
    $region3: #{tpu_custom_call.1} parent=1 // loop_header
      %s11 = sphi 0, %s15
      %p12 = scmp.ge.s32.totalorder %s11, 4
      %s19 = sphi 0, %s19
      %s21 = sphi 0, %s19
      %s22 = sphi 0, %s21
      %s36 = sphi 0, %s22
      %s40 = sphi 0, %s40
      %s42 = sphi 0, %s40
      %s43 = sphi 0, %s42
      %s57 = sphi 0, %s43
      %s61 = sphi 0, %s61
      %s63 = sphi 0, %s61
      %s64 = sphi 0, %s63
      %s78 = sphi 0, %s64
    $region4: #{tpu_custom_call.1} parent=1 // loop_header_branch
      %14 = sbr.rel (%p12) target = $region8
    $region5: #{tpu_custom_call.1} parent=1 // loop_body
      %s16 = ssub.s32 %s11, 1
      %s17 = ssub.s32 %s11, 2
      %s18 = sadd.s32 %s11, 1
      %s20 = sadd.s32 %s19, 1
      %p23 = scmp.eq.s32.totalorder %s11, 1
      %p24 = scmp.ne.s32.totalorder %s19, %s21
      %p25 = scmp.eq.s32.totalorder %s11, 0
      %p26 = por %p24, %p25
      %p27 = scmp.ne.s32.totalorder %s19, %s21
      %p28 = scmp.eq.s32.totalorder %s16, 1
      %p29 = por %p27, %p28
      %p30 = scmp.ne.s32.totalorder %s21, %s22
      %p31 = scmp.eq.s32.totalorder %s16, 0
      %p32 = por %p30, %p31
      %p33 = scmp.ne.s32.totalorder %s21, %s22
      %p34 = scmp.eq.s32.totalorder %s17, 1
      %p35 = por %p33, %p34
      %p37 = scmp.ne.s32.totalorder %s22, %s36
      %p38 = scmp.eq.s32.totalorder %s17, 0
      %p39 = por %p37, %p38
      %s41 = sadd.s32 %s40, 1
      %p44 = scmp.eq.s32.totalorder %s11, 1
      %p45 = scmp.ne.s32.totalorder %s40, %s42
      %p46 = scmp.eq.s32.totalorder %s11, 0
      %p47 = por %p45, %p46
      %p48 = scmp.ne.s32.totalorder %s40, %s42
      %p49 = scmp.eq.s32.totalorder %s16, 1
      %p50 = por %p48, %p49
      %p51 = scmp.ne.s32.totalorder %s42, %s43
      %p52 = scmp.eq.s32.totalorder %s16, 0
      %p53 = por %p51, %p52
      %p54 = scmp.ne.s32.totalorder %s42, %s43
      %p55 = scmp.eq.s32.totalorder %s17, 1
      %p56 = por %p54, %p55
      %p58 = scmp.ne.s32.totalorder %s43, %s57
      %p59 = scmp.eq.s32.totalorder %s17, 0
      %p60 = por %p58, %p59
      %s62 = sadd.s32 %s61, 1
      %p65 = scmp.eq.s32.totalorder %s11, 1
      %p66 = scmp.ne.s32.totalorder %s61, %s63
      %p67 = scmp.eq.s32.totalorder %s11, 0
      %p68 = por %p66, %p67
      %p69 = scmp.ne.s32.totalorder %s61, %s63
      %p70 = scmp.eq.s32.totalorder %s16, 1
      %p71 = por %p69, %p70
      %p72 = scmp.ne.s32.totalorder %s63, %s64
      %p73 = scmp.eq.s32.totalorder %s16, 0
      %p74 = por %p72, %p73
      %p75 = scmp.ne.s32.totalorder %s63, %s64
      %p76 = scmp.eq.s32.totalorder %s17, 1
      %p77 = por %p75, %p76
      %p79 = scmp.ne.s32.totalorder %s64, %s78
      %p80 = scmp.eq.s32.totalorder %s17, 0
      %p81 = por %p79, %p80
      %p82 = scmp.le.s32.totalorder 1, %s11
      %p83 = scmp.lt.s32.totalorder %s11, 3
      %p84 = pnand %p82, %p83
      %p85 = pneg %p84
      // Predicated region
      $region9: #{tpu_custom_call.1} parent=5 // pred_check
        _
      $region10: #{tpu_custom_call.1} parent=5 // pred_check_branch
        %87 = sbr.rel (%p84) target = $region12
      $region11: #{tpu_custom_call.1} parent=5 // pred_region
        %s88 = ssub.s32 %s11, 1
        // Predicated region
        $region13: #{tpu_custom_call.1} parent=11 // pred_check
          %p89 = pneg %p32
        $region14: #{tpu_custom_call.1} parent=11 // pred_check_branch
          %91 = sbr.rel (%p89) target = $region16
        $region15: #{tpu_custom_call.1} parent=11 // pred_region
          %s93 = ssub.s32 128, 128
          %94 = vsyncadd [#allocation3], %s93
          %s96 = sshll.u32 [#allocation2], 4
          %s97 = int_to_ptr.vmem [resolvable:$true] %s96
          %99 = dma.hbm_to_vmem [thread:$0]  %s0, 128, %s97, [#allocation3]
        $region16: #{tpu_custom_call.1} parent=11 // pred_fallthru
          _
        // Predicated region
        $region17: #{tpu_custom_call.1} parent=11 // pred_check
          %p100 = pneg %p53
        $region18: #{tpu_custom_call.1} parent=11 // pred_check_branch
          %102 = sbr.rel (%p100) target = $region20
        $region19: #{tpu_custom_call.1} parent=11 // pred_region
          %s104 = ssub.s32 128, 128
          %105 = vsyncadd [#allocation6], %s104
          %s107 = sshll.u32 [#allocation5], 4
          %s108 = int_to_ptr.vmem [resolvable:$true] %s107
          %110 = dma.hbm_to_vmem [thread:$0]  %s1, 128, %s108, [#allocation6]
        $region20: #{tpu_custom_call.1} parent=11 // pred_fallthru
          _
      $region12: #{tpu_custom_call.1} parent=5 // pred_fallthru
        _
      %p111 = scmp.lt.s32.totalorder %s11, 2
      // Predicated region
      $region21: #{tpu_custom_call.1} parent=5 // pred_check
        %p112 = pneg %p111
      $region22: #{tpu_custom_call.1} parent=5 // pred_check_branch
        %114 = sbr.rel (%p112) target = $region24
      $region23: #{tpu_custom_call.1} parent=5 // pred_region
        _
      $region24: #{tpu_custom_call.1} parent=5 // pred_fallthru
        _
      %p115 = scmp.le.s32.totalorder 1, %s11
      %p116 = scmp.lt.s32.totalorder %s11, 3
      %p117 = pnand %p115, %p116
      %p118 = pneg %p117
      // Predicated region
      $region25: #{tpu_custom_call.1} parent=5 // pred_check
        _
      $region26: #{tpu_custom_call.1} parent=5 // pred_check_branch
        %120 = sbr.rel (%p117) target = $region28
      $region27: #{tpu_custom_call.1} parent=5 // pred_region
        %s121 = ssub.s32 %s11, 1
        // Predicated region
        $region29: #{tpu_custom_call.1} parent=27 // pred_check
          %p122 = pneg %p32
        $region30: #{tpu_custom_call.1} parent=27 // pred_check_branch
          %124 = sbr.rel (%p122) target = $region32
        $region31: #{tpu_custom_call.1} parent=27 // pred_region
          %125 = dma.done [#allocation3], 128
        $region32: #{tpu_custom_call.1} parent=27 // pred_fallthru
          _
        // Predicated region
        $region33: #{tpu_custom_call.1} parent=27 // pred_check
          %p126 = pneg %p53
        $region34: #{tpu_custom_call.1} parent=27 // pred_check_branch
          %128 = sbr.rel (%p126) target = $region36
        $region35: #{tpu_custom_call.1} parent=27 // pred_region
          %129 = dma.done [#allocation6], 128
        $region36: #{tpu_custom_call.1} parent=27 // pred_fallthru
          _
        %p130 = pneg %p32
        %p131 = pneg %p29
        %p132 = pneg %p53
        %p133 = pneg %p50
        %p134 = pneg %p74
        %p135 = pneg %p71
        %v136 = vld [vmem:[#allocation2] sm:$0xff]
        %v137 = vld [vmem:[#allocation5] sm:$0xff]
        %v138 = vadd.f32 %v136, %v137
        %139 = vst [vmem:[#allocation7] sm:$0xff] %v138
        // Predicated region
        $region37: #{tpu_custom_call.1} parent=27 // pred_check
          %p140 = pneg %p71
        $region38: #{tpu_custom_call.1} parent=27 // pred_check_branch
          %142 = sbr.rel (%p140) target = $region40
        $region39: #{tpu_custom_call.1} parent=27 // pred_region
          %s144 = ssub.s32 128, 128
          %145 = vsyncadd [#allocation4], %s144
          %s147 = sshll.u32 [#allocation7], 4
          %s148 = int_to_ptr.vmem [resolvable:$true] %s147
          %150 = dma.vmem_to_hbm [thread:$0]  %s148, 128, %s2, [#allocation4]
        $region40: #{tpu_custom_call.1} parent=27 // pred_fallthru
          _
        // Predicated region
        $region41: #{tpu_custom_call.1} parent=27 // pred_check
          %p151 = pneg %p71
        $region42: #{tpu_custom_call.1} parent=27 // pred_check_branch
          %153 = sbr.rel (%p151) target = $region44
        $region43: #{tpu_custom_call.1} parent=27 // pred_region
          %154 = dma.done [#allocation4], 128
        $region44: #{tpu_custom_call.1} parent=27 // pred_fallthru
          _
      $region28: #{tpu_custom_call.1} parent=5 // pred_fallthru
        _
      %p155 = scmp.le.s32.totalorder 2, %s11
      // Predicated region
      $region45: #{tpu_custom_call.1} parent=5 // pred_check
        %p156 = pneg %p155
      $region46: #{tpu_custom_call.1} parent=5 // pred_check_branch
        %158 = sbr.rel (%p156) target = $region48
      $region47: #{tpu_custom_call.1} parent=5 // pred_region
        %s159 = ssub.s32 %s11, 2
      $region48: #{tpu_custom_call.1} parent=5 // pred_fallthru
        _
    $region6: #{tpu_custom_call.1} parent=1 // loop_footer
      %s15 = sadd.s32 1, %s11
    $region7: #{tpu_custom_call.1} parent=1 // loop_footer_branch
      %10 = sbr.rel target = $region3
    $region8: #{tpu_custom_call.1} parent=1 // loop_exit
      _
    %160 = vsyncpa [#allocation3], 1
    %s161 = scalar_lea.sflag [#allocation3], 1
    %162 = vsyncpa %s161, 1
    %163 = vsyncpa [#allocation6], 1
    %164 = vsyncpa [#allocation4], 1
    %s165 = scalar_lea.sflag [#allocation4], 1
    %166 = vsyncpa %s165, 1

// kernel: forward.10
$region0: #{forward.10}
  #allocation0 [shape = 'u32[]', space=smem, size = 0x4, offset = 0x4, fixed_abs, tag = 'smem constant byte address 0x4 - core index']
  #allocation1 [shape = 'u32[144,128]{1,0:T(1,128)}', space=vmem, size = 0x12000, scoped, tag = 'internal scratch']
  %s0 = inlined_call_operand.vmem [shape: f32[8,192], index: 0, kind: input, shape index: {}]
  %s1 = inlined_call_operand.vmem [shape: bf16[192,128], index: 1, kind: input, shape index: {}]
  %s2 = inlined_call_operand.vmem [shape: f32[8,128], index: 2, kind: output, shape index: {}]
  %s3 = sld [smem:[#allocation0]]
  $region18: #{forward.10} parent=0
    _
  %s5 = ssub.s32 1, %s3
  %s6 = scalar_select 0, %s5, %s3
  // Predicated region
  $region2: #{forward.10} parent=0 // pred_check
    _
  $region3: #{forward.10} parent=0 // pred_check_branch
    %8 = sbr.rel (0) target = $region5
  $region4: #{forward.10} parent=0 // pred_region
    _
  $region5: #{forward.10} parent=0 // pred_fallthru
    _
  // Predicated region
  $region6: #{forward.10} parent=0 // pred_check
    _
  $region7: #{forward.10} parent=0 // pred_check_branch
    %10 = sbr.rel (0) target = $region9
  $region8: #{forward.10} parent=0 // pred_region
    _
  $region9: #{forward.10} parent=0 // pred_fallthru
    _
  %v12 = vld [vmem:[%s0] sm:$0xff]
  %v13 = vld [vmem:[%s0 + $0x8] sm:$0xff]
  %v14 = vpack.c.bf16 %v12, %v12
  %v15 = vpack.c.bf16 %v13, %v13
  %v16 = vld [vmem:[%s1] sm:$0xf]
  %v17 = vld [vmem:[%s1 + $0x4] sm:$0xf]
  %v18 = vld [vmem:[%s1 + $0x8] sm:$0xf]
  %v19 = vld [vmem:[%s1 + $0xc] sm:$0xf]
  %v20 = vld [vmem:[%s1 + $0x10] sm:$0xf]
  %v21 = vld [vmem:[%s1 + $0x14] sm:$0xf]
  %v22 = vld [vmem:[%s1 + $0x18] sm:$0xf]
  %v23 = vld [vmem:[%s1 + $0x1c] sm:$0xf]
  %v24 = vld [vmem:[%s1 + $0x20] sm:$0xf]
  %v25 = vld [vmem:[%s1 + $0x24] sm:$0xf]
  %v26 = vld [vmem:[%s1 + $0x28] sm:$0xf]
  %v27 = vld [vmem:[%s1 + $0x2c] sm:$0xf]
  %v28 = vld [vmem:[%s1 + $0x30] sm:$0xf]
  %v29 = vld [vmem:[%s1 + $0x34] sm:$0xf]
  %v30 = vld [vmem:[%s1 + $0x38] sm:$0xf]
  %v31 = vld [vmem:[%s1 + $0x3c] sm:$0xf]
  %v32 = vld [vmem:[%s1 + $0x40] sm:$0xf]
  %v33 = vld [vmem:[%s1 + $0x44] sm:$0xf]
  %v34 = vld [vmem:[%s1 + $0x48] sm:$0xf]
  %v35 = vld [vmem:[%s1 + $0x4c] sm:$0xf]
  %v36 = vld [vmem:[%s1 + $0x50] sm:$0xf]
  %v37 = vld [vmem:[%s1 + $0x54] sm:$0xf]
  %v38 = vld [vmem:[%s1 + $0x58] sm:$0xf]
  %v39 = vld [vmem:[%s1 + $0x5c] sm:$0xf]
  %v64 = vunpack.c.l.b16 %v16
  %v65 = vunpack.c.l.b16 %v17
  %v66 = vunpack.c.l.b16 %v18
  %v67 = vunpack.c.l.b16 %v19
  %v68 = vunpack.c.l.b16 %v20
  %v69 = vunpack.c.l.b16 %v21
  %v70 = vunpack.c.l.b16 %v22
  %v71 = vunpack.c.l.b16 %v23
  %v72 = vunpack.c.l.b16 %v24
  %v73 = vunpack.c.l.b16 %v25
  %v74 = vunpack.c.l.b16 %v26
  %v75 = vunpack.c.l.b16 %v27
  %v76 = vunpack.c.l.b16 %v28
  %v77 = vunpack.c.l.b16 %v29
  %v78 = vunpack.c.l.b16 %v30
  %v79 = vunpack.c.l.b16 %v31
  %v80 = vunpack.c.l.b16 %v32
  %v81 = vunpack.c.l.b16 %v33
  %v82 = vunpack.c.l.b16 %v34
  %v83 = vunpack.c.l.b16 %v35
  %v84 = vunpack.c.l.b16 %v36
  %v85 = vunpack.c.l.b16 %v37
  %v86 = vunpack.c.l.b16 %v38
  %v87 = vunpack.c.l.b16 %v39
  %v88 = vpack.c.b16 %v65, %v64
  %v89 = vpack.c.b16 %v67, %v66
  %v90 = vpack.c.b16 %v69, %v68
  %v91 = vpack.c.b16 %v71, %v70
  %v92 = vpack.c.b16 %v73, %v72
  %v93 = vpack.c.b16 %v75, %v74
  %v94 = vpack.c.b16 %v77, %v76
  %v95 = vpack.c.b16 %v79, %v78
  %v96 = vpack.c.b16 %v81, %v80
  %v97 = vpack.c.b16 %v83, %v82
  %v98 = vpack.c.b16 %v85, %v84
  %v99 = vpack.c.b16 %v87, %v86
  %vm112 = vcmask 523264
  %v114 = vsel %vm112, %v15, 0
  %116 = vmatprep.subr.bf16.mxu0 0
  %117 = vmatpush1.bf16.msra.mxu0 %v88
  %118 = vmatprep.subr.bf16.mxu0 0
  %119 = vmatpush1.bf16.msra.mxu0 %v89
  %120 = vmatprep.subr.bf16.mxu0 0
  %121 = vmatpush1.bf16.msra.mxu0 %v90
  %122 = vmatprep.subr.bf16.mxu0 0
  %123 = vmatpush1.bf16.msra.mxu0 %v91
  %124 = vmatprep.subr.bf16.mxu0 0
  %125 = vmatpush1.bf16.msra.mxu0 %v92
  %126 = vmatprep.subr.bf16.mxu0 0
  %127 = vmatpush1.bf16.msra.mxu0 %v93
  %128 = vmatprep.subr.bf16.mxu0 0
  %129 = vmatpush1.bf16.msra.mxu0 %v94
  %130 = vmatprep.subr.bf16.mxu0 0
  %131 = vmatpush1.bf16.msra.mxu0 %v95
  %132 = vmatprep.subr.bf16.mxu0 0
  %133 = vmatpush1.bf16.msra.mxu0 %v96
  %134 = vmatprep.subr.bf16.mxu0 0
  %135 = vmatpush1.bf16.msra.mxu0 %v97
  %136 = vmatprep.subr.bf16.mxu0 0
  %137 = vmatpush1.bf16.msra.mxu0 %v98
  %138 = vmatprep.subr.bf16.mxu0 0
  %139 = vmatpush1.bf16.msra.mxu0 %v99
  %140 = vmatprep.subr.bf16.mxu0 0
  %141 = vmatpush1.bf16.msra.mxu0 0
  %142 = vmatprep.subr.bf16.mxu0 0
  %143 = vmatpush1.bf16.msra.mxu0 0
  %144 = vmatprep.subr.bf16.mxu0 0
  %145 = vmatpush1.bf16.msra.mxu0 0
  %146 = vmatprep.subr.bf16.mxu0 0
  %147 = vmatpush1.bf16.msra.mxu0 0
  %148 = vmatprep.mubr.bf16.mxu0 %v114
  %149 = vmatmul.mubr.bf16.gmra.mrb[0].mxu0 %v14
  %v150 = vpop.f32.mrb[0].mxu0
  %v151 = vadd.f32 0.0, %v150
  %v152 = vpop.f32.mrb[0].mxu0
  %v153 = vpop.f32.mrb[0].mxu0
  %v154 = vpop.f32.mrb[0].mxu0
  %155 = vdwg.mxu0
  %156 = vst [vmem:[%s2] sm:$0xff] %v151
  // Predicated region
  $region10: #{forward.10} parent=0 // pred_check
    _
  $region11: #{forward.10} parent=0 // pred_check_branch
    %158 = sbr.rel (0) target = $region13
  $region12: #{forward.10} parent=0 // pred_region
    _
  $region13: #{forward.10} parent=0 // pred_fallthru
    _
  // Predicated region
  $region14: #{forward.10} parent=0 // pred_check
    _
  $region15: #{forward.10} parent=0 // pred_check_branch
    %160 = sbr.rel (0) target = $region17
  $region16: #{forward.10} parent=0 // pred_region
    _
  $region17: #{forward.10} parent=0 // pred_fallthru
    _

// kernel: forward.11
$region0: #{forward.11}
  #allocation0 [shape = 'u32[]', space=smem, size = 0x4, offset = 0x4, fixed_abs, tag = 'smem constant byte address 0x4 - core index']
  #allocation1 [shape = 'u32[144,128]{1,0:T(1,128)}', space=vmem, size = 0x12000, scoped, tag = 'internal scratch']
  %s0 = inlined_call_operand.vmem [shape: f32[16,32], index: 0, kind: input, shape index: {}]
  %s1 = inlined_call_operand.vmem [shape: f32[1,32], index: 1, kind: input, shape index: {}]
  %s2 = inlined_call_operand.vmem [shape: f32[1,32], index: 2, kind: input, shape index: {}]
  %s3 = inlined_call_operand.vmem [shape: f32[16,32], index: 3, kind: output, shape index: {}]
  %s4 = sld [smem:[#allocation0]]
  $region22: #{forward.11} parent=0
    _
  %s6 = ssub.s32 1, %s4
  %s7 = scalar_select 0, %s6, %s4
  // Predicated region
  $region2: #{forward.11} parent=0 // pred_check
    _
  $region3: #{forward.11} parent=0 // pred_check_branch
    %9 = sbr.rel (0) target = $region5
  $region4: #{forward.11} parent=0 // pred_region
    _
  $region5: #{forward.11} parent=0 // pred_fallthru
    _
  // Predicated region
  $region6: #{forward.11} parent=0 // pred_check
    _
  $region7: #{forward.11} parent=0 // pred_check_branch
    %11 = sbr.rel (0) target = $region9
  $region8: #{forward.11} parent=0 // pred_region
    _
  $region9: #{forward.11} parent=0 // pred_fallthru
    _
  // Predicated region
  $region10: #{forward.11} parent=0 // pred_check
    _
  $region11: #{forward.11} parent=0 // pred_check_branch
    %13 = sbr.rel (0) target = $region13
  $region12: #{forward.11} parent=0 // pred_region
    _
  $region13: #{forward.11} parent=0 // pred_fallthru
    _
  %v14 = vld [vmem:[%s0] sm:$0xff]
  %v15 = vld [vmem:[%s0 + $0x8] sm:$0xff]
  %v16 = vld [vmem:[%s1] sm:$0x1]
  %v17 = vld [vmem:[%s2] sm:$0x1]
  %vm18 = vcmask 261120
  %v19 = vsel %vm18, %v14, 0.0
  %20 = vadd.xlane.f32.xlu0 %v19
  %v21 = vpop.xlane.xlu0 %20
  %v22 = vsel %vm18, %v15, 0.0
  %23 = vadd.xlane.f32.xlu0 %v22
  %v24 = vpop.xlane.xlu0 %23
  %v25 = vrcp.pop 32.0
  %v26 = vmul.f32 %v21, %v25
  %v27 = vmul.f32 %v24, %v25
  %v28 = vsub.f32 %v14, %v26
  %v29 = vsub.f32 %v15, %v27
  %v30 = vmul.f32 %v28, %v28
  %v31 = vmul.f32 %v29, %v29
  %v32 = vsel %vm18, %v30, 0.0
  %33 = vadd.xlane.f32.xlu0 %v32
  %v34 = vpop.xlane.xlu0 %33
  %v35 = vsel %vm18, %v31, 0.0
  %36 = vadd.xlane.f32.xlu0 %v35
  %v37 = vpop.xlane.xlu0 %36
  %v38 = vmul.f32 %v34, %v25
  %v39 = vmul.f32 %v37, %v25
  %v40 = vadd.f32 %v38, 1e-05
  %v41 = vadd.f32 %v39, 1e-05
  %v42 = vrsqrt.pop %v40
  %v43 = vrsqrt.pop %v41
  %v44 = vmul.f32 %v28, %v42
  %v45 = vmul.f32 %v29, %v43
  %v47 = vlaneseq
  %v48 = vshrl.u32 %v47, 7
  %v49 = vsub.s32 0, %v48
  %v50 = vrot.slane %v16, %v49
  %v52 = vmul.f32 %v44, %v50
  %v53 = vmul.f32 %v45, %v50
  %v55 = vlaneseq
  %v56 = vshrl.u32 %v55, 7
  %v57 = vsub.s32 0, %v56
  %v58 = vrot.slane %v17, %v57
  %v60 = vadd.f32 %v52, %v58
  %v61 = vadd.f32 %v53, %v58
  %62 = vst.msk [vmem:[%s3] sm:$0xff] %vm18, %v60
  %63 = vst.msk [vmem:[%s3 + $0x8] sm:$0xff] %vm18, %v61
  // Predicated region
  $region14: #{forward.11} parent=0 // pred_check
    _
  $region15: #{forward.11} parent=0 // pred_check_branch
    %65 = sbr.rel (0) target = $region17
  $region16: #{forward.11} parent=0 // pred_region
    _
  $region17: #{forward.11} parent=0 // pred_fallthru
    _
  // Predicated region
  $region18: #{forward.11} parent=0 // pred_check
    _
  $region19: #{forward.11} parent=0 // pred_check_branch
    %67 = sbr.rel (0) target = $region21
  $region20: #{forward.11} parent=0 // pred_region
    _
  $region21: #{forward.11} parent=0 // pred_fallthru
    _

// kernel: forward.13
$region0: #{forward.13}
  #allocation0 [shape = 'u32[]', space=smem, size = 0x4, offset = 0x4, fixed_abs, tag = 'smem constant byte address 0x4 - core index']
  #allocation1 [shape = 'u32[144,128]{1,0:T(1,128)}', space=vmem, size = 0x12000, scoped, tag = 'internal scratch']
  %s0 = inlined_call_operand.vmem [shape: f32[16,32], index: 0, kind: input, shape index: {}]
  %s1 = inlined_call_operand.vmem [shape: f32[1,32], index: 1, kind: input, shape index: {}]
  %s2 = inlined_call_operand.vmem [shape: f32[1,32], index: 2, kind: input, shape index: {}, may-alias: {2,6}]
  %s3 = inlined_call_operand.vmem [shape: bf16[32,64], index: 3, kind: input, shape index: {}]
  %s4 = inlined_call_operand.vmem [shape: f32[1,64], index: 4, kind: input, shape index: {}]
  %s5 = inlined_call_operand.vmem [shape: bf16[64,32], index: 5, kind: input, shape index: {}]
  %s6 = inlined_call_operand.vmem [shape: f32[1,32], index: 6, kind: input, shape index: {}, may-alias: {2,6}]
  %s7 = inlined_call_operand.vmem [shape: f32[16,32], index: 7, kind: output, shape index: {}]
  %s8 = sld [smem:[#allocation0]]
  $region38: #{forward.13} parent=0
    _
  %s10 = ssub.s32 1, %s8
  %s11 = scalar_select 0, %s10, %s8
  // Predicated region
  $region2: #{forward.13} parent=0 // pred_check
    _
  $region3: #{forward.13} parent=0 // pred_check_branch
    %13 = sbr.rel (0) target = $region5
  $region4: #{forward.13} parent=0 // pred_region
    _
  $region5: #{forward.13} parent=0 // pred_fallthru
    _
  // Predicated region
  $region6: #{forward.13} parent=0 // pred_check
    _
  $region7: #{forward.13} parent=0 // pred_check_branch
    %15 = sbr.rel (0) target = $region9
  $region8: #{forward.13} parent=0 // pred_region
    _
  $region9: #{forward.13} parent=0 // pred_fallthru
    _
  // Predicated region
  $region10: #{forward.13} parent=0 // pred_check
    _
  $region11: #{forward.13} parent=0 // pred_check_branch
    %17 = sbr.rel (0) target = $region13
  $region12: #{forward.13} parent=0 // pred_region
    _
  $region13: #{forward.13} parent=0 // pred_fallthru
    _
  // Predicated region
  $region14: #{forward.13} parent=0 // pred_check
    _
  $region15: #{forward.13} parent=0 // pred_check_branch
    %19 = sbr.rel (0) target = $region17
  $region16: #{forward.13} parent=0 // pred_region
    _
  $region17: #{forward.13} parent=0 // pred_fallthru
    _
  // Predicated region
  $region18: #{forward.13} parent=0 // pred_check
    _
  $region19: #{forward.13} parent=0 // pred_check_branch
    %21 = sbr.rel (0) target = $region21
  $region20: #{forward.13} parent=0 // pred_region
    _
  $region21: #{forward.13} parent=0 // pred_fallthru
    _
  // Predicated region
  $region22: #{forward.13} parent=0 // pred_check
    _
  $region23: #{forward.13} parent=0 // pred_check_branch
    %23 = sbr.rel (0) target = $region25
  $region24: #{forward.13} parent=0 // pred_region
    _
  $region25: #{forward.13} parent=0 // pred_fallthru
    _
  // Predicated region
  $region26: #{forward.13} parent=0 // pred_check
    _
  $region27: #{forward.13} parent=0 // pred_check_branch
    %25 = sbr.rel (0) target = $region29
  $region28: #{forward.13} parent=0 // pred_region
    _
  $region29: #{forward.13} parent=0 // pred_fallthru
    _
  %v27 = vld [vmem:[%s0] sm:$0xff]
  %v28 = vld [vmem:[%s0 + $0x8] sm:$0xff]
  %v29 = vld [vmem:[%s1] sm:$0x1]
  %v30 = vld [vmem:[%s2] sm:$0x1]
  %vm31 = vcmask 261120
  %v32 = vsel %vm31, %v27, 0.0
  %33 = vadd.xlane.f32.xlu0 %v32
  %v34 = vpop.xlane.xlu0 %33
  %v35 = vsel %vm31, %v28, 0.0
  %36 = vadd.xlane.f32.xlu0 %v35
  %v37 = vpop.xlane.xlu0 %36
  %v38 = vrcp.pop 32.0
  %v39 = vmul.f32 %v34, %v38
  %v40 = vmul.f32 %v37, %v38
  %v41 = vsub.f32 %v27, %v39
  %v42 = vsub.f32 %v28, %v40
  %v43 = vmul.f32 %v41, %v41
  %v44 = vmul.f32 %v42, %v42
  %v45 = vsel %vm31, %v43, 0.0
  %46 = vadd.xlane.f32.xlu0 %v45
  %v47 = vpop.xlane.xlu0 %46
  %v48 = vsel %vm31, %v44, 0.0
  %49 = vadd.xlane.f32.xlu0 %v48
  %v50 = vpop.xlane.xlu0 %49
  %v51 = vmul.f32 %v47, %v38
  %v52 = vmul.f32 %v50, %v38
  %v53 = vadd.f32 %v51, 1e-05
  %v54 = vadd.f32 %v52, 1e-05
  %v55 = vrsqrt.pop %v53
  %v56 = vrsqrt.pop %v54
  %v57 = vmul.f32 %v41, %v55
  %v58 = vmul.f32 %v42, %v56
  %v60 = vlaneseq
  %v61 = vshrl.u32 %v60, 7
  %v62 = vsub.s32 0, %v61
  %v63 = vrot.slane %v29, %v62
  %v65 = vmul.f32 %v57, %v63
  %v66 = vmul.f32 %v58, %v63
  %v68 = vlaneseq
  %v69 = vshrl.u32 %v68, 7
  %v70 = vsub.s32 0, %v69
  %v71 = vrot.slane %v30, %v70
  %v73 = vadd.f32 %v65, %v71
  %v74 = vadd.f32 %v66, %v71
  %v75 = vpack.c.bf16 %v74, %v73
  %v76 = vld [vmem:[%s3] sm:$0xf]
  %v77 = vld [vmem:[%s3 + $0x4] sm:$0xf]
  %v78 = vld [vmem:[%s3 + $0x8] sm:$0xf]
  %v79 = vld [vmem:[%s3 + $0xc] sm:$0xf]
  %v80 = vld [vmem:[%s4] sm:$0x1]
  %v82 = vlaneseq
  %v83 = vshrl.u32 %v82, 7
  %v84 = vsub.s32 0, %v83
  %v85 = vrot.slane %v80, %v84
  %v91 = vunpack.c.l.b16 %v76
  %v92 = vunpack.c.l.b16 %v77
  %v93 = vunpack.c.l.b16 %v78
  %v94 = vunpack.c.l.b16 %v79
  %v95 = vpack.c.b16 %v92, %v91
  %v96 = vpack.c.b16 %v94, %v93
  %v100 = vsel %vm31, %v75, 0
  %102 = vmatprep.subr.bf16.mxu0 0
  %103 = vmatpush1.bf16.msra.mxu0 %v95
  %104 = vmatprep.subr.bf16.mxu0 0
  %105 = vmatpush1.bf16.msra.mxu0 %v96
  %106 = vmatprep.subr.bf16.mxu0 0
  %107 = vmatpush1.bf16.msra.mxu0 0
  %108 = vmatprep.subr.bf16.mxu0 0
  %109 = vmatpush1.bf16.msra.mxu0 0
  %110 = vmatprep.subr.bf16.mxu0 0
  %111 = vmatpush1.bf16.msra.mxu0 0
  %112 = vmatprep.subr.bf16.mxu0 0
  %113 = vmatpush1.bf16.msra.mxu0 0
  %114 = vmatprep.subr.bf16.mxu0 0
  %115 = vmatpush1.bf16.msra.mxu0 0
  %116 = vmatprep.subr.bf16.mxu0 0
  %117 = vmatpush1.bf16.msra.mxu0 0
  %118 = vmatprep.subr.bf16.mxu0 0
  %119 = vmatpush1.bf16.msra.mxu0 0
  %120 = vmatprep.subr.bf16.mxu0 0
  %121 = vmatpush1.bf16.msra.mxu0 0
  %122 = vmatprep.subr.bf16.mxu0 0
  %123 = vmatpush1.bf16.msra.mxu0 0
  %124 = vmatprep.subr.bf16.mxu0 0
  %125 = vmatpush1.bf16.msra.mxu0 0
  %126 = vmatprep.subr.bf16.mxu0 0
  %127 = vmatpush1.bf16.msra.mxu0 0
  %128 = vmatprep.subr.bf16.mxu0 0
  %129 = vmatpush1.bf16.msra.mxu0 0
  %130 = vmatprep.subr.bf16.mxu0 0
  %131 = vmatpush1.bf16.msra.mxu0 0
  %132 = vmatprep.subr.bf16.mxu0 0
  %133 = vmatpush1.bf16.msra.mxu0 0
  %134 = vmatprep.mubr.bf16.mxu0 0
  %135 = vmatmul.mubr.bf16.gmra.mrb[0].mxu0 %v100
  %v136 = vpop.f32.mrb[0].mxu0
  %v137 = vadd.f32 %v85, %v136
  %v138 = vpop.f32.mrb[0].mxu0
  %v139 = vpop.f32.mrb[0].mxu0
  %v140 = vadd.f32 %v85, %v139
  %v141 = vpop.f32.mrb[0].mxu0
  %142 = vdwg.mxu0
  %v143 = vmul.f32 %v137, 1.702
  %v144 = vmul.f32 %v140, 1.702
  %v145 = vxor.u32 %v143, 2147483648
  %v146 = vxor.u32 %v144, 2147483648
  %v147 = vmul.f32 %v145, 1.442695
  %v148 = vpow.pop %v147
  %v149 = vmul.f32 %v146, 1.442695
  %v150 = vpow.pop %v149
  %v151 = vadd.f32 %v148, 1.0
  %v152 = vadd.f32 %v150, 1.0
  %v153 = vrcp.pop %v151
  %v154 = vmul.f32 1.0, %v153
  %v155 = vrcp.pop %v152
  %v156 = vmul.f32 1.0, %v155
  %v157 = vmul.f32 %v137, %v154
  %v158 = vmul.f32 %v140, %v156
  %v159 = vpack.c.bf16 %v158, %v157
  %v160 = vld [vmem:[%s5] sm:$0xf]
  %v161 = vld [vmem:[%s5 + $0x4] sm:$0xf]
  %v162 = vld [vmem:[%s5 + $0x8] sm:$0xf]
  %v163 = vld [vmem:[%s5 + $0xc] sm:$0xf]
  %v164 = vld [vmem:[%s5 + $0x10] sm:$0xf]
  %v165 = vld [vmem:[%s5 + $0x14] sm:$0xf]
  %v166 = vld [vmem:[%s5 + $0x18] sm:$0xf]
  %v167 = vld [vmem:[%s5 + $0x1c] sm:$0xf]
  %v168 = vld [vmem:[%s6] sm:$0x1]
  %v170 = vlaneseq
  %v171 = vshrl.u32 %v170, 7
  %v172 = vsub.s32 0, %v171
  %v173 = vrot.slane %v168, %v172
  %v183 = vunpack.c.l.b16 %v160
  %v184 = vunpack.c.l.b16 %v161
  %v185 = vunpack.c.l.b16 %v162
  %v186 = vunpack.c.l.b16 %v163
  %v187 = vunpack.c.l.b16 %v164
  %v188 = vunpack.c.l.b16 %v165
  %v189 = vunpack.c.l.b16 %v166
  %v190 = vunpack.c.l.b16 %v167
  %v191 = vpack.c.b16 %v184, %v183
  %v192 = vpack.c.b16 %v186, %v185
  %v193 = vpack.c.b16 %v188, %v187
  %v194 = vpack.c.b16 %v190, %v189
  %vm199 = vcmask 523264
  %v201 = vsel %vm199, %v159, 0
  %203 = vmatprep.subr.bf16.mxu0 0
  %204 = vmatpush1.bf16.msra.mxu0 %v191
  %205 = vmatprep.subr.bf16.mxu0 0
  %206 = vmatpush1.bf16.msra.mxu0 %v192
  %207 = vmatprep.subr.bf16.mxu0 0
  %208 = vmatpush1.bf16.msra.mxu0 %v193
  %209 = vmatprep.subr.bf16.mxu0 0
  %210 = vmatpush1.bf16.msra.mxu0 %v194
  %211 = vmatprep.subr.bf16.mxu0 0
  %212 = vmatpush1.bf16.msra.mxu0 0
  %213 = vmatprep.subr.bf16.mxu0 0
  %214 = vmatpush1.bf16.msra.mxu0 0
  %215 = vmatprep.subr.bf16.mxu0 0
  %216 = vmatpush1.bf16.msra.mxu0 0
  %217 = vmatprep.subr.bf16.mxu0 0
  %218 = vmatpush1.bf16.msra.mxu0 0
  %219 = vmatprep.subr.bf16.mxu0 0
  %220 = vmatpush1.bf16.msra.mxu0 0
  %221 = vmatprep.subr.bf16.mxu0 0
  %222 = vmatpush1.bf16.msra.mxu0 0
  %223 = vmatprep.subr.bf16.mxu0 0
  %224 = vmatpush1.bf16.msra.mxu0 0
  %225 = vmatprep.subr.bf16.mxu0 0
  %226 = vmatpush1.bf16.msra.mxu0 0
  %227 = vmatprep.subr.bf16.mxu0 0
  %228 = vmatpush1.bf16.msra.mxu0 0
  %229 = vmatprep.subr.bf16.mxu0 0
  %230 = vmatpush1.bf16.msra.mxu0 0
  %231 = vmatprep.subr.bf16.mxu0 0
  %232 = vmatpush1.bf16.msra.mxu0 0
  %233 = vmatprep.subr.bf16.mxu0 0
  %234 = vmatpush1.bf16.msra.mxu0 0
  %235 = vmatprep.mubr.bf16.mxu0 0
  %236 = vmatmul.mubr.bf16.gmra.mrb[0].mxu0 %v201
  %v237 = vpop.f32.mrb[0].mxu0
  %v238 = vadd.f32 %v173, %v237
  %v239 = vpop.f32.mrb[0].mxu0
  %v240 = vpop.f32.mrb[0].mxu0
  %v241 = vadd.f32 %v173, %v240
  %v242 = vpop.f32.mrb[0].mxu0
  %243 = vdwg.mxu0
  %v244 = vadd.f32 %v27, %v238
  %v245 = vadd.f32 %v28, %v241
  %246 = vst.msk [vmem:[%s7] sm:$0xff] %vm31, %v244
  %247 = vst.msk [vmem:[%s7 + $0x8] sm:$0xff] %vm31, %v245
  // Predicated region
  $region30: #{forward.13} parent=0 // pred_check
    _
  $region31: #{forward.13} parent=0 // pred_check_branch
    %249 = sbr.rel (0) target = $region33
  $region32: #{forward.13} parent=0 // pred_region
    _
  $region33: #{forward.13} parent=0 // pred_fallthru
    _
  // Predicated region
  $region34: #{forward.13} parent=0 // pred_check
    _
  $region35: #{forward.13} parent=0 // pred_check_branch
    %251 = sbr.rel (0) target = $region37
  $region36: #{forward.13} parent=0 // pred_region
    _
  $region37: #{forward.13} parent=0 // pred_fallthru
    _

// kernel: forward.14
$region0: #{forward.14}
  #allocation0 [shape = 'u32[]', space=smem, size = 0x4, offset = 0x4, fixed_abs, tag = 'smem constant byte address 0x4 - core index']
  #allocation1 [shape = 'u32[144,128]{1,0:T(1,128)}', space=vmem, size = 0x12000, scoped, tag = 'internal scratch']
  %s0 = inlined_call_operand.vmem [shape: f32[16,32], index: 0, kind: input, shape index: {}]
  %s1 = inlined_call_operand.vmem [shape: bf16[32,128], index: 1, kind: input, shape index: {}]
  %s2 = inlined_call_operand.vmem [shape: f32[1,128], index: 2, kind: input, shape index: {}]
  %s3 = inlined_call_operand.vmem [shape: f32[16,128], index: 3, kind: output, shape index: {}]
  %s4 = sld [smem:[#allocation0]]
  $region22: #{forward.14} parent=0
    _
  %s6 = ssub.s32 1, %s4
  %s7 = scalar_select 0, %s6, %s4
  // Predicated region
  $region2: #{forward.14} parent=0 // pred_check
    _
  $region3: #{forward.14} parent=0 // pred_check_branch
    %9 = sbr.rel (0) target = $region5
  $region4: #{forward.14} parent=0 // pred_region
    _
  $region5: #{forward.14} parent=0 // pred_fallthru
    _
  // Predicated region
  $region6: #{forward.14} parent=0 // pred_check
    _
  $region7: #{forward.14} parent=0 // pred_check_branch
    %11 = sbr.rel (0) target = $region9
  $region8: #{forward.14} parent=0 // pred_region
    _
  $region9: #{forward.14} parent=0 // pred_fallthru
    _
  // Predicated region
  $region10: #{forward.14} parent=0 // pred_check
    _
  $region11: #{forward.14} parent=0 // pred_check_branch
    %13 = sbr.rel (0) target = $region13
  $region12: #{forward.14} parent=0 // pred_region
    _
  $region13: #{forward.14} parent=0 // pred_fallthru
    _
  %v15 = vld [vmem:[%s0] sm:$0xff]
  %v16 = vld [vmem:[%s0 + $0x8] sm:$0xff]
  %v17 = vpack.c.bf16 %v16, %v15
  %v18 = vld [vmem:[%s1] sm:$0xf]
  %v19 = vld [vmem:[%s1 + $0x4] sm:$0xf]
  %v20 = vld [vmem:[%s1 + $0x8] sm:$0xf]
  %v21 = vld [vmem:[%s1 + $0xc] sm:$0xf]
  %v22 = vld [vmem:[%s2] sm:$0x1]
  %v24 = vlaneseq
  %v25 = vshrl.u32 %v24, 7
  %v26 = vsub.s32 0, %v25
  %v27 = vrot.slane %v22, %v26
  %v33 = vunpack.c.l.b16 %v18
  %v34 = vunpack.c.l.b16 %v19
  %v35 = vunpack.c.l.b16 %v20
  %v36 = vunpack.c.l.b16 %v21
  %v37 = vpack.c.b16 %v34, %v33
  %v38 = vpack.c.b16 %v36, %v35
  %vm41 = vcmask 261120
  %v43 = vsel %vm41, %v17, 0
  %45 = vmatprep.subr.bf16.mxu0 0
  %46 = vmatpush1.bf16.msra.mxu0 %v37
  %47 = vmatprep.subr.bf16.mxu0 0
  %48 = vmatpush1.bf16.msra.mxu0 %v38
  %49 = vmatprep.subr.bf16.mxu0 0
  %50 = vmatpush1.bf16.msra.mxu0 0
  %51 = vmatprep.subr.bf16.mxu0 0
  %52 = vmatpush1.bf16.msra.mxu0 0
  %53 = vmatprep.subr.bf16.mxu0 0
  %54 = vmatpush1.bf16.msra.mxu0 0
  %55 = vmatprep.subr.bf16.mxu0 0
  %56 = vmatpush1.bf16.msra.mxu0 0
  %57 = vmatprep.subr.bf16.mxu0 0
  %58 = vmatpush1.bf16.msra.mxu0 0
  %59 = vmatprep.subr.bf16.mxu0 0
  %60 = vmatpush1.bf16.msra.mxu0 0
  %61 = vmatprep.subr.bf16.mxu0 0
  %62 = vmatpush1.bf16.msra.mxu0 0
  %63 = vmatprep.subr.bf16.mxu0 0
  %64 = vmatpush1.bf16.msra.mxu0 0
  %65 = vmatprep.subr.bf16.mxu0 0
  %66 = vmatpush1.bf16.msra.mxu0 0
  %67 = vmatprep.subr.bf16.mxu0 0
  %68 = vmatpush1.bf16.msra.mxu0 0
  %69 = vmatprep.subr.bf16.mxu0 0
  %70 = vmatpush1.bf16.msra.mxu0 0
  %71 = vmatprep.subr.bf16.mxu0 0
  %72 = vmatpush1.bf16.msra.mxu0 0
  %73 = vmatprep.subr.bf16.mxu0 0
  %74 = vmatpush1.bf16.msra.mxu0 0
  %75 = vmatprep.subr.bf16.mxu0 0
  %76 = vmatpush1.bf16.msra.mxu0 0
  %77 = vmatprep.mubr.bf16.mxu0 0
  %78 = vmatmul.mubr.bf16.gmra.mrb[0].mxu0 %v43
  %v79 = vpop.f32.mrb[0].mxu0
  %v80 = vadd.f32 %v27, %v79
  %v81 = vpop.f32.mrb[0].mxu0
  %v82 = vpop.f32.mrb[0].mxu0
  %v83 = vadd.f32 %v27, %v82
  %v84 = vpop.f32.mrb[0].mxu0
  %85 = vdwg.mxu0
  %v86 = vmax.f32 %v80, 0.0
  %v87 = vmax.f32 %v83, 0.0
  %88 = vst [vmem:[%s3] sm:$0xff] %v86
  %89 = vst [vmem:[%s3 + $0x8] sm:$0xff] %v87
  // Predicated region
  $region14: #{forward.14} parent=0 // pred_check
    _
  $region15: #{forward.14} parent=0 // pred_check_branch
    %91 = sbr.rel (0) target = $region17
  $region16: #{forward.14} parent=0 // pred_region
    _
  $region17: #{forward.14} parent=0 // pred_fallthru
    _
  // Predicated region
  $region18: #{forward.14} parent=0 // pred_check
    _
  $region19: #{forward.14} parent=0 // pred_check_branch
    %93 = sbr.rel (0) target = $region21
  $region20: #{forward.14} parent=0 // pred_region
    _
  $region21: #{forward.14} parent=0 // pred_fallthru
    _

// kernel: forward.12
$region0: #{forward.12}
  #allocation0 [shape = 'u32[]', space=smem, size = 0x4, offset = 0x4, fixed_abs, tag = 'smem constant byte address 0x4 - core index']
  #allocation1 [shape = 'u32[144,128]{1,0:T(1,128)}', space=vmem, size = 0x12000, scoped, tag = 'internal scratch']
  %s0 = inlined_call_operand.vmem [shape: f32[2,8,32], index: 0, kind: input, shape index: {}]
  %s1 = inlined_call_operand.vmem [shape: f32[2,1,8], index: 1, kind: input, shape index: {}]
  %s2 = inlined_call_operand.vmem [shape: f32[1,32], index: 2, kind: input, shape index: {}]
  %s3 = inlined_call_operand.vmem [shape: f32[1,32], index: 3, kind: input, shape index: {}, may-alias: {3,7}]
  %s4 = inlined_call_operand.vmem [shape: bf16[32,96], index: 4, kind: input, shape index: {}]
  %s5 = inlined_call_operand.vmem [shape: f32[1,96], index: 5, kind: input, shape index: {}]
  %s6 = inlined_call_operand.vmem [shape: bf16[32,32], index: 6, kind: input, shape index: {}]
  %s7 = inlined_call_operand.vmem [shape: f32[1,32], index: 7, kind: input, shape index: {}, may-alias: {3,7}]
  %s8 = inlined_call_operand.vmem [shape: f32[2,8,32], index: 8, kind: output, shape index: {}]
  %s9 = sld [smem:[#allocation0]]
  $region65: #{forward.12} parent=0
    _
  %s11 = ssub.s32 1, %s9
  %s12 = scalar_select 0, %s11, %s9
  loop: start=0, step=1, limit=4
  $region2: #{forward.12} parent=0 // loop_pre_header
    _
  $region3: #{forward.12} parent=0 // loop_header
    %s14 = sphi 0, %s18
    %p15 = scmp.ge.s32.totalorder %s14, 4
    %s21 = sphi 0, %s33
    %s22 = sphi 0, %s29
    %s23 = sphi 0, %s21
    %s24 = sphi 0, %s22
    %s25 = sphi 0, %s23
    %s26 = sphi 0, %s24
    %s36 = sphi 0, %s38
    %s39 = sphi 0, %s36
    %s40 = sphi 0, %s39
    %s56 = sphi 0, %s40
    %s62 = sphi 0, %s64
    %s65 = sphi 0, %s62
    %s66 = sphi 0, %s65
    %s82 = sphi 0, %s66
    %s86 = sphi 0, %s86
    %s88 = sphi 0, %s86
    %s89 = sphi 0, %s88
    %s103 = sphi 0, %s89
    %s107 = sphi 0, %s107
    %s109 = sphi 0, %s107
    %s110 = sphi 0, %s109
    %s124 = sphi 0, %s110
    %s128 = sphi 0, %s128
    %s130 = sphi 0, %s128
    %s131 = sphi 0, %s130
    %s145 = sphi 0, %s131
    %s149 = sphi 0, %s149
    %s151 = sphi 0, %s149
    %s152 = sphi 0, %s151
    %s166 = sphi 0, %s152
    %s170 = sphi 0, %s170
    %s172 = sphi 0, %s170
    %s173 = sphi 0, %s172
    %s187 = sphi 0, %s173
    %s191 = sphi 0, %s191
    %s193 = sphi 0, %s191
    %s194 = sphi 0, %s193
    %s208 = sphi 0, %s194
    %s216 = sphi 0, %s218
    %s219 = sphi 0, %s216
    %s220 = sphi 0, %s219
    %s236 = sphi 0, %s220
  $region4: #{forward.12} parent=0 // loop_header_branch
    %17 = sbr.rel (%p15) target = $region8
  $region5: #{forward.12} parent=0 // loop_body
    %s19 = ssub.s32 %s14, 1
    %s20 = ssub.s32 %s14, 2
    %s27 = sadd.s32 1, %s22
    %p28 = scmp.ge.s32.totalorder %s27, 1
    %s29 = scalar_select %p28, 0, %s27
    %s30 = sadd.s32 1, %s21
    %s31 = scalar_select %p28, %s30, %s21
    %p32 = scmp.ge.s32.totalorder %s31, 2
    %s33 = scalar_select %p32, 0, %s31
    %s34 = ssub.s32 %s21, %s33
    %p35 = scmp.eq.s32.totalorder %s34, 0
    %s37 = sadd.s32 %s36, 1
    %s38 = scalar_select %p35, %s36, %s37
    %p41 = pneg %p35
    %p42 = scmp.eq.s32.totalorder %s14, 1
    %p43 = por %p41, %p42
    %p44 = scmp.ne.s32.totalorder %s36, %s39
    %p45 = scmp.eq.s32.totalorder %s14, 0
    %p46 = por %p44, %p45
    %p47 = scmp.ne.s32.totalorder %s36, %s39
    %p48 = scmp.eq.s32.totalorder %s19, 1
    %p49 = por %p47, %p48
    %p50 = scmp.ne.s32.totalorder %s39, %s40
    %p51 = scmp.eq.s32.totalorder %s19, 0
    %p52 = por %p50, %p51
    %p53 = scmp.ne.s32.totalorder %s39, %s40
    %p54 = scmp.eq.s32.totalorder %s20, 1
    %p55 = por %p53, %p54
    %p57 = scmp.ne.s32.totalorder %s40, %s56
    %p58 = scmp.eq.s32.totalorder %s20, 0
    %p59 = por %p57, %p58
    %s60 = ssub.s32 %s21, %s33
    %p61 = scmp.eq.s32.totalorder %s60, 0
    %s63 = sadd.s32 %s62, 1
    %s64 = scalar_select %p61, %s62, %s63
    %p67 = pneg %p61
    %p68 = scmp.eq.s32.totalorder %s14, 1
    %p69 = por %p67, %p68
    %p70 = scmp.ne.s32.totalorder %s62, %s65
    %p71 = scmp.eq.s32.totalorder %s14, 0
    %p72 = por %p70, %p71
    %p73 = scmp.ne.s32.totalorder %s62, %s65
    %p74 = scmp.eq.s32.totalorder %s19, 1
    %p75 = por %p73, %p74
    %p76 = scmp.ne.s32.totalorder %s65, %s66
    %p77 = scmp.eq.s32.totalorder %s19, 0
    %p78 = por %p76, %p77
    %p79 = scmp.ne.s32.totalorder %s65, %s66
    %p80 = scmp.eq.s32.totalorder %s20, 1
    %p81 = por %p79, %p80
    %p83 = scmp.ne.s32.totalorder %s66, %s82
    %p84 = scmp.eq.s32.totalorder %s20, 0
    %p85 = por %p83, %p84
    %s87 = sadd.s32 %s86, 1
    %p90 = scmp.eq.s32.totalorder %s14, 1
    %p91 = scmp.ne.s32.totalorder %s86, %s88
    %p92 = scmp.eq.s32.totalorder %s14, 0
    %p93 = por %p91, %p92
    %p94 = scmp.ne.s32.totalorder %s86, %s88
    %p95 = scmp.eq.s32.totalorder %s19, 1
    %p96 = por %p94, %p95
    %p97 = scmp.ne.s32.totalorder %s88, %s89
    %p98 = scmp.eq.s32.totalorder %s19, 0
    %p99 = por %p97, %p98
    %p100 = scmp.ne.s32.totalorder %s88, %s89
    %p101 = scmp.eq.s32.totalorder %s20, 1
    %p102 = por %p100, %p101
    %p104 = scmp.ne.s32.totalorder %s89, %s103
    %p105 = scmp.eq.s32.totalorder %s20, 0
    %p106 = por %p104, %p105
    %s108 = sadd.s32 %s107, 1
    %p111 = scmp.eq.s32.totalorder %s14, 1
    %p112 = scmp.ne.s32.totalorder %s107, %s109
    %p113 = scmp.eq.s32.totalorder %s14, 0
    %p114 = por %p112, %p113
    %p115 = scmp.ne.s32.totalorder %s107, %s109
    %p116 = scmp.eq.s32.totalorder %s19, 1
    %p117 = por %p115, %p116
    %p118 = scmp.ne.s32.totalorder %s109, %s110
    %p119 = scmp.eq.s32.totalorder %s19, 0
    %p120 = por %p118, %p119
    %p121 = scmp.ne.s32.totalorder %s109, %s110
    %p122 = scmp.eq.s32.totalorder %s20, 1
    %p123 = por %p121, %p122
    %p125 = scmp.ne.s32.totalorder %s110, %s124
    %p126 = scmp.eq.s32.totalorder %s20, 0
    %p127 = por %p125, %p126
    %s129 = sadd.s32 %s128, 1
    %p132 = scmp.eq.s32.totalorder %s14, 1
    %p133 = scmp.ne.s32.totalorder %s128, %s130
    %p134 = scmp.eq.s32.totalorder %s14, 0
    %p135 = por %p133, %p134
    %p136 = scmp.ne.s32.totalorder %s128, %s130
    %p137 = scmp.eq.s32.totalorder %s19, 1
    %p138 = por %p136, %p137
    %p139 = scmp.ne.s32.totalorder %s130, %s131
    %p140 = scmp.eq.s32.totalorder %s19, 0
    %p141 = por %p139, %p140
    %p142 = scmp.ne.s32.totalorder %s130, %s131
    %p143 = scmp.eq.s32.totalorder %s20, 1
    %p144 = por %p142, %p143
    %p146 = scmp.ne.s32.totalorder %s131, %s145
    %p147 = scmp.eq.s32.totalorder %s20, 0
    %p148 = por %p146, %p147
    %s150 = sadd.s32 %s149, 1
    %p153 = scmp.eq.s32.totalorder %s14, 1
    %p154 = scmp.ne.s32.totalorder %s149, %s151
    %p155 = scmp.eq.s32.totalorder %s14, 0
    %p156 = por %p154, %p155
    %p157 = scmp.ne.s32.totalorder %s149, %s151
    %p158 = scmp.eq.s32.totalorder %s19, 1
    %p159 = por %p157, %p158
    %p160 = scmp.ne.s32.totalorder %s151, %s152
    %p161 = scmp.eq.s32.totalorder %s19, 0
    %p162 = por %p160, %p161
    %p163 = scmp.ne.s32.totalorder %s151, %s152
    %p164 = scmp.eq.s32.totalorder %s20, 1
    %p165 = por %p163, %p164
    %p167 = scmp.ne.s32.totalorder %s152, %s166
    %p168 = scmp.eq.s32.totalorder %s20, 0
    %p169 = por %p167, %p168
    %s171 = sadd.s32 %s170, 1
    %p174 = scmp.eq.s32.totalorder %s14, 1
    %p175 = scmp.ne.s32.totalorder %s170, %s172
    %p176 = scmp.eq.s32.totalorder %s14, 0
    %p177 = por %p175, %p176
    %p178 = scmp.ne.s32.totalorder %s170, %s172
    %p179 = scmp.eq.s32.totalorder %s19, 1
    %p180 = por %p178, %p179
    %p181 = scmp.ne.s32.totalorder %s172, %s173
    %p182 = scmp.eq.s32.totalorder %s19, 0
    %p183 = por %p181, %p182
    %p184 = scmp.ne.s32.totalorder %s172, %s173
    %p185 = scmp.eq.s32.totalorder %s20, 1
    %p186 = por %p184, %p185
    %p188 = scmp.ne.s32.totalorder %s173, %s187
    %p189 = scmp.eq.s32.totalorder %s20, 0
    %p190 = por %p188, %p189
    %s192 = sadd.s32 %s191, 1
    %p195 = scmp.eq.s32.totalorder %s14, 1
    %p196 = scmp.ne.s32.totalorder %s191, %s193
    %p197 = scmp.eq.s32.totalorder %s14, 0
    %p198 = por %p196, %p197
    %p199 = scmp.ne.s32.totalorder %s191, %s193
    %p200 = scmp.eq.s32.totalorder %s19, 1
    %p201 = por %p199, %p200
    %p202 = scmp.ne.s32.totalorder %s193, %s194
    %p203 = scmp.eq.s32.totalorder %s19, 0
    %p204 = por %p202, %p203
    %p205 = scmp.ne.s32.totalorder %s193, %s194
    %p206 = scmp.eq.s32.totalorder %s20, 1
    %p207 = por %p205, %p206
    %p209 = scmp.ne.s32.totalorder %s194, %s208
    %p210 = scmp.eq.s32.totalorder %s20, 0
    %p211 = por %p209, %p210
    %s212 = ssub.s32 %s21, %s33
    %s213 = ssub.s32 %s22, %s29
    %s214 = sor.u32 %s212, %s213
    %p215 = scmp.eq.s32.totalorder %s214, 0
    %s217 = sadd.s32 %s216, 1
    %s218 = scalar_select %p215, %s216, %s217
    %p221 = pneg %p215
    %p222 = scmp.eq.s32.totalorder %s14, 1
    %p223 = por %p221, %p222
    %p224 = scmp.ne.s32.totalorder %s216, %s219
    %p225 = scmp.eq.s32.totalorder %s14, 0
    %p226 = por %p224, %p225
    %p227 = scmp.ne.s32.totalorder %s216, %s219
    %p228 = scmp.eq.s32.totalorder %s19, 1
    %p229 = por %p227, %p228
    %p230 = scmp.ne.s32.totalorder %s219, %s220
    %p231 = scmp.eq.s32.totalorder %s19, 0
    %p232 = por %p230, %p231
    %p233 = scmp.ne.s32.totalorder %s219, %s220
    %p234 = scmp.eq.s32.totalorder %s20, 1
    %p235 = por %p233, %p234
    %p237 = scmp.ne.s32.totalorder %s220, %s236
    %p238 = scmp.eq.s32.totalorder %s20, 0
    %p239 = por %p237, %p238
    %p240 = scmp.le.s32.totalorder 1, %s14
    %p241 = scmp.lt.s32.totalorder %s14, 3
    %p242 = pnand %p240, %p241
    %p243 = pneg %p242
    // Predicated region
    $region9: #{forward.12} parent=5 // pred_check
      _
    $region10: #{forward.12} parent=5 // pred_check_branch
      %245 = sbr.rel (%p242) target = $region12
    $region11: #{forward.12} parent=5 // pred_region
      %s246 = ssub.s32 %s14, 1
      // Predicated region
      $region13: #{forward.12} parent=11 // pred_check
        %p247 = pneg %p99
      $region14: #{forward.12} parent=11 // pred_check_branch
        %249 = sbr.rel (%p247) target = $region16
      $region15: #{forward.12} parent=11 // pred_region
        _
      $region16: #{forward.12} parent=11 // pred_fallthru
        _
      // Predicated region
      $region17: #{forward.12} parent=11 // pred_check
        %p250 = pneg %p120
      $region18: #{forward.12} parent=11 // pred_check_branch
        %252 = sbr.rel (%p250) target = $region20
      $region19: #{forward.12} parent=11 // pred_region
        _
      $region20: #{forward.12} parent=11 // pred_fallthru
        _
      // Predicated region
      $region21: #{forward.12} parent=11 // pred_check
        %p253 = pneg %p141
      $region22: #{forward.12} parent=11 // pred_check_branch
        %255 = sbr.rel (%p253) target = $region24
      $region23: #{forward.12} parent=11 // pred_region
        _
      $region24: #{forward.12} parent=11 // pred_fallthru
        _
      // Predicated region
      $region25: #{forward.12} parent=11 // pred_check
        %p256 = pneg %p162
      $region26: #{forward.12} parent=11 // pred_check_branch
        %258 = sbr.rel (%p256) target = $region28
      $region27: #{forward.12} parent=11 // pred_region
        _
      $region28: #{forward.12} parent=11 // pred_fallthru
        _
      // Predicated region
      $region29: #{forward.12} parent=11 // pred_check
        %p259 = pneg %p183
      $region30: #{forward.12} parent=11 // pred_check_branch
        %261 = sbr.rel (%p259) target = $region32
      $region31: #{forward.12} parent=11 // pred_region
        _
      $region32: #{forward.12} parent=11 // pred_fallthru
        _
      // Predicated region
      $region33: #{forward.12} parent=11 // pred_check
        %p262 = pneg %p204
      $region34: #{forward.12} parent=11 // pred_check_branch
        %264 = sbr.rel (%p262) target = $region36
      $region35: #{forward.12} parent=11 // pred_region
        _
      $region36: #{forward.12} parent=11 // pred_fallthru
        _
    $region12: #{forward.12} parent=5 // pred_fallthru
      _
    %p265 = scmp.lt.s32.totalorder %s14, 2
    // Predicated region
    $region37: #{forward.12} parent=5 // pred_check
      %p266 = pneg %p265
    $region38: #{forward.12} parent=5 // pred_check_branch
      %268 = sbr.rel (%p266) target = $region40
    $region39: #{forward.12} parent=5 // pred_region
      // Predicated region
      $region41: #{forward.12} parent=39 // pred_check
        %p269 = pneg %p46
      $region42: #{forward.12} parent=39 // pred_check_branch
        %271 = sbr.rel (%p269) target = $region44
      $region43: #{forward.12} parent=39 // pred_region
        %p272 = scmp.lt.s32.totalorder %s21, 1
        %s273 = scalar_select %p272, %s21, 1
        %s274 = smul.addr %s273, 8
        %s275 = scalar_lea.vmem %s0, %s274
      $region44: #{forward.12} parent=39 // pred_fallthru
        _
      // Predicated region
      $region45: #{forward.12} parent=39 // pred_check
        %p276 = pneg %p72
      $region46: #{forward.12} parent=39 // pred_check_branch
        %278 = sbr.rel (%p276) target = $region48
      $region47: #{forward.12} parent=39 // pred_region
        %p279 = scmp.lt.s32.totalorder %s21, 1
        %s280 = scalar_select %p279, %s21, 1
        %s281 = scalar_lea.vmem %s1, %s280
      $region48: #{forward.12} parent=39 // pred_fallthru
        _
    $region40: #{forward.12} parent=5 // pred_fallthru
      _
    %p282 = scmp.le.s32.totalorder 1, %s14
    %p283 = scmp.lt.s32.totalorder %s14, 3
    %p284 = pnand %p282, %p283
    %p285 = pneg %p284
    // Predicated region
    $region49: #{forward.12} parent=5 // pred_check
      _
    $region50: #{forward.12} parent=5 // pred_check_branch
      %287 = sbr.rel (%p284) target = $region52
    $region51: #{forward.12} parent=5 // pred_region
      %s288 = ssub.s32 %s14, 1
      %p289 = scmp.lt.s32.totalorder %s23, 1
      %s290 = scalar_select %p289, %s23, 1
      %s291 = smul.addr %s290, 8
      %s292 = scalar_lea.vmem %s0, %s291
      %p293 = pneg %p52
      %p294 = pneg %p49
      %p295 = scmp.lt.s32.totalorder %s23, 1
      %s296 = scalar_select %p295, %s23, 1
      %s297 = scalar_lea.vmem %s1, %s296
      %p298 = pneg %p78
      %p299 = pneg %p75
      %p300 = pneg %p99
      %p301 = pneg %p96
      %p302 = pneg %p120
      %p303 = pneg %p117
      %p304 = pneg %p141
      %p305 = pneg %p138
      %p306 = pneg %p162
      %p307 = pneg %p159
      %p308 = pneg %p183
      %p309 = pneg %p180
      %p310 = pneg %p204
      %p311 = pneg %p201
      %p312 = pneg %p232
      %p313 = pneg %p229
      %p314 = scmp.lt.s32.totalorder %s23, 1
      %s315 = scalar_select %p314, %s23, 1
      %p316 = scmp.lt.s32.totalorder %s24, 0
      %s317 = scalar_select %p316, %s24, 0
      %s318 = sadd.s32 %s317, %s315
      %s319 = smul.addr %s318, 8
      %s320 = scalar_lea.vmem %s8, %s319
      %p321 = scmp.lt.s32.totalorder %s23, 1
      %s322 = scalar_select %p321, %s23, 1
      %s323 = smul.addr %s322, 8
      %s324 = scalar_lea.vmem %s0, %s323
      %p325 = scmp.lt.s32.totalorder %s23, 1
      %s326 = scalar_select %p325, %s23, 1
      %s327 = scalar_lea.vmem %s1, %s326
      %p328 = scmp.lt.s32.totalorder %s23, 1
      %s329 = scalar_select %p328, %s23, 1
      %p330 = scmp.lt.s32.totalorder %s24, 0
      %s331 = scalar_select %p330, %s24, 0
      %s332 = sadd.s32 %s331, %s329
      %s333 = smul.addr %s332, 8
      %s334 = scalar_lea.vmem %s8, %s333
      %s336 = smul.u32 %s24, 8
      %v337 = vld [vmem:[%s324] sm:$0xff]
      %s338 = scalar_lea.vmem %s324, %s336
      %v339 = vld [vmem:[%s338] sm:$0xff]
      %v340 = vld [vmem:[%s2] sm:$0x1]
      %v341 = vld [vmem:[%s3] sm:$0x1]
      %vm342 = vcmask 261120
      %v343 = vsel %vm342, %v337, 0.0
      %344 = vadd.xlane.f32.xlu0 %v343
      %v345 = vpop.xlane.xlu0 %344
      %v346 = vrcp.pop 32.0
      %v347 = vmul.f32 %v345, %v346
      %v348 = vsub.f32 %v337, %v347
      %v349 = vmul.f32 %v348, %v348
      %v350 = vsel %vm342, %v349, 0.0
      %351 = vadd.xlane.f32.xlu0 %v350
      %v352 = vpop.xlane.xlu0 %351
      %v353 = vmul.f32 %v352, %v346
      %v354 = vadd.f32 %v353, 1e-05
      %v355 = vrsqrt.pop %v354
      %v356 = vmul.f32 %v348, %v355
      %v358 = vlaneseq
      %v359 = vshrl.u32 %v358, 7
      %v360 = vsub.s32 0, %v359
      %v361 = vrot.slane %v340, %v360
      %v363 = vmul.f32 %v356, %v361
      %v365 = vlaneseq
      %v366 = vshrl.u32 %v365, 7
      %v367 = vsub.s32 0, %v366
      %v368 = vrot.slane %v341, %v367
      %v370 = vadd.f32 %v363, %v368
      %v371 = vsel %vm342, %v339, 0.0
      %372 = vadd.xlane.f32.xlu0 %v371
      %v373 = vpop.xlane.xlu0 %372
      %v374 = vmul.f32 %v373, %v346
      %v375 = vsub.f32 %v339, %v374
      %v376 = vmul.f32 %v375, %v375
      %v377 = vsel %vm342, %v376, 0.0
      %378 = vadd.xlane.f32.xlu0 %v377
      %v379 = vpop.xlane.xlu0 %378
      %v380 = vmul.f32 %v379, %v346
      %v381 = vadd.f32 %v380, 1e-05
      %v382 = vrsqrt.pop %v381
      %v383 = vmul.f32 %v375, %v382
      %v384 = vmul.f32 %v383, %v361
      %v385 = vadd.f32 %v384, %v368
      %v386 = vpack.c.bf16 %v370, %v370
      %v387 = vpack.c.bf16 %v385, %v385
      %v388 = vld [vmem:[%s4] sm:$0xf]
      %v389 = vld [vmem:[%s4 + $0x4] sm:$0xf]
      %v390 = vld [vmem:[%s4 + $0x8] sm:$0xf]
      %v391 = vld [vmem:[%s4 + $0xc] sm:$0xf]
      %v392 = vld [vmem:[%s5] sm:$0x1]
      %v394 = vlaneseq
      %v395 = vshrl.u32 %v394, 7
      %v396 = vsub.s32 0, %v395
      %v397 = vrot.slane %v392, %v396
      %v403 = vunpack.c.l.b16 %v388
      %v404 = vunpack.c.l.b16 %v389
      %v405 = vunpack.c.l.b16 %v390
      %v406 = vunpack.c.l.b16 %v391
      %v407 = vpack.c.b16 %v404, %v403
      %v408 = vpack.c.b16 %v406, %v405
      %v412 = vsel %vm342, %v387, 0
      %414 = vmatprep.subr.bf16.mxu0 0
      %415 = vmatpush1.bf16.msra.mxu0 %v407
      %416 = vmatprep.subr.bf16.mxu0 0
      %417 = vmatpush1.bf16.msra.mxu0 %v408
      %418 = vmatprep.subr.bf16.mxu0 0
      %419 = vmatpush1.bf16.msra.mxu0 0
      %420 = vmatprep.subr.bf16.mxu0 0
      %421 = vmatpush1.bf16.msra.mxu0 0
      %422 = vmatprep.subr.bf16.mxu0 0
      %423 = vmatpush1.bf16.msra.mxu0 0
      %424 = vmatprep.subr.bf16.mxu0 0
      %425 = vmatpush1.bf16.msra.mxu0 0
      %426 = vmatprep.subr.bf16.mxu0 0
      %427 = vmatpush1.bf16.msra.mxu0 0
      %428 = vmatprep.subr.bf16.mxu0 0
      %429 = vmatpush1.bf16.msra.mxu0 0
      %430 = vmatprep.subr.bf16.mxu0 0
      %431 = vmatpush1.bf16.msra.mxu0 0
      %432 = vmatprep.subr.bf16.mxu0 0
      %433 = vmatpush1.bf16.msra.mxu0 0
      %434 = vmatprep.subr.bf16.mxu0 0
      %435 = vmatpush1.bf16.msra.mxu0 0
      %436 = vmatprep.subr.bf16.mxu0 0
      %437 = vmatpush1.bf16.msra.mxu0 0
      %438 = vmatprep.subr.bf16.mxu0 0
      %439 = vmatpush1.bf16.msra.mxu0 0
      %440 = vmatprep.subr.bf16.mxu0 0
      %441 = vmatpush1.bf16.msra.mxu0 0
      %442 = vmatprep.subr.bf16.mxu0 0
      %443 = vmatpush1.bf16.msra.mxu0 0
      %444 = vmatprep.subr.bf16.mxu0 0
      %445 = vmatpush1.bf16.msra.mxu0 0
      %446 = vmatprep.mubr.bf16.mxu0 0
      %447 = vmatmul.mubr.bf16.gmra.mrb[0].mxu0 %v412
      %v448 = vpop.f32.mrb[0].mxu0
      %v449 = vadd.f32 %v397, %v448
      %v450 = vpop.f32.mrb[0].mxu0
      %v451 = vpop.f32.mrb[0].mxu0
      %v452 = vpop.f32.mrb[0].mxu0
      %453 = vdwg.mxu0
      %454 = vrot.lane.b32.xlu0 %v407, 96
      %v455 = vpop.permute.xlu0 %454
      %456 = vrot.lane.b32.xlu0 %v408, 96
      %v457 = vpop.permute.xlu0 %456
      %460 = vrot.lane.b32.xlu0 %v397, 96
      %v461 = vpop.permute.xlu0 %460
      %v464 = vsel %vm342, %v386, 0
      %466 = vmatprep.subr.bf16.mxu0 0
      %467 = vmatpush1.bf16.msra.mxu0 %v455
      %468 = vmatprep.subr.bf16.mxu0 0
      %469 = vmatpush1.bf16.msra.mxu0 %v457
      %470 = vmatprep.subr.bf16.mxu0 0
      %471 = vmatpush1.bf16.msra.mxu0 0
      %472 = vmatprep.subr.bf16.mxu0 0
      %473 = vmatpush1.bf16.msra.mxu0 0
      %474 = vmatprep.subr.bf16.mxu0 0
      %475 = vmatpush1.bf16.msra.mxu0 0
      %476 = vmatprep.subr.bf16.mxu0 0
      %477 = vmatpush1.bf16.msra.mxu0 0
      %478 = vmatprep.subr.bf16.mxu0 0
      %479 = vmatpush1.bf16.msra.mxu0 0
      %480 = vmatprep.subr.bf16.mxu0 0
      %481 = vmatpush1.bf16.msra.mxu0 0
      %482 = vmatprep.subr.bf16.mxu0 0
      %483 = vmatpush1.bf16.msra.mxu0 0
      %484 = vmatprep.subr.bf16.mxu0 0
      %485 = vmatpush1.bf16.msra.mxu0 0
      %486 = vmatprep.subr.bf16.mxu0 0
      %487 = vmatpush1.bf16.msra.mxu0 0
      %488 = vmatprep.subr.bf16.mxu0 0
      %489 = vmatpush1.bf16.msra.mxu0 0
      %490 = vmatprep.subr.bf16.mxu0 0
      %491 = vmatpush1.bf16.msra.mxu0 0
      %492 = vmatprep.subr.bf16.mxu0 0
      %493 = vmatpush1.bf16.msra.mxu0 0
      %494 = vmatprep.subr.bf16.mxu0 0
      %495 = vmatpush1.bf16.msra.mxu0 0
      %496 = vmatprep.subr.bf16.mxu0 0
      %497 = vmatpush1.bf16.msra.mxu0 0
      %498 = vmatprep.mubr.bf16.mxu0 0
      %499 = vmatmul.mubr.bf16.gmra.mrb[0].mxu0 %v464
      %v500 = vpop.f32.mrb[0].mxu0
      %v501 = vadd.f32 %v461, %v500
      %v502 = vpop.f32.mrb[0].mxu0
      %v503 = vpop.f32.mrb[0].mxu0
      %v504 = vpop.f32.mrb[0].mxu0
      %505 = vdwg.mxu0
      %v506 = vld [vmem:[%s327] sm:$0x1]
      %v507 = vpack.c.bf16 %v449, %v449
      %v508 = vpack.c.bf16 %v501, %v501
      %v510 = vlaneseq
      %v511 = vshrl.u32 %v510, 7
      %v512 = vsub.s32 0, %v511
      %v513 = vrot.slane %v506, %v512
      %vm515 = vcmask 130048
      %v517 = vsel %vm515, %v507, 0
      %v520 = vsel %vm515, %v508, 0
      %522 = vmatprep.subr.bf16.mxu0 0
      %523 = vmatpush1.bf16.xpose.msra.mxu0 %v520
      %524 = vmatprep.subr.bf16.mxu0 0
      %525 = vmatpush1.bf16.xpose.msra.mxu0 0
      %526 = vmatprep.subr.bf16.mxu0 0
      %527 = vmatpush1.bf16.xpose.msra.mxu0 0
      %528 = vmatprep.subr.bf16.mxu0 0
      %529 = vmatpush1.bf16.xpose.msra.mxu0 0
      %530 = vmatprep.subr.bf16.mxu0 0
      %531 = vmatpush1.bf16.xpose.msra.mxu0 0
      %532 = vmatprep.subr.bf16.mxu0 0
      %533 = vmatpush1.bf16.xpose.msra.mxu0 0
      %534 = vmatprep.subr.bf16.mxu0 0
      %535 = vmatpush1.bf16.xpose.msra.mxu0 0
      %536 = vmatprep.subr.bf16.mxu0 0
      %537 = vmatpush1.bf16.xpose.msra.mxu0 0
      %538 = vmatprep.subr.bf16.mxu0 0
      %539 = vmatpush1.bf16.xpose.msra.mxu0 0
      %540 = vmatprep.subr.bf16.mxu0 0
      %541 = vmatpush1.bf16.xpose.msra.mxu0 0
      %542 = vmatprep.subr.bf16.mxu0 0
      %543 = vmatpush1.bf16.xpose.msra.mxu0 0
      %544 = vmatprep.subr.bf16.mxu0 0
      %545 = vmatpush1.bf16.xpose.msra.mxu0 0
      %546 = vmatprep.subr.bf16.mxu0 0
      %547 = vmatpush1.bf16.xpose.msra.mxu0 0
      %548 = vmatprep.subr.bf16.mxu0 0
      %549 = vmatpush1.bf16.xpose.msra.mxu0 0
      %550 = vmatprep.subr.bf16.mxu0 0
      %551 = vmatpush1.bf16.xpose.msra.mxu0 0
      %552 = vmatprep.subr.bf16.mxu0 0
      %553 = vmatpush1.bf16.xpose.msra.mxu0 0
      %554 = vmatprep.mubr.bf16.mxu0 0
      %555 = vmatmul.mubr.bf16.gmra.mrb[0].mxu0 %v517
      %v556 = vpop.f32.mrb[0].mxu0
      %v557 = vadd.f32 %v513, %v556
      %v558 = vpop.f32.mrb[0].mxu0
      %v559 = vpop.f32.mrb[0].mxu0
      %v560 = vpop.f32.mrb[0].mxu0
      %561 = vdwg.mxu0
      %vm562 = vcmask 64512
      %v563 = vsel %vm562, %v557, -inf
      %564 = vmax.xlane.f32.xlu0 %v563
      %v565 = vpop.xlane.xlu0 %564
      %v566 = vsub.f32 %v557, %v565
      %v567 = vmul.f32 %v566, 1.442695
      %v568 = vpow.pop %v567
      %v569 = vsel %vm562, %v568, 0.0
      %570 = vadd.xlane.f32.xlu0 %v569
      %v571 = vpop.xlane.xlu0 %570
      %v572 = vrcp.pop %v571
      %v573 = vmul.f32 %v568, %v572
      %v574 = vpack.c.bf16 %v573, %v573
      %576 = vrot.lane.b32.xlu0 %v508, 96
      %v577 = vpop.permute.xlu0 %576
      %v579 = vsel %vm562, %v574, 0
      %vm581 = vcmask 1043456
      %v583 = vsel %vm581, %v577, 0
      %585 = vmatprep.subr.bf16.mxu0 0
      %586 = vmatpush1.bf16.msra.mxu0 %v583
      %587 = vmatprep.subr.bf16.mxu0 0
      %588 = vmatpush1.bf16.msra.mxu0 0
      %589 = vmatprep.subr.bf16.mxu0 0
      %590 = vmatpush1.bf16.msra.mxu0 0
      %591 = vmatprep.subr.bf16.mxu0 0
      %592 = vmatpush1.bf16.msra.mxu0 0
      %593 = vmatprep.subr.bf16.mxu0 0
      %594 = vmatpush1.bf16.msra.mxu0 0
      %595 = vmatprep.subr.bf16.mxu0 0
      %596 = vmatpush1.bf16.msra.mxu0 0
      %597 = vmatprep.subr.bf16.mxu0 0
      %598 = vmatpush1.bf16.msra.mxu0 0
      %599 = vmatprep.subr.bf16.mxu0 0
      %600 = vmatpush1.bf16.msra.mxu0 0
      %601 = vmatprep.subr.bf16.mxu0 0
      %602 = vmatpush1.bf16.msra.mxu0 0
      %603 = vmatprep.subr.bf16.mxu0 0
      %604 = vmatpush1.bf16.msra.mxu0 0
      %605 = vmatprep.subr.bf16.mxu0 0
      %606 = vmatpush1.bf16.msra.mxu0 0
      %607 = vmatprep.subr.bf16.mxu0 0
      %608 = vmatpush1.bf16.msra.mxu0 0
      %609 = vmatprep.subr.bf16.mxu0 0
      %610 = vmatpush1.bf16.msra.mxu0 0
      %611 = vmatprep.subr.bf16.mxu0 0
      %612 = vmatpush1.bf16.msra.mxu0 0
      %613 = vmatprep.subr.bf16.mxu0 0
      %614 = vmatpush1.bf16.msra.mxu0 0
      %615 = vmatprep.subr.bf16.mxu0 0
      %616 = vmatpush1.bf16.msra.mxu0 0
      %617 = vmatprep.mubr.bf16.mxu0 0
      %618 = vmatmul.mubr.bf16.gmra.mrb[0].mxu0 %v579
      %v619 = vpop.f32.mrb[0].mxu0
      %v620 = vadd.f32 0.0, %v619
      %v621 = vpop.f32.mrb[0].mxu0
      %v622 = vpop.f32.mrb[0].mxu0
      %v623 = vpop.f32.mrb[0].mxu0
      %624 = vdwg.mxu0
      %v625 = vpack.c.bf16 %v620, %v620
      %v626 = vld [vmem:[%s6] sm:$0xf]
      %v627 = vld [vmem:[%s6 + $0x4] sm:$0xf]
      %629 = vrot.lane.b32.xlu0 %v507, 112
      %v630 = vpop.permute.xlu0 %629
      %631 = vrot.lane.b32.xlu0 %v508, 112
      %v632 = vpop.permute.xlu0 %631
      %v634 = vsel %vm515, %v630, 0
      %v637 = vsel %vm515, %v632, 0
      %639 = vmatprep.subr.bf16.mxu0 0
      %640 = vmatpush1.bf16.xpose.msra.mxu0 %v637
      %641 = vmatprep.subr.bf16.mxu0 0
      %642 = vmatpush1.bf16.xpose.msra.mxu0 0
      %643 = vmatprep.subr.bf16.mxu0 0
      %644 = vmatpush1.bf16.xpose.msra.mxu0 0
      %645 = vmatprep.subr.bf16.mxu0 0
      %646 = vmatpush1.bf16.xpose.msra.mxu0 0
      %647 = vmatprep.subr.bf16.mxu0 0
      %648 = vmatpush1.bf16.xpose.msra.mxu0 0
      %649 = vmatprep.subr.bf16.mxu0 0
      %650 = vmatpush1.bf16.xpose.msra.mxu0 0
      %651 = vmatprep.subr.bf16.mxu0 0
      %652 = vmatpush1.bf16.xpose.msra.mxu0 0
      %653 = vmatprep.subr.bf16.mxu0 0
      %654 = vmatpush1.bf16.xpose.msra.mxu0 0
      %655 = vmatprep.subr.bf16.mxu0 0
      %656 = vmatpush1.bf16.xpose.msra.mxu0 0
      %657 = vmatprep.subr.bf16.mxu0 0
      %658 = vmatpush1.bf16.xpose.msra.mxu0 0
      %659 = vmatprep.subr.bf16.mxu0 0
      %660 = vmatpush1.bf16.xpose.msra.mxu0 0
      %661 = vmatprep.subr.bf16.mxu0 0
      %662 = vmatpush1.bf16.xpose.msra.mxu0 0
      %663 = vmatprep.subr.bf16.mxu0 0
      %664 = vmatpush1.bf16.xpose.msra.mxu0 0
      %665 = vmatprep.subr.bf16.mxu0 0
      %666 = vmatpush1.bf16.xpose.msra.mxu0 0
      %667 = vmatprep.subr.bf16.mxu0 0
      %668 = vmatpush1.bf16.xpose.msra.mxu0 0
      %669 = vmatprep.subr.bf16.mxu0 0
      %670 = vmatpush1.bf16.xpose.msra.mxu0 0
      %671 = vmatprep.mubr.bf16.mxu0 0
      %672 = vmatmul.mubr.bf16.gmra.mrb[0].mxu0 %v634
      %v673 = vpop.f32.mrb[0].mxu0
      %v674 = vadd.f32 %v513, %v673
      %v675 = vpop.f32.mrb[0].mxu0
      %v676 = vpop.f32.mrb[0].mxu0
      %v677 = vpop.f32.mrb[0].mxu0
      %678 = vdwg.mxu0
      %v679 = vsel %vm562, %v674, -inf
      %680 = vmax.xlane.f32.xlu0 %v679
      %v681 = vpop.xlane.xlu0 %680
      %v682 = vsub.f32 %v674, %v681
      %v683 = vmul.f32 %v682, 1.442695
      %v684 = vpow.pop %v683
      %v685 = vsel %vm562, %v684, 0.0
      %686 = vadd.xlane.f32.xlu0 %v685
      %v687 = vpop.xlane.xlu0 %686
      %v688 = vrcp.pop %v687
      %v689 = vmul.f32 %v684, %v688
      %v690 = vpack.c.bf16 %v689, %v689
      %691 = vrot.lane.b32.xlu0 %v508, 80
      %v692 = vpop.permute.xlu0 %691
      %v694 = vsel %vm562, %v690, 0
      %v697 = vsel %vm581, %v692, 0
      %699 = vmatprep.subr.bf16.mxu0 0
      %700 = vmatpush1.bf16.msra.mxu0 %v697
      %701 = vmatprep.subr.bf16.mxu0 0
      %702 = vmatpush1.bf16.msra.mxu0 0
      %703 = vmatprep.subr.bf16.mxu0 0
      %704 = vmatpush1.bf16.msra.mxu0 0
      %705 = vmatprep.subr.bf16.mxu0 0
      %706 = vmatpush1.bf16.msra.mxu0 0
      %707 = vmatprep.subr.bf16.mxu0 0
      %708 = vmatpush1.bf16.msra.mxu0 0
      %709 = vmatprep.subr.bf16.mxu0 0
      %710 = vmatpush1.bf16.msra.mxu0 0
      %711 = vmatprep.subr.bf16.mxu0 0
      %712 = vmatpush1.bf16.msra.mxu0 0
      %713 = vmatprep.subr.bf16.mxu0 0
      %714 = vmatpush1.bf16.msra.mxu0 0
      %715 = vmatprep.subr.bf16.mxu0 0
      %716 = vmatpush1.bf16.msra.mxu0 0
      %717 = vmatprep.subr.bf16.mxu0 0
      %718 = vmatpush1.bf16.msra.mxu0 0
      %719 = vmatprep.subr.bf16.mxu0 0
      %720 = vmatpush1.bf16.msra.mxu0 0
      %721 = vmatprep.subr.bf16.mxu0 0
      %722 = vmatpush1.bf16.msra.mxu0 0
      %723 = vmatprep.subr.bf16.mxu0 0
      %724 = vmatpush1.bf16.msra.mxu0 0
      %725 = vmatprep.subr.bf16.mxu0 0
      %726 = vmatpush1.bf16.msra.mxu0 0
      %727 = vmatprep.subr.bf16.mxu0 0
      %728 = vmatpush1.bf16.msra.mxu0 0
      %729 = vmatprep.subr.bf16.mxu0 0
      %730 = vmatpush1.bf16.msra.mxu0 0
      %731 = vmatprep.mubr.bf16.mxu0 0
      %732 = vmatmul.mubr.bf16.gmra.mrb[0].mxu0 %v694
      %v733 = vpop.f32.mrb[0].mxu0
      %v734 = vadd.f32 0.0, %v733
      %v735 = vpop.f32.mrb[0].mxu0
      %v736 = vpop.f32.mrb[0].mxu0
      %v737 = vpop.f32.mrb[0].mxu0
      %738 = vdwg.mxu0
      %v739 = vpack.c.bf16 %v734, %v734
      %v740 = vld [vmem:[%s6 + $0x8] sm:$0xf]
      %v741 = vld [vmem:[%s6 + $0xc] sm:$0xf]
      %v744 = vunpack.c.l.b16 %v740
      %v745 = vunpack.c.l.b16 %v741
      %v746 = vpack.c.b16 %v745, %v744
      %v749 = vsel %vm515, %v739, 0
      %751 = vmatprep.subr.bf16.mxu0 0
      %752 = vmatpush1.bf16.msra.mxu0 %v746
      %753 = vmatprep.subr.bf16.mxu0 0
      %754 = vmatpush1.bf16.msra.mxu0 0
      %755 = vmatprep.subr.bf16.mxu0 0
      %756 = vmatpush1.bf16.msra.mxu0 0
      %757 = vmatprep.subr.bf16.mxu0 0
      %758 = vmatpush1.bf16.msra.mxu0 0
      %759 = vmatprep.subr.bf16.mxu0 0
      %760 = vmatpush1.bf16.msra.mxu0 0
      %761 = vmatprep.subr.bf16.mxu0 0
      %762 = vmatpush1.bf16.msra.mxu0 0
      %763 = vmatprep.subr.bf16.mxu0 0
      %764 = vmatpush1.bf16.msra.mxu0 0
      %765 = vmatprep.subr.bf16.mxu0 0
      %766 = vmatpush1.bf16.msra.mxu0 0
      %767 = vmatprep.subr.bf16.mxu0 0
      %768 = vmatpush1.bf16.msra.mxu0 0
      %769 = vmatprep.subr.bf16.mxu0 0
      %770 = vmatpush1.bf16.msra.mxu0 0
      %771 = vmatprep.subr.bf16.mxu0 0
      %772 = vmatpush1.bf16.msra.mxu0 0
      %773 = vmatprep.subr.bf16.mxu0 0
      %774 = vmatpush1.bf16.msra.mxu0 0
      %775 = vmatprep.subr.bf16.mxu0 0
      %776 = vmatpush1.bf16.msra.mxu0 0
      %777 = vmatprep.subr.bf16.mxu0 0
      %778 = vmatpush1.bf16.msra.mxu0 0
      %779 = vmatprep.subr.bf16.mxu0 0
      %780 = vmatpush1.bf16.msra.mxu0 0
      %781 = vmatprep.subr.bf16.mxu0 0
      %782 = vmatpush1.bf16.msra.mxu0 0
      %783 = vmatprep.mubr.bf16.mxu0 0
      %784 = vmatmul.mubr.bf16.gmra.mrb[0].mxu0 %v749
      %v785 = vpop.f32.mrb[0].mxu0
      %v786 = vadd.f32 0.0, %v785
      %v787 = vpop.f32.mrb[0].mxu0
      %v788 = vpop.f32.mrb[0].mxu0
      %v789 = vpop.f32.mrb[0].mxu0
      %790 = vdwg.mxu0
      %v793 = vunpack.c.l.b16 %v626
      %v794 = vunpack.c.l.b16 %v627
      %v795 = vpack.c.b16 %v794, %v793
      %v798 = vsel %vm515, %v625, 0
      %800 = vmatprep.subr.bf16.mxu0 0
      %801 = vmatpush1.bf16.msra.mxu0 %v795
      %802 = vmatprep.subr.bf16.mxu0 0
      %803 = vmatpush1.bf16.msra.mxu0 0
      %804 = vmatprep.subr.bf16.mxu0 0
      %805 = vmatpush1.bf16.msra.mxu0 0
      %806 = vmatprep.subr.bf16.mxu0 0
      %807 = vmatpush1.bf16.msra.mxu0 0
      %808 = vmatprep.subr.bf16.mxu0 0
      %809 = vmatpush1.bf16.msra.mxu0 0
      %810 = vmatprep.subr.bf16.mxu0 0
      %811 = vmatpush1.bf16.msra.mxu0 0
      %812 = vmatprep.subr.bf16.mxu0 0
      %813 = vmatpush1.bf16.msra.mxu0 0
      %814 = vmatprep.subr.bf16.mxu0 0
      %815 = vmatpush1.bf16.msra.mxu0 0
      %816 = vmatprep.subr.bf16.mxu0 0
      %817 = vmatpush1.bf16.msra.mxu0 0
      %818 = vmatprep.subr.bf16.mxu0 0
      %819 = vmatpush1.bf16.msra.mxu0 0
      %820 = vmatprep.subr.bf16.mxu0 0
      %821 = vmatpush1.bf16.msra.mxu0 0
      %822 = vmatprep.subr.bf16.mxu0 0
      %823 = vmatpush1.bf16.msra.mxu0 0
      %824 = vmatprep.subr.bf16.mxu0 0
      %825 = vmatpush1.bf16.msra.mxu0 0
      %826 = vmatprep.subr.bf16.mxu0 0
      %827 = vmatpush1.bf16.msra.mxu0 0
      %828 = vmatprep.subr.bf16.mxu0 0
      %829 = vmatpush1.bf16.msra.mxu0 0
      %830 = vmatprep.subr.bf16.mxu0 0
      %831 = vmatpush1.bf16.msra.mxu0 0
      %832 = vmatprep.mubr.bf16.mxu0 0
      %833 = vmatmul.mubr.bf16.gmra.mrb[0].mxu0 %v798
      %v834 = vpop.f32.mrb[0].mxu0
      %v835 = vadd.f32 %v786, %v834
      %v836 = vpop.f32.mrb[0].mxu0
      %v837 = vpop.f32.mrb[0].mxu0
      %v838 = vpop.f32.mrb[0].mxu0
      %839 = vdwg.mxu0
      %v840 = vadd.f32 %v339, %v835
      %v841 = vld [vmem:[%s7] sm:$0x1]
      %v843 = vlaneseq
      %v844 = vshrl.u32 %v843, 7
      %v845 = vsub.s32 0, %v844
      %v846 = vrot.slane %v841, %v845
      %v848 = vadd.f32 %v840, %v846
      %849 = vst.msk [vmem:[%s334] sm:$0xff] %vm342, %v848
      %p850 = scmp.lt.s32.totalorder %s23, 1
      %s851 = scalar_select %p850, %s23, 1
      %p852 = scmp.lt.s32.totalorder %s24, 0
      %s853 = scalar_select %p852, %s24, 0
      %s854 = sadd.s32 %s853, %s851
      %s855 = smul.addr %s854, 8
      %s856 = scalar_lea.vmem %s8, %s855
      // Predicated region
      $region53: #{forward.12} parent=51 // pred_check
        %p857 = pneg %p229
      $region54: #{forward.12} parent=51 // pred_check_branch
        %859 = sbr.rel (%p857) target = $region56
      $region55: #{forward.12} parent=51 // pred_region
        _
      $region56: #{forward.12} parent=51 // pred_fallthru
        _
    $region52: #{forward.12} parent=5 // pred_fallthru
      _
    %p860 = scmp.le.s32.totalorder 2, %s14
    // Predicated region
    $region57: #{forward.12} parent=5 // pred_check
      %p861 = pneg %p860
    $region58: #{forward.12} parent=5 // pred_check_branch
      %863 = sbr.rel (%p861) target = $region60
    $region59: #{forward.12} parent=5 // pred_region
      %s864 = ssub.s32 %s14, 2
      // Predicated region
      $region61: #{forward.12} parent=59 // pred_check
        %p865 = pneg %p235
      $region62: #{forward.12} parent=59 // pred_check_branch
        %867 = sbr.rel (%p865) target = $region64
      $region63: #{forward.12} parent=59 // pred_region
        %p868 = scmp.lt.s32.totalorder %s25, 1
        %s869 = scalar_select %p868, %s25, 1
        %p870 = scmp.lt.s32.totalorder %s26, 0
        %s871 = scalar_select %p870, %s26, 0
        %s872 = sadd.s32 %s871, %s869
        %s873 = smul.addr %s872, 8
        %s874 = scalar_lea.vmem %s8, %s873
      $region64: #{forward.12} parent=59 // pred_fallthru
        _
    $region60: #{forward.12} parent=5 // pred_fallthru
      _
  $region6: #{forward.12} parent=0 // loop_footer
    %s18 = sadd.s32 1, %s14
  $region7: #{forward.12} parent=0 // loop_footer_branch
    %13 = sbr.rel target = $region3
  $region8: #{forward.12} parent=0 // loop_exit
    _

// kernel: forward.16
$region0: #{forward.16}
  #allocation0 [shape = 'u32[]', space=smem, size = 0x4, offset = 0x4, fixed_abs, tag = 'smem constant byte address 0x4 - core index']
  #allocation1 [shape = 'u32[144,128]{1,0:T(1,128)}', space=vmem, size = 0x12000, scoped, tag = 'internal scratch']
  %s0 = inlined_call_operand.vmem [shape: f32[16,32], index: 0, kind: input, shape index: {}]
  %s1 = inlined_call_operand.vmem [shape: f32[1,32], index: 1, kind: input, shape index: {}]
  %s2 = inlined_call_operand.vmem [shape: f32[1,32], index: 2, kind: input, shape index: {}]
  %s3 = inlined_call_operand.vmem [shape: f32[16,32], index: 3, kind: output, shape index: {}]
  %s4 = sld [smem:[#allocation0]]
  $region22: #{forward.16} parent=0
    _
  %s6 = ssub.s32 1, %s4
  %s7 = scalar_select 0, %s6, %s4
  // Predicated region
  $region2: #{forward.16} parent=0 // pred_check
    _
  $region3: #{forward.16} parent=0 // pred_check_branch
    %9 = sbr.rel (0) target = $region5
  $region4: #{forward.16} parent=0 // pred_region
    _
  $region5: #{forward.16} parent=0 // pred_fallthru
    _
  // Predicated region
  $region6: #{forward.16} parent=0 // pred_check
    _
  $region7: #{forward.16} parent=0 // pred_check_branch
    %11 = sbr.rel (0) target = $region9
  $region8: #{forward.16} parent=0 // pred_region
    _
  $region9: #{forward.16} parent=0 // pred_fallthru
    _
  // Predicated region
  $region10: #{forward.16} parent=0 // pred_check
    _
  $region11: #{forward.16} parent=0 // pred_check_branch
    %13 = sbr.rel (0) target = $region13
  $region12: #{forward.16} parent=0 // pred_region
    _
  $region13: #{forward.16} parent=0 // pred_fallthru
    _
  %v14 = vld [vmem:[%s0] sm:$0xff]
  %v15 = vld [vmem:[%s0 + $0x8] sm:$0xff]
  %v16 = vld [vmem:[%s1] sm:$0x1]
  %v17 = vld [vmem:[%s2] sm:$0x1]
  %vm18 = vcmask 261120
  %v19 = vsel %vm18, %v14, 0.0
  %20 = vadd.xlane.f32.xlu0 %v19
  %v21 = vpop.xlane.xlu0 %20
  %v22 = vsel %vm18, %v15, 0.0
  %23 = vadd.xlane.f32.xlu0 %v22
  %v24 = vpop.xlane.xlu0 %23
  %v25 = vrcp.pop 32.0
  %v26 = vmul.f32 %v21, %v25
  %v27 = vmul.f32 %v24, %v25
  %v28 = vsub.f32 %v14, %v26
  %v29 = vsub.f32 %v15, %v27
  %v30 = vmul.f32 %v28, %v28
  %v31 = vmul.f32 %v29, %v29
  %v32 = vsel %vm18, %v30, 0.0
  %33 = vadd.xlane.f32.xlu0 %v32
  %v34 = vpop.xlane.xlu0 %33
  %v35 = vsel %vm18, %v31, 0.0
  %36 = vadd.xlane.f32.xlu0 %v35
  %v37 = vpop.xlane.xlu0 %36
  %v38 = vmul.f32 %v34, %v25
  %v39 = vmul.f32 %v37, %v25
  %v40 = vadd.f32 %v38, 1e-12
  %v41 = vadd.f32 %v39, 1e-12
  %v42 = vrsqrt.pop %v40
  %v43 = vrsqrt.pop %v41
  %v44 = vmul.f32 %v28, %v42
  %v45 = vmul.f32 %v29, %v43
  %v47 = vlaneseq
  %v48 = vshrl.u32 %v47, 7
  %v49 = vsub.s32 0, %v48
  %v50 = vrot.slane %v16, %v49
  %v52 = vmul.f32 %v44, %v50
  %v53 = vmul.f32 %v45, %v50
  %v55 = vlaneseq
  %v56 = vshrl.u32 %v55, 7
  %v57 = vsub.s32 0, %v56
  %v58 = vrot.slane %v17, %v57
  %v60 = vadd.f32 %v52, %v58
  %v61 = vadd.f32 %v53, %v58
  %62 = vst.msk [vmem:[%s3] sm:$0xff] %vm18, %v60
  %63 = vst.msk [vmem:[%s3 + $0x8] sm:$0xff] %vm18, %v61
  // Predicated region
  $region14: #{forward.16} parent=0 // pred_check
    _
  $region15: #{forward.16} parent=0 // pred_check_branch
    %65 = sbr.rel (0) target = $region17
  $region16: #{forward.16} parent=0 // pred_region
    _
  $region17: #{forward.16} parent=0 // pred_fallthru
    _
  // Predicated region
  $region18: #{forward.16} parent=0 // pred_check
    _
  $region19: #{forward.16} parent=0 // pred_check_branch
    %67 = sbr.rel (0) target = $region21
  $region20: #{forward.16} parent=0 // pred_region
    _
  $region21: #{forward.16} parent=0 // pred_fallthru
    _

// kernel: forward.19
$region0: #{forward.19}
  #allocation0 [shape = 'u32[]', space=smem, size = 0x4, offset = 0x4, fixed_abs, tag = 'smem constant byte address 0x4 - core index']
  #allocation1 [shape = 'u32[144,128]{1,0:T(1,128)}', space=vmem, size = 0x12000, scoped, tag = 'internal scratch']
  %s0 = inlined_call_operand.vmem [shape: f32[32,32], index: 0, kind: input, shape index: {}]
  %s1 = inlined_call_operand.vmem [shape: bf16[32,128], index: 1, kind: input, shape index: {}]
  %s2 = inlined_call_operand.vmem [shape: f32[32,128], index: 2, kind: output, shape index: {}]
  %s3 = sld [smem:[#allocation0]]
  $region18: #{forward.19} parent=0
    _
  %s5 = ssub.s32 1, %s3
  %s6 = scalar_select 0, %s5, %s3
  // Predicated region
  $region2: #{forward.19} parent=0 // pred_check
    _
  $region3: #{forward.19} parent=0 // pred_check_branch
    %8 = sbr.rel (0) target = $region5
  $region4: #{forward.19} parent=0 // pred_region
    _
  $region5: #{forward.19} parent=0 // pred_fallthru
    _
  // Predicated region
  $region6: #{forward.19} parent=0 // pred_check
    _
  $region7: #{forward.19} parent=0 // pred_check_branch
    %10 = sbr.rel (0) target = $region9
  $region8: #{forward.19} parent=0 // pred_region
    _
  $region9: #{forward.19} parent=0 // pred_fallthru
    _
  %v12 = vld [vmem:[%s0] sm:$0xff]
  %v13 = vld [vmem:[%s0 + $0x8] sm:$0xff]
  %v14 = vld [vmem:[%s0 + $0x10] sm:$0xff]
  %v15 = vld [vmem:[%s0 + $0x18] sm:$0xff]
  %v16 = vpack.c.bf16 %v13, %v12
  %v17 = vpack.c.bf16 %v15, %v14
  %v18 = vld [vmem:[%s1] sm:$0xf]
  %v19 = vld [vmem:[%s1 + $0x4] sm:$0xf]
  %v20 = vld [vmem:[%s1 + $0x8] sm:$0xf]
  %v21 = vld [vmem:[%s1 + $0xc] sm:$0xf]
  %v26 = vunpack.c.l.b16 %v18
  %v27 = vunpack.c.l.b16 %v19
  %v28 = vunpack.c.l.b16 %v20
  %v29 = vunpack.c.l.b16 %v21
  %v30 = vpack.c.b16 %v27, %v26
  %v31 = vpack.c.b16 %v29, %v28
  %vm34 = vcmask 261120
  %v36 = vsel %vm34, %v16, 0
  %v39 = vsel %vm34, %v17, 0
  %41 = vmatprep.subr.bf16.mxu0 0
  %42 = vmatpush1.bf16.msra.mxu0 %v30
  %43 = vmatprep.subr.bf16.mxu0 0
  %44 = vmatpush1.bf16.msra.mxu0 %v31
  %45 = vmatprep.subr.bf16.mxu0 0
  %46 = vmatpush1.bf16.msra.mxu0 0
  %47 = vmatprep.subr.bf16.mxu0 0
  %48 = vmatpush1.bf16.msra.mxu0 0
  %49 = vmatprep.subr.bf16.mxu0 0
  %50 = vmatpush1.bf16.msra.mxu0 0
  %51 = vmatprep.subr.bf16.mxu0 0
  %52 = vmatpush1.bf16.msra.mxu0 0
  %53 = vmatprep.subr.bf16.mxu0 0
  %54 = vmatpush1.bf16.msra.mxu0 0
  %55 = vmatprep.subr.bf16.mxu0 0
  %56 = vmatpush1.bf16.msra.mxu0 0
  %57 = vmatprep.subr.bf16.mxu0 0
  %58 = vmatpush1.bf16.msra.mxu0 0
  %59 = vmatprep.subr.bf16.mxu0 0
  %60 = vmatpush1.bf16.msra.mxu0 0
  %61 = vmatprep.subr.bf16.mxu0 0
  %62 = vmatpush1.bf16.msra.mxu0 0
  %63 = vmatprep.subr.bf16.mxu0 0
  %64 = vmatpush1.bf16.msra.mxu0 0
  %65 = vmatprep.subr.bf16.mxu0 0
  %66 = vmatpush1.bf16.msra.mxu0 0
  %67 = vmatprep.subr.bf16.mxu0 0
  %68 = vmatpush1.bf16.msra.mxu0 0
  %69 = vmatprep.subr.bf16.mxu0 0
  %70 = vmatpush1.bf16.msra.mxu0 0
  %71 = vmatprep.subr.bf16.mxu0 0
  %72 = vmatpush1.bf16.msra.mxu0 0
  %73 = vmatprep.mubr.bf16.mxu0 0
  %74 = vmatmul.mubr.bf16.gmra.mrb[0].mxu0 %v36
  %v75 = vpop.f32.mrb[0].mxu0
  %v76 = vadd.f32 0.0, %v75
  %v77 = vpop.f32.mrb[0].mxu0
  %v78 = vpop.f32.mrb[0].mxu0
  %v79 = vadd.f32 0.0, %v78
  %v80 = vpop.f32.mrb[0].mxu0
  %81 = vmatprep.mubr.bf16.mxu0 0
  %82 = vmatmul.mubr.bf16.gmra.mrb[0].mxu0 %v39
  %v83 = vpop.f32.mrb[0].mxu0
  %v84 = vadd.f32 0.0, %v83
  %v85 = vpop.f32.mrb[0].mxu0
  %v86 = vpop.f32.mrb[0].mxu0
  %v87 = vadd.f32 0.0, %v86
  %v88 = vpop.f32.mrb[0].mxu0
  %89 = vdwg.mxu0
  %90 = vst [vmem:[%s2] sm:$0xff] %v76
  %91 = vst [vmem:[%s2 + $0x8] sm:$0xff] %v79
  %92 = vst [vmem:[%s2 + $0x10] sm:$0xff] %v84
  %93 = vst [vmem:[%s2 + $0x18] sm:$0xff] %v87
  // Predicated region
  $region10: #{forward.19} parent=0 // pred_check
    _
  $region11: #{forward.19} parent=0 // pred_check_branch
    %95 = sbr.rel (0) target = $region13
  $region12: #{forward.19} parent=0 // pred_region
    _
  $region13: #{forward.19} parent=0 // pred_fallthru
    _
  // Predicated region
  $region14: #{forward.19} parent=0 // pred_check
    _
  $region15: #{forward.19} parent=0 // pred_check_branch
    %97 = sbr.rel (0) target = $region17
  $region16: #{forward.19} parent=0 // pred_region
    _
  $region17: #{forward.19} parent=0 // pred_fallthru
    _

// kernel: forward.17
$region0: #{forward.17}
  #allocation0 [shape = 'u32[]', space=smem, size = 0x4, offset = 0x4, fixed_abs, tag = 'smem constant byte address 0x4 - core index']
  #allocation1 [shape = 'u32[144,128]{1,0:T(1,128)}', space=vmem, size = 0x12000, scoped, tag = 'internal scratch']
  %s0 = inlined_call_operand.vmem [shape: f32[2,16,32], index: 0, kind: input, shape index: {}]
  %s1 = inlined_call_operand.vmem [shape: f32[2,1,16], index: 1, kind: input, shape index: {}]
  %s2 = inlined_call_operand.vmem [shape: f32[1,32], index: 2, kind: input, shape index: {}]
  %s3 = inlined_call_operand.vmem [shape: f32[1,32], index: 3, kind: input, shape index: {}, may-alias: {3,7}]
  %s4 = inlined_call_operand.vmem [shape: bf16[32,96], index: 4, kind: input, shape index: {}]
  %s5 = inlined_call_operand.vmem [shape: f32[1,96], index: 5, kind: input, shape index: {}]
  %s6 = inlined_call_operand.vmem [shape: bf16[32,32], index: 6, kind: input, shape index: {}]
  %s7 = inlined_call_operand.vmem [shape: f32[1,32], index: 7, kind: input, shape index: {}, may-alias: {3,7}]
  %s8 = inlined_call_operand.vmem [shape: f32[2,16,32], index: 8, kind: output, shape index: {}]
  %s9 = sld [smem:[#allocation0]]
  $region65: #{forward.17} parent=0
    _
  %s11 = ssub.s32 1, %s9
  %s12 = scalar_select 0, %s11, %s9
  loop: start=0, step=1, limit=4
  $region2: #{forward.17} parent=0 // loop_pre_header
    _
  $region3: #{forward.17} parent=0 // loop_header
    %s14 = sphi 0, %s18
    %p15 = scmp.ge.s32.totalorder %s14, 4
    %s21 = sphi 0, %s33
    %s22 = sphi 0, %s29
    %s23 = sphi 0, %s21
    %s24 = sphi 0, %s22
    %s25 = sphi 0, %s23
    %s26 = sphi 0, %s24
    %s36 = sphi 0, %s38
    %s39 = sphi 0, %s36
    %s40 = sphi 0, %s39
    %s56 = sphi 0, %s40
    %s62 = sphi 0, %s64
    %s65 = sphi 0, %s62
    %s66 = sphi 0, %s65
    %s82 = sphi 0, %s66
    %s86 = sphi 0, %s86
    %s88 = sphi 0, %s86
    %s89 = sphi 0, %s88
    %s103 = sphi 0, %s89
    %s107 = sphi 0, %s107
    %s109 = sphi 0, %s107
    %s110 = sphi 0, %s109
    %s124 = sphi 0, %s110
    %s128 = sphi 0, %s128
    %s130 = sphi 0, %s128
    %s131 = sphi 0, %s130
    %s145 = sphi 0, %s131
    %s149 = sphi 0, %s149
    %s151 = sphi 0, %s149
    %s152 = sphi 0, %s151
    %s166 = sphi 0, %s152
    %s170 = sphi 0, %s170
    %s172 = sphi 0, %s170
    %s173 = sphi 0, %s172
    %s187 = sphi 0, %s173
    %s191 = sphi 0, %s191
    %s193 = sphi 0, %s191
    %s194 = sphi 0, %s193
    %s208 = sphi 0, %s194
    %s216 = sphi 0, %s218
    %s219 = sphi 0, %s216
    %s220 = sphi 0, %s219
    %s236 = sphi 0, %s220
  $region4: #{forward.17} parent=0 // loop_header_branch
    %17 = sbr.rel (%p15) target = $region8
  $region5: #{forward.17} parent=0 // loop_body
    %s19 = ssub.s32 %s14, 1
    %s20 = ssub.s32 %s14, 2
    %s27 = sadd.s32 1, %s22
    %p28 = scmp.ge.s32.totalorder %s27, 1
    %s29 = scalar_select %p28, 0, %s27
    %s30 = sadd.s32 1, %s21
    %s31 = scalar_select %p28, %s30, %s21
    %p32 = scmp.ge.s32.totalorder %s31, 2
    %s33 = scalar_select %p32, 0, %s31
    %s34 = ssub.s32 %s21, %s33
    %p35 = scmp.eq.s32.totalorder %s34, 0
    %s37 = sadd.s32 %s36, 1
    %s38 = scalar_select %p35, %s36, %s37
    %p41 = pneg %p35
    %p42 = scmp.eq.s32.totalorder %s14, 1
    %p43 = por %p41, %p42
    %p44 = scmp.ne.s32.totalorder %s36, %s39
    %p45 = scmp.eq.s32.totalorder %s14, 0
    %p46 = por %p44, %p45
    %p47 = scmp.ne.s32.totalorder %s36, %s39
    %p48 = scmp.eq.s32.totalorder %s19, 1
    %p49 = por %p47, %p48
    %p50 = scmp.ne.s32.totalorder %s39, %s40
    %p51 = scmp.eq.s32.totalorder %s19, 0
    %p52 = por %p50, %p51
    %p53 = scmp.ne.s32.totalorder %s39, %s40
    %p54 = scmp.eq.s32.totalorder %s20, 1
    %p55 = por %p53, %p54
    %p57 = scmp.ne.s32.totalorder %s40, %s56
    %p58 = scmp.eq.s32.totalorder %s20, 0
    %p59 = por %p57, %p58
    %s60 = ssub.s32 %s21, %s33
    %p61 = scmp.eq.s32.totalorder %s60, 0
    %s63 = sadd.s32 %s62, 1
    %s64 = scalar_select %p61, %s62, %s63
    %p67 = pneg %p61
    %p68 = scmp.eq.s32.totalorder %s14, 1
    %p69 = por %p67, %p68
    %p70 = scmp.ne.s32.totalorder %s62, %s65
    %p71 = scmp.eq.s32.totalorder %s14, 0
    %p72 = por %p70, %p71
    %p73 = scmp.ne.s32.totalorder %s62, %s65
    %p74 = scmp.eq.s32.totalorder %s19, 1
    %p75 = por %p73, %p74
    %p76 = scmp.ne.s32.totalorder %s65, %s66
    %p77 = scmp.eq.s32.totalorder %s19, 0
    %p78 = por %p76, %p77
    %p79 = scmp.ne.s32.totalorder %s65, %s66
    %p80 = scmp.eq.s32.totalorder %s20, 1
    %p81 = por %p79, %p80
    %p83 = scmp.ne.s32.totalorder %s66, %s82
    %p84 = scmp.eq.s32.totalorder %s20, 0
    %p85 = por %p83, %p84
    %s87 = sadd.s32 %s86, 1
    %p90 = scmp.eq.s32.totalorder %s14, 1
    %p91 = scmp.ne.s32.totalorder %s86, %s88
    %p92 = scmp.eq.s32.totalorder %s14, 0
    %p93 = por %p91, %p92
    %p94 = scmp.ne.s32.totalorder %s86, %s88
    %p95 = scmp.eq.s32.totalorder %s19, 1
    %p96 = por %p94, %p95
    %p97 = scmp.ne.s32.totalorder %s88, %s89
    %p98 = scmp.eq.s32.totalorder %s19, 0
    %p99 = por %p97, %p98
    %p100 = scmp.ne.s32.totalorder %s88, %s89
    %p101 = scmp.eq.s32.totalorder %s20, 1
    %p102 = por %p100, %p101
    %p104 = scmp.ne.s32.totalorder %s89, %s103
    %p105 = scmp.eq.s32.totalorder %s20, 0
    %p106 = por %p104, %p105
    %s108 = sadd.s32 %s107, 1
    %p111 = scmp.eq.s32.totalorder %s14, 1
    %p112 = scmp.ne.s32.totalorder %s107, %s109
    %p113 = scmp.eq.s32.totalorder %s14, 0
    %p114 = por %p112, %p113
    %p115 = scmp.ne.s32.totalorder %s107, %s109
    %p116 = scmp.eq.s32.totalorder %s19, 1
    %p117 = por %p115, %p116
    %p118 = scmp.ne.s32.totalorder %s109, %s110
    %p119 = scmp.eq.s32.totalorder %s19, 0
    %p120 = por %p118, %p119
    %p121 = scmp.ne.s32.totalorder %s109, %s110
    %p122 = scmp.eq.s32.totalorder %s20, 1
    %p123 = por %p121, %p122
    %p125 = scmp.ne.s32.totalorder %s110, %s124
    %p126 = scmp.eq.s32.totalorder %s20, 0
    %p127 = por %p125, %p126
    %s129 = sadd.s32 %s128, 1
    %p132 = scmp.eq.s32.totalorder %s14, 1
    %p133 = scmp.ne.s32.totalorder %s128, %s130
    %p134 = scmp.eq.s32.totalorder %s14, 0
    %p135 = por %p133, %p134
    %p136 = scmp.ne.s32.totalorder %s128, %s130
    %p137 = scmp.eq.s32.totalorder %s19, 1
    %p138 = por %p136, %p137
    %p139 = scmp.ne.s32.totalorder %s130, %s131
    %p140 = scmp.eq.s32.totalorder %s19, 0
    %p141 = por %p139, %p140
    %p142 = scmp.ne.s32.totalorder %s130, %s131
    %p143 = scmp.eq.s32.totalorder %s20, 1
    %p144 = por %p142, %p143
    %p146 = scmp.ne.s32.totalorder %s131, %s145
    %p147 = scmp.eq.s32.totalorder %s20, 0
    %p148 = por %p146, %p147
    %s150 = sadd.s32 %s149, 1
    %p153 = scmp.eq.s32.totalorder %s14, 1
    %p154 = scmp.ne.s32.totalorder %s149, %s151
    %p155 = scmp.eq.s32.totalorder %s14, 0
    %p156 = por %p154, %p155
    %p157 = scmp.ne.s32.totalorder %s149, %s151
    %p158 = scmp.eq.s32.totalorder %s19, 1
    %p159 = por %p157, %p158
    %p160 = scmp.ne.s32.totalorder %s151, %s152
    %p161 = scmp.eq.s32.totalorder %s19, 0
    %p162 = por %p160, %p161
    %p163 = scmp.ne.s32.totalorder %s151, %s152
    %p164 = scmp.eq.s32.totalorder %s20, 1
    %p165 = por %p163, %p164
    %p167 = scmp.ne.s32.totalorder %s152, %s166
    %p168 = scmp.eq.s32.totalorder %s20, 0
    %p169 = por %p167, %p168
    %s171 = sadd.s32 %s170, 1
    %p174 = scmp.eq.s32.totalorder %s14, 1
    %p175 = scmp.ne.s32.totalorder %s170, %s172
    %p176 = scmp.eq.s32.totalorder %s14, 0
    %p177 = por %p175, %p176
    %p178 = scmp.ne.s32.totalorder %s170, %s172
    %p179 = scmp.eq.s32.totalorder %s19, 1
    %p180 = por %p178, %p179
    %p181 = scmp.ne.s32.totalorder %s172, %s173
    %p182 = scmp.eq.s32.totalorder %s19, 0
    %p183 = por %p181, %p182
    %p184 = scmp.ne.s32.totalorder %s172, %s173
    %p185 = scmp.eq.s32.totalorder %s20, 1
    %p186 = por %p184, %p185
    %p188 = scmp.ne.s32.totalorder %s173, %s187
    %p189 = scmp.eq.s32.totalorder %s20, 0
    %p190 = por %p188, %p189
    %s192 = sadd.s32 %s191, 1
    %p195 = scmp.eq.s32.totalorder %s14, 1
    %p196 = scmp.ne.s32.totalorder %s191, %s193
    %p197 = scmp.eq.s32.totalorder %s14, 0
    %p198 = por %p196, %p197
    %p199 = scmp.ne.s32.totalorder %s191, %s193
    %p200 = scmp.eq.s32.totalorder %s19, 1
    %p201 = por %p199, %p200
    %p202 = scmp.ne.s32.totalorder %s193, %s194
    %p203 = scmp.eq.s32.totalorder %s19, 0
    %p204 = por %p202, %p203
    %p205 = scmp.ne.s32.totalorder %s193, %s194
    %p206 = scmp.eq.s32.totalorder %s20, 1
    %p207 = por %p205, %p206
    %p209 = scmp.ne.s32.totalorder %s194, %s208
    %p210 = scmp.eq.s32.totalorder %s20, 0
    %p211 = por %p209, %p210
    %s212 = ssub.s32 %s21, %s33
    %s213 = ssub.s32 %s22, %s29
    %s214 = sor.u32 %s212, %s213
    %p215 = scmp.eq.s32.totalorder %s214, 0
    %s217 = sadd.s32 %s216, 1
    %s218 = scalar_select %p215, %s216, %s217
    %p221 = pneg %p215
    %p222 = scmp.eq.s32.totalorder %s14, 1
    %p223 = por %p221, %p222
    %p224 = scmp.ne.s32.totalorder %s216, %s219
    %p225 = scmp.eq.s32.totalorder %s14, 0
    %p226 = por %p224, %p225
    %p227 = scmp.ne.s32.totalorder %s216, %s219
    %p228 = scmp.eq.s32.totalorder %s19, 1
    %p229 = por %p227, %p228
    %p230 = scmp.ne.s32.totalorder %s219, %s220
    %p231 = scmp.eq.s32.totalorder %s19, 0
    %p232 = por %p230, %p231
    %p233 = scmp.ne.s32.totalorder %s219, %s220
    %p234 = scmp.eq.s32.totalorder %s20, 1
    %p235 = por %p233, %p234
    %p237 = scmp.ne.s32.totalorder %s220, %s236
    %p238 = scmp.eq.s32.totalorder %s20, 0
    %p239 = por %p237, %p238
    %p240 = scmp.le.s32.totalorder 1, %s14
    %p241 = scmp.lt.s32.totalorder %s14, 3
    %p242 = pnand %p240, %p241
    %p243 = pneg %p242
    // Predicated region
    $region9: #{forward.17} parent=5 // pred_check
      _
    $region10: #{forward.17} parent=5 // pred_check_branch
      %245 = sbr.rel (%p242) target = $region12
    $region11: #{forward.17} parent=5 // pred_region
      %s246 = ssub.s32 %s14, 1
      // Predicated region
      $region13: #{forward.17} parent=11 // pred_check
        %p247 = pneg %p99
      $region14: #{forward.17} parent=11 // pred_check_branch
        %249 = sbr.rel (%p247) target = $region16
      $region15: #{forward.17} parent=11 // pred_region
        _
      $region16: #{forward.17} parent=11 // pred_fallthru
        _
      // Predicated region
      $region17: #{forward.17} parent=11 // pred_check
        %p250 = pneg %p120
      $region18: #{forward.17} parent=11 // pred_check_branch
        %252 = sbr.rel (%p250) target = $region20
      $region19: #{forward.17} parent=11 // pred_region
        _
      $region20: #{forward.17} parent=11 // pred_fallthru
        _
      // Predicated region
      $region21: #{forward.17} parent=11 // pred_check
        %p253 = pneg %p141
      $region22: #{forward.17} parent=11 // pred_check_branch
        %255 = sbr.rel (%p253) target = $region24
      $region23: #{forward.17} parent=11 // pred_region
        _
      $region24: #{forward.17} parent=11 // pred_fallthru
        _
      // Predicated region
      $region25: #{forward.17} parent=11 // pred_check
        %p256 = pneg %p162
      $region26: #{forward.17} parent=11 // pred_check_branch
        %258 = sbr.rel (%p256) target = $region28
      $region27: #{forward.17} parent=11 // pred_region
        _
      $region28: #{forward.17} parent=11 // pred_fallthru
        _
      // Predicated region
      $region29: #{forward.17} parent=11 // pred_check
        %p259 = pneg %p183
      $region30: #{forward.17} parent=11 // pred_check_branch
        %261 = sbr.rel (%p259) target = $region32
      $region31: #{forward.17} parent=11 // pred_region
        _
      $region32: #{forward.17} parent=11 // pred_fallthru
        _
      // Predicated region
      $region33: #{forward.17} parent=11 // pred_check
        %p262 = pneg %p204
      $region34: #{forward.17} parent=11 // pred_check_branch
        %264 = sbr.rel (%p262) target = $region36
      $region35: #{forward.17} parent=11 // pred_region
        _
      $region36: #{forward.17} parent=11 // pred_fallthru
        _
    $region12: #{forward.17} parent=5 // pred_fallthru
      _
    %p265 = scmp.lt.s32.totalorder %s14, 2
    // Predicated region
    $region37: #{forward.17} parent=5 // pred_check
      %p266 = pneg %p265
    $region38: #{forward.17} parent=5 // pred_check_branch
      %268 = sbr.rel (%p266) target = $region40
    $region39: #{forward.17} parent=5 // pred_region
      // Predicated region
      $region41: #{forward.17} parent=39 // pred_check
        %p269 = pneg %p46
      $region42: #{forward.17} parent=39 // pred_check_branch
        %271 = sbr.rel (%p269) target = $region44
      $region43: #{forward.17} parent=39 // pred_region
        %p272 = scmp.lt.s32.totalorder %s21, 1
        %s273 = scalar_select %p272, %s21, 1
        %s274 = smul.addr %s273, 2
        %s275 = smul.addr %s274, 8
        %s276 = scalar_lea.vmem %s0, %s275
      $region44: #{forward.17} parent=39 // pred_fallthru
        _
      // Predicated region
      $region45: #{forward.17} parent=39 // pred_check
        %p277 = pneg %p72
      $region46: #{forward.17} parent=39 // pred_check_branch
        %279 = sbr.rel (%p277) target = $region48
      $region47: #{forward.17} parent=39 // pred_region
        %p280 = scmp.lt.s32.totalorder %s21, 1
        %s281 = scalar_select %p280, %s21, 1
        %s282 = scalar_lea.vmem %s1, %s281
      $region48: #{forward.17} parent=39 // pred_fallthru
        _
    $region40: #{forward.17} parent=5 // pred_fallthru
      _
    %p283 = scmp.le.s32.totalorder 1, %s14
    %p284 = scmp.lt.s32.totalorder %s14, 3
    %p285 = pnand %p283, %p284
    %p286 = pneg %p285
    // Predicated region
    $region49: #{forward.17} parent=5 // pred_check
      _
    $region50: #{forward.17} parent=5 // pred_check_branch
      %288 = sbr.rel (%p285) target = $region52
    $region51: #{forward.17} parent=5 // pred_region
      %s289 = ssub.s32 %s14, 1
      %p290 = scmp.lt.s32.totalorder %s23, 1
      %s291 = scalar_select %p290, %s23, 1
      %s292 = smul.addr %s291, 2
      %s293 = smul.addr %s292, 8
      %s294 = scalar_lea.vmem %s0, %s293
      %p295 = pneg %p52
      %p296 = pneg %p49
      %p297 = scmp.lt.s32.totalorder %s23, 1
      %s298 = scalar_select %p297, %s23, 1
      %s299 = scalar_lea.vmem %s1, %s298
      %p300 = pneg %p78
      %p301 = pneg %p75
      %p302 = pneg %p99
      %p303 = pneg %p96
      %p304 = pneg %p120
      %p305 = pneg %p117
      %p306 = pneg %p141
      %p307 = pneg %p138
      %p308 = pneg %p162
      %p309 = pneg %p159
      %p310 = pneg %p183
      %p311 = pneg %p180
      %p312 = pneg %p204
      %p313 = pneg %p201
      %p314 = pneg %p232
      %p315 = pneg %p229
      %s316 = smul.u32 2, %s24
      %p317 = scmp.lt.s32.totalorder %s23, 1
      %s318 = scalar_select %p317, %s23, 1
      %p319 = scmp.lt.s32.totalorder %s316, 1
      %s320 = scalar_select %p319, %s316, 1
      %s321 = smul.addr %s318, 2
      %s322 = sadd.s32 %s320, %s321
      %s323 = smul.addr %s322, 8
      %s324 = scalar_lea.vmem %s8, %s323
      %p325 = scmp.lt.s32.totalorder %s23, 1
      %s326 = scalar_select %p325, %s23, 1
      %s327 = smul.addr %s326, 2
      %s328 = smul.addr %s327, 8
      %s329 = scalar_lea.vmem %s0, %s328
      %p330 = scmp.lt.s32.totalorder %s23, 1
      %s331 = scalar_select %p330, %s23, 1
      %s332 = scalar_lea.vmem %s1, %s331
      %s333 = smul.u32 2, %s24
      %p334 = scmp.lt.s32.totalorder %s23, 1
      %s335 = scalar_select %p334, %s23, 1
      %p336 = scmp.lt.s32.totalorder %s333, 1
      %s337 = scalar_select %p336, %s333, 1
      %s338 = smul.addr %s335, 2
      %s339 = sadd.s32 %s337, %s338
      %s340 = smul.addr %s339, 8
      %s341 = scalar_lea.vmem %s8, %s340
      %s342 = smul.u32 2, %s24
      %s344 = smul.u32 %s24, 16
      %v345 = vld [vmem:[%s329] sm:$0xff]
      %v346 = vld [vmem:[%s329 + $0x8] sm:$0xff]
      %s347 = scalar_lea.vmem %s329, %s344
      %v348 = vld [vmem:[%s347] sm:$0xff]
      %v349 = vld [vmem:[%s347 + $0x8] sm:$0xff]
      %v350 = vld [vmem:[%s2] sm:$0x1]
      %v351 = vld [vmem:[%s3] sm:$0x1]
      %v352 = vpack.c.bf16 %v346, %v345
      %v353 = vpack.c.bf16 %v349, %v348
      %v354 = vld [vmem:[%s4] sm:$0xf]
      %v355 = vld [vmem:[%s4 + $0x4] sm:$0xf]
      %v356 = vld [vmem:[%s4 + $0x8] sm:$0xf]
      %v357 = vld [vmem:[%s4 + $0xc] sm:$0xf]
      %v358 = vld [vmem:[%s5] sm:$0x1]
      %v360 = vlaneseq
      %v361 = vshrl.u32 %v360, 7
      %v362 = vsub.s32 0, %v361
      %v363 = vrot.slane %v358, %v362
      %v369 = vunpack.c.l.b16 %v354
      %v370 = vunpack.c.l.b16 %v355
      %v371 = vunpack.c.l.b16 %v356
      %v372 = vunpack.c.l.b16 %v357
      %v373 = vpack.c.b16 %v370, %v369
      %v374 = vpack.c.b16 %v372, %v371
      %vm377 = vcmask 261120
      %v379 = vsel %vm377, %v353, 0
      %381 = vmatprep.subr.bf16.mxu0 0
      %382 = vmatpush1.bf16.msra.mxu0 %v373
      %383 = vmatprep.subr.bf16.mxu0 0
      %384 = vmatpush1.bf16.msra.mxu0 %v374
      %385 = vmatprep.subr.bf16.mxu0 0
      %386 = vmatpush1.bf16.msra.mxu0 0
      %387 = vmatprep.subr.bf16.mxu0 0
      %388 = vmatpush1.bf16.msra.mxu0 0
      %389 = vmatprep.subr.bf16.mxu0 0
      %390 = vmatpush1.bf16.msra.mxu0 0
      %391 = vmatprep.subr.bf16.mxu0 0
      %392 = vmatpush1.bf16.msra.mxu0 0
      %393 = vmatprep.subr.bf16.mxu0 0
      %394 = vmatpush1.bf16.msra.mxu0 0
      %395 = vmatprep.subr.bf16.mxu0 0
      %396 = vmatpush1.bf16.msra.mxu0 0
      %397 = vmatprep.subr.bf16.mxu0 0
      %398 = vmatpush1.bf16.msra.mxu0 0
      %399 = vmatprep.subr.bf16.mxu0 0
      %400 = vmatpush1.bf16.msra.mxu0 0
      %401 = vmatprep.subr.bf16.mxu0 0
      %402 = vmatpush1.bf16.msra.mxu0 0
      %403 = vmatprep.subr.bf16.mxu0 0
      %404 = vmatpush1.bf16.msra.mxu0 0
      %405 = vmatprep.subr.bf16.mxu0 0
      %406 = vmatpush1.bf16.msra.mxu0 0
      %407 = vmatprep.subr.bf16.mxu0 0
      %408 = vmatpush1.bf16.msra.mxu0 0
      %409 = vmatprep.subr.bf16.mxu0 0
      %410 = vmatpush1.bf16.msra.mxu0 0
      %411 = vmatprep.subr.bf16.mxu0 0
      %412 = vmatpush1.bf16.msra.mxu0 0
      %413 = vmatprep.mubr.bf16.mxu0 0
      %414 = vmatmul.mubr.bf16.gmra.mrb[0].mxu0 %v379
      %v415 = vpop.f32.mrb[0].mxu0
      %v416 = vadd.f32 %v363, %v415
      %v417 = vpop.f32.mrb[0].mxu0
      %v418 = vpop.f32.mrb[0].mxu0
      %v419 = vadd.f32 %v363, %v418
      %v420 = vpop.f32.mrb[0].mxu0
      %421 = vdwg.mxu0
      %422 = vrot.lane.b32.xlu0 %v373, 96
      %v423 = vpop.permute.xlu0 %422
      %424 = vrot.lane.b32.xlu0 %v374, 96
      %v425 = vpop.permute.xlu0 %424
      %428 = vrot.lane.b32.xlu0 %v363, 96
      %v429 = vpop.permute.xlu0 %428
      %v432 = vsel %vm377, %v352, 0
      %434 = vmatprep.subr.bf16.mxu0 0
      %435 = vmatpush1.bf16.msra.mxu0 %v423
      %436 = vmatprep.subr.bf16.mxu0 0
      %437 = vmatpush1.bf16.msra.mxu0 %v425
      %438 = vmatprep.subr.bf16.mxu0 0
      %439 = vmatpush1.bf16.msra.mxu0 0
      %440 = vmatprep.subr.bf16.mxu0 0
      %441 = vmatpush1.bf16.msra.mxu0 0
      %442 = vmatprep.subr.bf16.mxu0 0
      %443 = vmatpush1.bf16.msra.mxu0 0
      %444 = vmatprep.subr.bf16.mxu0 0
      %445 = vmatpush1.bf16.msra.mxu0 0
      %446 = vmatprep.subr.bf16.mxu0 0
      %447 = vmatpush1.bf16.msra.mxu0 0
      %448 = vmatprep.subr.bf16.mxu0 0
      %449 = vmatpush1.bf16.msra.mxu0 0
      %450 = vmatprep.subr.bf16.mxu0 0
      %451 = vmatpush1.bf16.msra.mxu0 0
      %452 = vmatprep.subr.bf16.mxu0 0
      %453 = vmatpush1.bf16.msra.mxu0 0
      %454 = vmatprep.subr.bf16.mxu0 0
      %455 = vmatpush1.bf16.msra.mxu0 0
      %456 = vmatprep.subr.bf16.mxu0 0
      %457 = vmatpush1.bf16.msra.mxu0 0
      %458 = vmatprep.subr.bf16.mxu0 0
      %459 = vmatpush1.bf16.msra.mxu0 0
      %460 = vmatprep.subr.bf16.mxu0 0
      %461 = vmatpush1.bf16.msra.mxu0 0
      %462 = vmatprep.subr.bf16.mxu0 0
      %463 = vmatpush1.bf16.msra.mxu0 0
      %464 = vmatprep.subr.bf16.mxu0 0
      %465 = vmatpush1.bf16.msra.mxu0 0
      %466 = vmatprep.mubr.bf16.mxu0 0
      %467 = vmatmul.mubr.bf16.gmra.mrb[0].mxu0 %v432
      %v468 = vpop.f32.mrb[0].mxu0
      %v469 = vadd.f32 %v429, %v468
      %v470 = vpop.f32.mrb[0].mxu0
      %v471 = vpop.f32.mrb[0].mxu0
      %v472 = vadd.f32 %v429, %v471
      %v473 = vpop.f32.mrb[0].mxu0
      %474 = vdwg.mxu0
      %v475 = vld [vmem:[%s332] sm:$0x1]
      %v476 = vpack.c.bf16 %v419, %v416
      %v477 = vpack.c.bf16 %v472, %v469
      %v479 = vlaneseq
      %v480 = vshrl.u32 %v479, 7
      %v481 = vsub.s32 0, %v480
      %v482 = vrot.slane %v475, %v481
      %vm484 = vcmask 130048
      %v486 = vsel %vm484, %v476, 0
      %v489 = vsel %vm484, %v477, 0
      %491 = vmatprep.subr.bf16.mxu0 0
      %492 = vmatpush1.bf16.xpose.msra.mxu0 %v489
      %493 = vmatprep.subr.bf16.mxu0 0
      %494 = vmatpush1.bf16.xpose.msra.mxu0 0
      %495 = vmatprep.subr.bf16.mxu0 0
      %496 = vmatpush1.bf16.xpose.msra.mxu0 0
      %497 = vmatprep.subr.bf16.mxu0 0
      %498 = vmatpush1.bf16.xpose.msra.mxu0 0
      %499 = vmatprep.subr.bf16.mxu0 0
      %500 = vmatpush1.bf16.xpose.msra.mxu0 0
      %501 = vmatprep.subr.bf16.mxu0 0
      %502 = vmatpush1.bf16.xpose.msra.mxu0 0
      %503 = vmatprep.subr.bf16.mxu0 0
      %504 = vmatpush1.bf16.xpose.msra.mxu0 0
      %505 = vmatprep.subr.bf16.mxu0 0
      %506 = vmatpush1.bf16.xpose.msra.mxu0 0
      %507 = vmatprep.subr.bf16.mxu0 0
      %508 = vmatpush1.bf16.xpose.msra.mxu0 0
      %509 = vmatprep.subr.bf16.mxu0 0
      %510 = vmatpush1.bf16.xpose.msra.mxu0 0
      %511 = vmatprep.subr.bf16.mxu0 0
      %512 = vmatpush1.bf16.xpose.msra.mxu0 0
      %513 = vmatprep.subr.bf16.mxu0 0
      %514 = vmatpush1.bf16.xpose.msra.mxu0 0
      %515 = vmatprep.subr.bf16.mxu0 0
      %516 = vmatpush1.bf16.xpose.msra.mxu0 0
      %517 = vmatprep.subr.bf16.mxu0 0
      %518 = vmatpush1.bf16.xpose.msra.mxu0 0
      %519 = vmatprep.subr.bf16.mxu0 0
      %520 = vmatpush1.bf16.xpose.msra.mxu0 0
      %521 = vmatprep.subr.bf16.mxu0 0
      %522 = vmatpush1.bf16.xpose.msra.mxu0 0
      %523 = vmatprep.mubr.bf16.mxu0 0
      %524 = vmatmul.mubr.bf16.gmra.mrb[0].mxu0 %v486
      %v525 = vpop.f32.mrb[0].mxu0
      %v526 = vadd.f32 %v482, %v525
      %v527 = vpop.f32.mrb[0].mxu0
      %v528 = vpop.f32.mrb[0].mxu0
      %v529 = vadd.f32 %v482, %v528
      %v530 = vpop.f32.mrb[0].mxu0
      %531 = vdwg.mxu0
      %v532 = vsel %vm484, %v526, -inf
      %533 = vmax.xlane.f32.xlu0 %v532
      %v534 = vpop.xlane.xlu0 %533
      %v535 = vsel %vm484, %v529, -inf
      %536 = vmax.xlane.f32.xlu0 %v535
      %v537 = vpop.xlane.xlu0 %536
      %v538 = vsub.f32 %v526, %v534
      %v539 = vsub.f32 %v529, %v537
      %v540 = vmul.f32 %v538, 1.442695
      %v541 = vpow.pop %v540
      %v542 = vmul.f32 %v539, 1.442695
      %v543 = vpow.pop %v542
      %v544 = vsel %vm484, %v541, 0.0
      %545 = vadd.xlane.f32.xlu0 %v544
      %v546 = vpop.xlane.xlu0 %545
      %v547 = vsel %vm484, %v543, 0.0
      %548 = vadd.xlane.f32.xlu0 %v547
      %v549 = vpop.xlane.xlu0 %548
      %v550 = vrcp.pop %v546
      %v551 = vrcp.pop %v549
      %v552 = vmul.f32 %v541, %v550
      %v553 = vmul.f32 %v543, %v551
      %v554 = vpack.c.bf16 %v553, %v552
      %556 = vrot.lane.b32.xlu0 %v477, 96
      %v557 = vpop.permute.xlu0 %556
      %v560 = vsel %vm484, %v554, 0
      %562 = vmatprep.subr.bf16.mxu0 0
      %563 = vmatpush1.bf16.msra.mxu0 %v557
      %564 = vmatprep.subr.bf16.mxu0 0
      %565 = vmatpush1.bf16.msra.mxu0 0
      %566 = vmatprep.subr.bf16.mxu0 0
      %567 = vmatpush1.bf16.msra.mxu0 0
      %568 = vmatprep.subr.bf16.mxu0 0
      %569 = vmatpush1.bf16.msra.mxu0 0
      %570 = vmatprep.subr.bf16.mxu0 0
      %571 = vmatpush1.bf16.msra.mxu0 0
      %572 = vmatprep.subr.bf16.mxu0 0
      %573 = vmatpush1.bf16.msra.mxu0 0
      %574 = vmatprep.subr.bf16.mxu0 0
      %575 = vmatpush1.bf16.msra.mxu0 0
      %576 = vmatprep.subr.bf16.mxu0 0
      %577 = vmatpush1.bf16.msra.mxu0 0
      %578 = vmatprep.subr.bf16.mxu0 0
      %579 = vmatpush1.bf16.msra.mxu0 0
      %580 = vmatprep.subr.bf16.mxu0 0
      %581 = vmatpush1.bf16.msra.mxu0 0
      %582 = vmatprep.subr.bf16.mxu0 0
      %583 = vmatpush1.bf16.msra.mxu0 0
      %584 = vmatprep.subr.bf16.mxu0 0
      %585 = vmatpush1.bf16.msra.mxu0 0
      %586 = vmatprep.subr.bf16.mxu0 0
      %587 = vmatpush1.bf16.msra.mxu0 0
      %588 = vmatprep.subr.bf16.mxu0 0
      %589 = vmatpush1.bf16.msra.mxu0 0
      %590 = vmatprep.subr.bf16.mxu0 0
      %591 = vmatpush1.bf16.msra.mxu0 0
      %592 = vmatprep.subr.bf16.mxu0 0
      %593 = vmatpush1.bf16.msra.mxu0 0
      %594 = vmatprep.mubr.bf16.mxu0 0
      %595 = vmatmul.mubr.bf16.gmra.mrb[0].mxu0 %v560
      %v596 = vpop.f32.mrb[0].mxu0
      %v597 = vadd.f32 0.0, %v596
      %v598 = vpop.f32.mrb[0].mxu0
      %v599 = vpop.f32.mrb[0].mxu0
      %v600 = vadd.f32 0.0, %v599
      %v601 = vpop.f32.mrb[0].mxu0
      %602 = vdwg.mxu0
      %v603 = vpack.c.bf16 %v600, %v597
      %v604 = vld [vmem:[%s6] sm:$0xf]
      %v605 = vld [vmem:[%s6 + $0x4] sm:$0xf]
      %607 = vrot.lane.b32.xlu0 %v476, 112
      %v608 = vpop.permute.xlu0 %607
      %609 = vrot.lane.b32.xlu0 %v477, 112
      %v610 = vpop.permute.xlu0 %609
      %v612 = vsel %vm484, %v608, 0
      %v615 = vsel %vm484, %v610, 0
      %617 = vmatprep.subr.bf16.mxu0 0
      %618 = vmatpush1.bf16.xpose.msra.mxu0 %v615
      %619 = vmatprep.subr.bf16.mxu0 0
      %620 = vmatpush1.bf16.xpose.msra.mxu0 0
      %621 = vmatprep.subr.bf16.mxu0 0
      %622 = vmatpush1.bf16.xpose.msra.mxu0 0
      %623 = vmatprep.subr.bf16.mxu0 0
      %624 = vmatpush1.bf16.xpose.msra.mxu0 0
      %625 = vmatprep.subr.bf16.mxu0 0
      %626 = vmatpush1.bf16.xpose.msra.mxu0 0
      %627 = vmatprep.subr.bf16.mxu0 0
      %628 = vmatpush1.bf16.xpose.msra.mxu0 0
      %629 = vmatprep.subr.bf16.mxu0 0
      %630 = vmatpush1.bf16.xpose.msra.mxu0 0
      %631 = vmatprep.subr.bf16.mxu0 0
      %632 = vmatpush1.bf16.xpose.msra.mxu0 0
      %633 = vmatprep.subr.bf16.mxu0 0
      %634 = vmatpush1.bf16.xpose.msra.mxu0 0
      %635 = vmatprep.subr.bf16.mxu0 0
      %636 = vmatpush1.bf16.xpose.msra.mxu0 0
      %637 = vmatprep.subr.bf16.mxu0 0
      %638 = vmatpush1.bf16.xpose.msra.mxu0 0
      %639 = vmatprep.subr.bf16.mxu0 0
      %640 = vmatpush1.bf16.xpose.msra.mxu0 0
      %641 = vmatprep.subr.bf16.mxu0 0
      %642 = vmatpush1.bf16.xpose.msra.mxu0 0
      %643 = vmatprep.subr.bf16.mxu0 0
      %644 = vmatpush1.bf16.xpose.msra.mxu0 0
      %645 = vmatprep.subr.bf16.mxu0 0
      %646 = vmatpush1.bf16.xpose.msra.mxu0 0
      %647 = vmatprep.subr.bf16.mxu0 0
      %648 = vmatpush1.bf16.xpose.msra.mxu0 0
      %649 = vmatprep.mubr.bf16.mxu0 0
      %650 = vmatmul.mubr.bf16.gmra.mrb[0].mxu0 %v612
      %v651 = vpop.f32.mrb[0].mxu0
      %v652 = vadd.f32 %v482, %v651
      %v653 = vpop.f32.mrb[0].mxu0
      %v654 = vpop.f32.mrb[0].mxu0
      %v655 = vadd.f32 %v482, %v654
      %v656 = vpop.f32.mrb[0].mxu0
      %657 = vdwg.mxu0
      %v658 = vsel %vm484, %v652, -inf
      %659 = vmax.xlane.f32.xlu0 %v658
      %v660 = vpop.xlane.xlu0 %659
      %v661 = vsel %vm484, %v655, -inf
      %662 = vmax.xlane.f32.xlu0 %v661
      %v663 = vpop.xlane.xlu0 %662
      %v664 = vsub.f32 %v652, %v660
      %v665 = vsub.f32 %v655, %v663
      %v666 = vmul.f32 %v664, 1.442695
      %v667 = vpow.pop %v666
      %v668 = vmul.f32 %v665, 1.442695
      %v669 = vpow.pop %v668
      %v670 = vsel %vm484, %v667, 0.0
      %671 = vadd.xlane.f32.xlu0 %v670
      %v672 = vpop.xlane.xlu0 %671
      %v673 = vsel %vm484, %v669, 0.0
      %674 = vadd.xlane.f32.xlu0 %v673
      %v675 = vpop.xlane.xlu0 %674
      %v676 = vrcp.pop %v672
      %v677 = vrcp.pop %v675
      %v678 = vmul.f32 %v667, %v676
      %v679 = vmul.f32 %v669, %v677
      %v680 = vpack.c.bf16 %v679, %v678
      %681 = vrot.lane.b32.xlu0 %v477, 80
      %v682 = vpop.permute.xlu0 %681
      %v685 = vsel %vm484, %v680, 0
      %687 = vmatprep.subr.bf16.mxu0 0
      %688 = vmatpush1.bf16.msra.mxu0 %v682
      %689 = vmatprep.subr.bf16.mxu0 0
      %690 = vmatpush1.bf16.msra.mxu0 0
      %691 = vmatprep.subr.bf16.mxu0 0
      %692 = vmatpush1.bf16.msra.mxu0 0
      %693 = vmatprep.subr.bf16.mxu0 0
      %694 = vmatpush1.bf16.msra.mxu0 0
      %695 = vmatprep.subr.bf16.mxu0 0
      %696 = vmatpush1.bf16.msra.mxu0 0
      %697 = vmatprep.subr.bf16.mxu0 0
      %698 = vmatpush1.bf16.msra.mxu0 0
      %699 = vmatprep.subr.bf16.mxu0 0
      %700 = vmatpush1.bf16.msra.mxu0 0
      %701 = vmatprep.subr.bf16.mxu0 0
      %702 = vmatpush1.bf16.msra.mxu0 0
      %703 = vmatprep.subr.bf16.mxu0 0
      %704 = vmatpush1.bf16.msra.mxu0 0
      %705 = vmatprep.subr.bf16.mxu0 0
      %706 = vmatpush1.bf16.msra.mxu0 0
      %707 = vmatprep.subr.bf16.mxu0 0
      %708 = vmatpush1.bf16.msra.mxu0 0
      %709 = vmatprep.subr.bf16.mxu0 0
      %710 = vmatpush1.bf16.msra.mxu0 0
      %711 = vmatprep.subr.bf16.mxu0 0
      %712 = vmatpush1.bf16.msra.mxu0 0
      %713 = vmatprep.subr.bf16.mxu0 0
      %714 = vmatpush1.bf16.msra.mxu0 0
      %715 = vmatprep.subr.bf16.mxu0 0
      %716 = vmatpush1.bf16.msra.mxu0 0
      %717 = vmatprep.subr.bf16.mxu0 0
      %718 = vmatpush1.bf16.msra.mxu0 0
      %719 = vmatprep.mubr.bf16.mxu0 0
      %720 = vmatmul.mubr.bf16.gmra.mrb[0].mxu0 %v685
      %v721 = vpop.f32.mrb[0].mxu0
      %v722 = vadd.f32 0.0, %v721
      %v723 = vpop.f32.mrb[0].mxu0
      %v724 = vpop.f32.mrb[0].mxu0
      %v725 = vadd.f32 0.0, %v724
      %v726 = vpop.f32.mrb[0].mxu0
      %727 = vdwg.mxu0
      %v728 = vpack.c.bf16 %v725, %v722
      %v729 = vld [vmem:[%s6 + $0x8] sm:$0xf]
      %v730 = vld [vmem:[%s6 + $0xc] sm:$0xf]
      %v733 = vunpack.c.l.b16 %v729
      %v734 = vunpack.c.l.b16 %v730
      %v735 = vpack.c.b16 %v734, %v733
      %v738 = vsel %vm484, %v728, 0
      %740 = vmatprep.subr.bf16.mxu0 0
      %741 = vmatpush1.bf16.msra.mxu0 %v735
      %742 = vmatprep.subr.bf16.mxu0 0
      %743 = vmatpush1.bf16.msra.mxu0 0
      %744 = vmatprep.subr.bf16.mxu0 0
      %745 = vmatpush1.bf16.msra.mxu0 0
      %746 = vmatprep.subr.bf16.mxu0 0
      %747 = vmatpush1.bf16.msra.mxu0 0
      %748 = vmatprep.subr.bf16.mxu0 0
      %749 = vmatpush1.bf16.msra.mxu0 0
      %750 = vmatprep.subr.bf16.mxu0 0
      %751 = vmatpush1.bf16.msra.mxu0 0
      %752 = vmatprep.subr.bf16.mxu0 0
      %753 = vmatpush1.bf16.msra.mxu0 0
      %754 = vmatprep.subr.bf16.mxu0 0
      %755 = vmatpush1.bf16.msra.mxu0 0
      %756 = vmatprep.subr.bf16.mxu0 0
      %757 = vmatpush1.bf16.msra.mxu0 0
      %758 = vmatprep.subr.bf16.mxu0 0
      %759 = vmatpush1.bf16.msra.mxu0 0
      %760 = vmatprep.subr.bf16.mxu0 0
      %761 = vmatpush1.bf16.msra.mxu0 0
      %762 = vmatprep.subr.bf16.mxu0 0
      %763 = vmatpush1.bf16.msra.mxu0 0
      %764 = vmatprep.subr.bf16.mxu0 0
      %765 = vmatpush1.bf16.msra.mxu0 0
      %766 = vmatprep.subr.bf16.mxu0 0
      %767 = vmatpush1.bf16.msra.mxu0 0
      %768 = vmatprep.subr.bf16.mxu0 0
      %769 = vmatpush1.bf16.msra.mxu0 0
      %770 = vmatprep.subr.bf16.mxu0 0
      %771 = vmatpush1.bf16.msra.mxu0 0
      %772 = vmatprep.mubr.bf16.mxu0 0
      %773 = vmatmul.mubr.bf16.gmra.mrb[0].mxu0 %v738
      %v774 = vpop.f32.mrb[0].mxu0
      %v775 = vadd.f32 0.0, %v774
      %v776 = vpop.f32.mrb[0].mxu0
      %v777 = vpop.f32.mrb[0].mxu0
      %v778 = vadd.f32 0.0, %v777
      %v779 = vpop.f32.mrb[0].mxu0
      %780 = vdwg.mxu0
      %v783 = vunpack.c.l.b16 %v604
      %v784 = vunpack.c.l.b16 %v605
      %v785 = vpack.c.b16 %v784, %v783
      %v788 = vsel %vm484, %v603, 0
      %790 = vmatprep.subr.bf16.mxu0 0
      %791 = vmatpush1.bf16.msra.mxu0 %v785
      %792 = vmatprep.subr.bf16.mxu0 0
      %793 = vmatpush1.bf16.msra.mxu0 0
      %794 = vmatprep.subr.bf16.mxu0 0
      %795 = vmatpush1.bf16.msra.mxu0 0
      %796 = vmatprep.subr.bf16.mxu0 0
      %797 = vmatpush1.bf16.msra.mxu0 0
      %798 = vmatprep.subr.bf16.mxu0 0
      %799 = vmatpush1.bf16.msra.mxu0 0
      %800 = vmatprep.subr.bf16.mxu0 0
      %801 = vmatpush1.bf16.msra.mxu0 0
      %802 = vmatprep.subr.bf16.mxu0 0
      %803 = vmatpush1.bf16.msra.mxu0 0
      %804 = vmatprep.subr.bf16.mxu0 0
      %805 = vmatpush1.bf16.msra.mxu0 0
      %806 = vmatprep.subr.bf16.mxu0 0
      %807 = vmatpush1.bf16.msra.mxu0 0
      %808 = vmatprep.subr.bf16.mxu0 0
      %809 = vmatpush1.bf16.msra.mxu0 0
      %810 = vmatprep.subr.bf16.mxu0 0
      %811 = vmatpush1.bf16.msra.mxu0 0
      %812 = vmatprep.subr.bf16.mxu0 0
      %813 = vmatpush1.bf16.msra.mxu0 0
      %814 = vmatprep.subr.bf16.mxu0 0
      %815 = vmatpush1.bf16.msra.mxu0 0
      %816 = vmatprep.subr.bf16.mxu0 0
      %817 = vmatpush1.bf16.msra.mxu0 0
      %818 = vmatprep.subr.bf16.mxu0 0
      %819 = vmatpush1.bf16.msra.mxu0 0
      %820 = vmatprep.subr.bf16.mxu0 0
      %821 = vmatpush1.bf16.msra.mxu0 0
      %822 = vmatprep.mubr.bf16.mxu0 0
      %823 = vmatmul.mubr.bf16.gmra.mrb[0].mxu0 %v788
      %v824 = vpop.f32.mrb[0].mxu0
      %v825 = vadd.f32 %v775, %v824
      %v826 = vpop.f32.mrb[0].mxu0
      %v827 = vpop.f32.mrb[0].mxu0
      %v828 = vadd.f32 %v778, %v827
      %v829 = vpop.f32.mrb[0].mxu0
      %830 = vdwg.mxu0
      %v831 = vadd.f32 %v348, %v825
      %v832 = vadd.f32 %v349, %v828
      %v833 = vld [vmem:[%s7] sm:$0x1]
      %v835 = vlaneseq
      %v836 = vshrl.u32 %v835, 7
      %v837 = vsub.s32 0, %v836
      %v838 = vrot.slane %v833, %v837
      %v840 = vadd.f32 %v831, %v838
      %v841 = vadd.f32 %v832, %v838
      %v842 = vsel %vm377, %v840, 0.0
      %843 = vadd.xlane.f32.xlu0 %v842
      %v844 = vpop.xlane.xlu0 %843
      %v845 = vsel %vm377, %v841, 0.0
      %846 = vadd.xlane.f32.xlu0 %v845
      %v847 = vpop.xlane.xlu0 %846
      %v848 = vrcp.pop 32.0
      %v849 = vmul.f32 %v844, %v848
      %v850 = vmul.f32 %v847, %v848
      %v851 = vsub.f32 %v840, %v849
      %v852 = vsub.f32 %v841, %v850
      %v853 = vmul.f32 %v851, %v851
      %v854 = vmul.f32 %v852, %v852
      %v855 = vsel %vm377, %v853, 0.0
      %856 = vadd.xlane.f32.xlu0 %v855
      %v857 = vpop.xlane.xlu0 %856
      %v858 = vsel %vm377, %v854, 0.0
      %859 = vadd.xlane.f32.xlu0 %v858
      %v860 = vpop.xlane.xlu0 %859
      %v861 = vmul.f32 %v857, %v848
      %v862 = vmul.f32 %v860, %v848
      %v863 = vadd.f32 %v861, 1e-12
      %v864 = vadd.f32 %v862, 1e-12
      %v865 = vrsqrt.pop %v863
      %v866 = vrsqrt.pop %v864
      %v867 = vmul.f32 %v851, %v865
      %v868 = vmul.f32 %v852, %v866
      %v870 = vlaneseq
      %v871 = vshrl.u32 %v870, 7
      %v872 = vsub.s32 0, %v871
      %v873 = vrot.slane %v350, %v872
      %v875 = vmul.f32 %v867, %v873
      %v876 = vmul.f32 %v868, %v873
      %v878 = vlaneseq
      %v879 = vshrl.u32 %v878, 7
      %v880 = vsub.s32 0, %v879
      %v881 = vrot.slane %v351, %v880
      %v883 = vadd.f32 %v875, %v881
      %v884 = vadd.f32 %v876, %v881
      %885 = vst.msk [vmem:[%s341] sm:$0xff] %vm377, %v883
      %886 = vst.msk [vmem:[%s341 + $0x8] sm:$0xff] %vm377, %v884
      %s887 = smul.u32 2, %s24
      %p888 = scmp.lt.s32.totalorder %s23, 1
      %s889 = scalar_select %p888, %s23, 1
      %p890 = scmp.lt.s32.totalorder %s887, 1
      %s891 = scalar_select %p890, %s887, 1
      %s892 = smul.addr %s889, 2
      %s893 = sadd.s32 %s891, %s892
      %s894 = smul.addr %s893, 8
      %s895 = scalar_lea.vmem %s8, %s894
      // Predicated region
      $region53: #{forward.17} parent=51 // pred_check
        %p896 = pneg %p229
      $region54: #{forward.17} parent=51 // pred_check_branch
        %898 = sbr.rel (%p896) target = $region56
      $region55: #{forward.17} parent=51 // pred_region
        %s899 = smul.u32 2, %s24
      $region56: #{forward.17} parent=51 // pred_fallthru
        _
    $region52: #{forward.17} parent=5 // pred_fallthru
      _
    %p900 = scmp.le.s32.totalorder 2, %s14
    // Predicated region
    $region57: #{forward.17} parent=5 // pred_check
      %p901 = pneg %p900
    $region58: #{forward.17} parent=5 // pred_check_branch
      %903 = sbr.rel (%p901) target = $region60
    $region59: #{forward.17} parent=5 // pred_region
      %s904 = ssub.s32 %s14, 2
      // Predicated region
      $region61: #{forward.17} parent=59 // pred_check
        %p905 = pneg %p235
      $region62: #{forward.17} parent=59 // pred_check_branch
        %907 = sbr.rel (%p905) target = $region64
      $region63: #{forward.17} parent=59 // pred_region
        %s908 = smul.u32 2, %s26
        %p909 = scmp.lt.s32.totalorder %s25, 1
        %s910 = scalar_select %p909, %s25, 1
        %p911 = scmp.lt.s32.totalorder %s908, 1
        %s912 = scalar_select %p911, %s908, 1
        %s913 = smul.addr %s910, 2
        %s914 = sadd.s32 %s912, %s913
        %s915 = smul.addr %s914, 8
        %s916 = scalar_lea.vmem %s8, %s915
      $region64: #{forward.17} parent=59 // pred_fallthru
        _
    $region60: #{forward.17} parent=5 // pred_fallthru
      _
  $region6: #{forward.17} parent=0 // loop_footer
    %s18 = sadd.s32 1, %s14
  $region7: #{forward.17} parent=0 // loop_footer_branch
    %13 = sbr.rel target = $region3
  $region8: #{forward.17} parent=0 // loop_exit
    _

// kernel: forward.18
$region0: #{forward.18}
  #allocation0 [shape = 'u32[]', space=smem, size = 0x4, offset = 0x4, fixed_abs, tag = 'smem constant byte address 0x4 - core index']
  #allocation1 [shape = 'u32[144,128]{1,0:T(1,128)}', space=vmem, size = 0x12000, scoped, tag = 'internal scratch']
  %s0 = inlined_call_operand.vmem [shape: f32[32,32], index: 0, kind: input, shape index: {}]
  %s1 = inlined_call_operand.vmem [shape: f32[1,32], index: 1, kind: input, shape index: {}]
  %s2 = inlined_call_operand.vmem [shape: f32[1,32], index: 2, kind: input, shape index: {}, may-alias: {2,6}]
  %s3 = inlined_call_operand.vmem [shape: bf16[32,64], index: 3, kind: input, shape index: {}]
  %s4 = inlined_call_operand.vmem [shape: f32[1,64], index: 4, kind: input, shape index: {}]
  %s5 = inlined_call_operand.vmem [shape: bf16[64,32], index: 5, kind: input, shape index: {}]
  %s6 = inlined_call_operand.vmem [shape: f32[1,32], index: 6, kind: input, shape index: {}, may-alias: {2,6}]
  %s7 = inlined_call_operand.vmem [shape: f32[32,32], index: 7, kind: output, shape index: {}]
  %s8 = sld [smem:[#allocation0]]
  $region38: #{forward.18} parent=0
    _
  %s10 = ssub.s32 1, %s8
  %s11 = scalar_select 0, %s10, %s8
  // Predicated region
  $region2: #{forward.18} parent=0 // pred_check
    _
  $region3: #{forward.18} parent=0 // pred_check_branch
    %13 = sbr.rel (0) target = $region5
  $region4: #{forward.18} parent=0 // pred_region
    _
  $region5: #{forward.18} parent=0 // pred_fallthru
    _
  // Predicated region
  $region6: #{forward.18} parent=0 // pred_check
    _
  $region7: #{forward.18} parent=0 // pred_check_branch
    %15 = sbr.rel (0) target = $region9
  $region8: #{forward.18} parent=0 // pred_region
    _
  $region9: #{forward.18} parent=0 // pred_fallthru
    _
  // Predicated region
  $region10: #{forward.18} parent=0 // pred_check
    _
  $region11: #{forward.18} parent=0 // pred_check_branch
    %17 = sbr.rel (0) target = $region13
  $region12: #{forward.18} parent=0 // pred_region
    _
  $region13: #{forward.18} parent=0 // pred_fallthru
    _
  // Predicated region
  $region14: #{forward.18} parent=0 // pred_check
    _
  $region15: #{forward.18} parent=0 // pred_check_branch
    %19 = sbr.rel (0) target = $region17
  $region16: #{forward.18} parent=0 // pred_region
    _
  $region17: #{forward.18} parent=0 // pred_fallthru
    _
  // Predicated region
  $region18: #{forward.18} parent=0 // pred_check
    _
  $region19: #{forward.18} parent=0 // pred_check_branch
    %21 = sbr.rel (0) target = $region21
  $region20: #{forward.18} parent=0 // pred_region
    _
  $region21: #{forward.18} parent=0 // pred_fallthru
    _
  // Predicated region
  $region22: #{forward.18} parent=0 // pred_check
    _
  $region23: #{forward.18} parent=0 // pred_check_branch
    %23 = sbr.rel (0) target = $region25
  $region24: #{forward.18} parent=0 // pred_region
    _
  $region25: #{forward.18} parent=0 // pred_fallthru
    _
  // Predicated region
  $region26: #{forward.18} parent=0 // pred_check
    _
  $region27: #{forward.18} parent=0 // pred_check_branch
    %25 = sbr.rel (0) target = $region29
  $region28: #{forward.18} parent=0 // pred_region
    _
  $region29: #{forward.18} parent=0 // pred_fallthru
    _
  %v27 = vld [vmem:[%s0] sm:$0xff]
  %v28 = vld [vmem:[%s0 + $0x8] sm:$0xff]
  %v29 = vld [vmem:[%s0 + $0x10] sm:$0xff]
  %v30 = vld [vmem:[%s0 + $0x18] sm:$0xff]
  %v31 = vpack.c.bf16 %v28, %v27
  %v32 = vpack.c.bf16 %v30, %v29
  %v33 = vld [vmem:[%s3] sm:$0xf]
  %v34 = vld [vmem:[%s3 + $0x4] sm:$0xf]
  %v35 = vld [vmem:[%s3 + $0x8] sm:$0xf]
  %v36 = vld [vmem:[%s3 + $0xc] sm:$0xf]
  %v37 = vld [vmem:[%s4] sm:$0x1]
  %v39 = vlaneseq
  %v40 = vshrl.u32 %v39, 7
  %v41 = vsub.s32 0, %v40
  %v42 = vrot.slane %v37, %v41
  %v48 = vunpack.c.l.b16 %v33
  %v49 = vunpack.c.l.b16 %v34
  %v50 = vunpack.c.l.b16 %v35
  %v51 = vunpack.c.l.b16 %v36
  %v52 = vpack.c.b16 %v49, %v48
  %v53 = vpack.c.b16 %v51, %v50
  %vm56 = vcmask 261120
  %v58 = vsel %vm56, %v31, 0
  %v61 = vsel %vm56, %v32, 0
  %63 = vmatprep.subr.bf16.mxu0 0
  %64 = vmatpush1.bf16.msra.mxu0 %v52
  %65 = vmatprep.subr.bf16.mxu0 0
  %66 = vmatpush1.bf16.msra.mxu0 %v53
  %67 = vmatprep.subr.bf16.mxu0 0
  %68 = vmatpush1.bf16.msra.mxu0 0
  %69 = vmatprep.subr.bf16.mxu0 0
  %70 = vmatpush1.bf16.msra.mxu0 0
  %71 = vmatprep.subr.bf16.mxu0 0
  %72 = vmatpush1.bf16.msra.mxu0 0
  %73 = vmatprep.subr.bf16.mxu0 0
  %74 = vmatpush1.bf16.msra.mxu0 0
  %75 = vmatprep.subr.bf16.mxu0 0
  %76 = vmatpush1.bf16.msra.mxu0 0
  %77 = vmatprep.subr.bf16.mxu0 0
  %78 = vmatpush1.bf16.msra.mxu0 0
  %79 = vmatprep.subr.bf16.mxu0 0
  %80 = vmatpush1.bf16.msra.mxu0 0
  %81 = vmatprep.subr.bf16.mxu0 0
  %82 = vmatpush1.bf16.msra.mxu0 0
  %83 = vmatprep.subr.bf16.mxu0 0
  %84 = vmatpush1.bf16.msra.mxu0 0
  %85 = vmatprep.subr.bf16.mxu0 0
  %86 = vmatpush1.bf16.msra.mxu0 0
  %87 = vmatprep.subr.bf16.mxu0 0
  %88 = vmatpush1.bf16.msra.mxu0 0
  %89 = vmatprep.subr.bf16.mxu0 0
  %90 = vmatpush1.bf16.msra.mxu0 0
  %91 = vmatprep.subr.bf16.mxu0 0
  %92 = vmatpush1.bf16.msra.mxu0 0
  %93 = vmatprep.subr.bf16.mxu0 0
  %94 = vmatpush1.bf16.msra.mxu0 0
  %95 = vmatprep.mubr.bf16.mxu0 0
  %96 = vmatmul.mubr.bf16.gmra.mrb[0].mxu0 %v58
  %v97 = vpop.f32.mrb[0].mxu0
  %v98 = vadd.f32 %v42, %v97
  %v99 = vpop.f32.mrb[0].mxu0
  %v100 = vpop.f32.mrb[0].mxu0
  %v101 = vadd.f32 %v42, %v100
  %v102 = vpop.f32.mrb[0].mxu0
  %103 = vmatprep.mubr.bf16.mxu0 0
  %104 = vmatmul.mubr.bf16.gmra.mrb[0].mxu0 %v61
  %v105 = vpop.f32.mrb[0].mxu0
  %v106 = vadd.f32 %v42, %v105
  %v107 = vpop.f32.mrb[0].mxu0
  %v108 = vpop.f32.mrb[0].mxu0
  %v109 = vadd.f32 %v42, %v108
  %v110 = vpop.f32.mrb[0].mxu0
  %111 = vdwg.mxu0
  %v112 = vmul.f32 %v98, 0.5
  %v113 = vmul.f32 %v101, 0.5
  %v114 = vmul.f32 %v106, 0.5
  %v115 = vmul.f32 %v109, 0.5
  %v116 = vmul.f32 %v98, 0.044715
  %v117 = vmul.f32 %v101, 0.044715
  %v118 = vmul.f32 %v106, 0.044715
  %v119 = vmul.f32 %v109, 0.044715
  %v120 = vmul.f32 %v116, %v98
  %v121 = vmul.f32 %v117, %v101
  %v122 = vmul.f32 %v118, %v106
  %v123 = vmul.f32 %v119, %v109
  %v124 = vmul.f32 %v120, %v98
  %v125 = vmul.f32 %v121, %v101
  %v126 = vmul.f32 %v122, %v106
  %v127 = vmul.f32 %v123, %v109
  %v128 = vadd.f32 %v98, %v124
  %v129 = vadd.f32 %v101, %v125
  %v130 = vadd.f32 %v106, %v126
  %v131 = vadd.f32 %v109, %v127
  %v132 = vmul.f32 %v128, 0.7978846
  %v133 = vmul.f32 %v129, 0.7978846
  %v134 = vmul.f32 %v130, 0.7978846
  %v135 = vmul.f32 %v131, 0.7978846
  %v136 = vtanh.pop %v132
  %v137 = vtanh.pop %v133
  %v138 = vtanh.pop %v134
  %v139 = vtanh.pop %v135
  %v140 = vadd.f32 %v136, 1.0
  %v141 = vadd.f32 %v137, 1.0
  %v142 = vadd.f32 %v138, 1.0
  %v143 = vadd.f32 %v139, 1.0
  %v144 = vmul.f32 %v112, %v140
  %v145 = vmul.f32 %v113, %v141
  %v146 = vmul.f32 %v114, %v142
  %v147 = vmul.f32 %v115, %v143
  %v148 = vpack.c.bf16 %v145, %v144
  %v149 = vpack.c.bf16 %v147, %v146
  %v150 = vld [vmem:[%s5] sm:$0xf]
  %v151 = vld [vmem:[%s5 + $0x4] sm:$0xf]
  %v152 = vld [vmem:[%s5 + $0x8] sm:$0xf]
  %v153 = vld [vmem:[%s5 + $0xc] sm:$0xf]
  %v154 = vld [vmem:[%s5 + $0x10] sm:$0xf]
  %v155 = vld [vmem:[%s5 + $0x14] sm:$0xf]
  %v156 = vld [vmem:[%s5 + $0x18] sm:$0xf]
  %v157 = vld [vmem:[%s5 + $0x1c] sm:$0xf]
  %v158 = vld [vmem:[%s6] sm:$0x1]
  %v160 = vlaneseq
  %v161 = vshrl.u32 %v160, 7
  %v162 = vsub.s32 0, %v161
  %v163 = vrot.slane %v158, %v162
  %v173 = vunpack.c.l.b16 %v150
  %v174 = vunpack.c.l.b16 %v151
  %v175 = vunpack.c.l.b16 %v152
  %v176 = vunpack.c.l.b16 %v153
  %v177 = vunpack.c.l.b16 %v154
  %v178 = vunpack.c.l.b16 %v155
  %v179 = vunpack.c.l.b16 %v156
  %v180 = vunpack.c.l.b16 %v157
  %v181 = vpack.c.b16 %v174, %v173
  %v182 = vpack.c.b16 %v176, %v175
  %v183 = vpack.c.b16 %v178, %v177
  %v184 = vpack.c.b16 %v180, %v179
  %vm189 = vcmask 523264
  %v191 = vsel %vm189, %v148, 0
  %v194 = vsel %vm189, %v149, 0
  %196 = vmatprep.subr.bf16.mxu0 0
  %197 = vmatpush1.bf16.msra.mxu0 %v181
  %198 = vmatprep.subr.bf16.mxu0 0
  %199 = vmatpush1.bf16.msra.mxu0 %v182
  %200 = vmatprep.subr.bf16.mxu0 0
  %201 = vmatpush1.bf16.msra.mxu0 %v183
  %202 = vmatprep.subr.bf16.mxu0 0
  %203 = vmatpush1.bf16.msra.mxu0 %v184
  %204 = vmatprep.subr.bf16.mxu0 0
  %205 = vmatpush1.bf16.msra.mxu0 0
  %206 = vmatprep.subr.bf16.mxu0 0
  %207 = vmatpush1.bf16.msra.mxu0 0
  %208 = vmatprep.subr.bf16.mxu0 0
  %209 = vmatpush1.bf16.msra.mxu0 0
  %210 = vmatprep.subr.bf16.mxu0 0
  %211 = vmatpush1.bf16.msra.mxu0 0
  %212 = vmatprep.subr.bf16.mxu0 0
  %213 = vmatpush1.bf16.msra.mxu0 0
  %214 = vmatprep.subr.bf16.mxu0 0
  %215 = vmatpush1.bf16.msra.mxu0 0
  %216 = vmatprep.subr.bf16.mxu0 0
  %217 = vmatpush1.bf16.msra.mxu0 0
  %218 = vmatprep.subr.bf16.mxu0 0
  %219 = vmatpush1.bf16.msra.mxu0 0
  %220 = vmatprep.subr.bf16.mxu0 0
  %221 = vmatpush1.bf16.msra.mxu0 0
  %222 = vmatprep.subr.bf16.mxu0 0
  %223 = vmatpush1.bf16.msra.mxu0 0
  %224 = vmatprep.subr.bf16.mxu0 0
  %225 = vmatpush1.bf16.msra.mxu0 0
  %226 = vmatprep.subr.bf16.mxu0 0
  %227 = vmatpush1.bf16.msra.mxu0 0
  %228 = vmatprep.mubr.bf16.mxu0 0
  %229 = vmatmul.mubr.bf16.gmra.mrb[0].mxu0 %v191
  %v230 = vpop.f32.mrb[0].mxu0
  %v231 = vadd.f32 %v163, %v230
  %v232 = vpop.f32.mrb[0].mxu0
  %v233 = vpop.f32.mrb[0].mxu0
  %v234 = vadd.f32 %v163, %v233
  %v235 = vpop.f32.mrb[0].mxu0
  %236 = vmatprep.mubr.bf16.mxu0 0
  %237 = vmatmul.mubr.bf16.gmra.mrb[0].mxu0 %v194
  %v238 = vpop.f32.mrb[0].mxu0
  %v239 = vadd.f32 %v163, %v238
  %v240 = vpop.f32.mrb[0].mxu0
  %v241 = vpop.f32.mrb[0].mxu0
  %v242 = vadd.f32 %v163, %v241
  %v243 = vpop.f32.mrb[0].mxu0
  %244 = vdwg.mxu0
  %v245 = vadd.f32 %v27, %v231
  %v246 = vadd.f32 %v28, %v234
  %v247 = vadd.f32 %v29, %v239
  %v248 = vadd.f32 %v30, %v242
  %v249 = vld [vmem:[%s1] sm:$0x1]
  %v250 = vld [vmem:[%s2] sm:$0x1]
  %v251 = vsel %vm56, %v245, 0.0
  %252 = vadd.xlane.f32.xlu0 %v251
  %v253 = vpop.xlane.xlu0 %252
  %v254 = vsel %vm56, %v246, 0.0
  %255 = vadd.xlane.f32.xlu0 %v254
  %v256 = vpop.xlane.xlu0 %255
  %v257 = vsel %vm56, %v247, 0.0
  %258 = vadd.xlane.f32.xlu0 %v257
  %v259 = vpop.xlane.xlu0 %258
  %v260 = vsel %vm56, %v248, 0.0
  %261 = vadd.xlane.f32.xlu0 %v260
  %v262 = vpop.xlane.xlu0 %261
  %v263 = vrcp.pop 32.0
  %v264 = vmul.f32 %v253, %v263
  %v265 = vmul.f32 %v256, %v263
  %v266 = vmul.f32 %v259, %v263
  %v267 = vmul.f32 %v262, %v263
  %v268 = vsub.f32 %v245, %v264
  %v269 = vsub.f32 %v246, %v265
  %v270 = vsub.f32 %v247, %v266
  %v271 = vsub.f32 %v248, %v267
  %v272 = vmul.f32 %v268, %v268
  %v273 = vmul.f32 %v269, %v269
  %v274 = vmul.f32 %v270, %v270
  %v275 = vmul.f32 %v271, %v271
  %v276 = vsel %vm56, %v272, 0.0
  %277 = vadd.xlane.f32.xlu0 %v276
  %v278 = vpop.xlane.xlu0 %277
  %v279 = vsel %vm56, %v273, 0.0
  %280 = vadd.xlane.f32.xlu0 %v279
  %v281 = vpop.xlane.xlu0 %280
  %v282 = vsel %vm56, %v274, 0.0
  %283 = vadd.xlane.f32.xlu0 %v282
  %v284 = vpop.xlane.xlu0 %283
  %v285 = vsel %vm56, %v275, 0.0
  %286 = vadd.xlane.f32.xlu0 %v285
  %v287 = vpop.xlane.xlu0 %286
  %v288 = vmul.f32 %v278, %v263
  %v289 = vmul.f32 %v281, %v263
  %v290 = vmul.f32 %v284, %v263
  %v291 = vmul.f32 %v287, %v263
  %v292 = vadd.f32 %v288, 1e-12
  %v293 = vadd.f32 %v289, 1e-12
  %v294 = vadd.f32 %v290, 1e-12
  %v295 = vadd.f32 %v291, 1e-12
  %v296 = vrsqrt.pop %v292
  %v297 = vrsqrt.pop %v293
  %v298 = vrsqrt.pop %v294
  %v299 = vrsqrt.pop %v295
  %v300 = vmul.f32 %v268, %v296
  %v301 = vmul.f32 %v269, %v297
  %v302 = vmul.f32 %v270, %v298
  %v303 = vmul.f32 %v271, %v299
  %v305 = vlaneseq
  %v306 = vshrl.u32 %v305, 7
  %v307 = vsub.s32 0, %v306
  %v308 = vrot.slane %v249, %v307
  %v310 = vmul.f32 %v300, %v308
  %v311 = vmul.f32 %v301, %v308
  %v312 = vmul.f32 %v302, %v308
  %v313 = vmul.f32 %v303, %v308
  %v315 = vlaneseq
  %v316 = vshrl.u32 %v315, 7
  %v317 = vsub.s32 0, %v316
  %v318 = vrot.slane %v250, %v317
  %v320 = vadd.f32 %v310, %v318
  %v321 = vadd.f32 %v311, %v318
  %v322 = vadd.f32 %v312, %v318
  %v323 = vadd.f32 %v313, %v318
  %324 = vst.msk [vmem:[%s7] sm:$0xff] %vm56, %v320
  %325 = vst.msk [vmem:[%s7 + $0x8] sm:$0xff] %vm56, %v321
  %326 = vst.msk [vmem:[%s7 + $0x10] sm:$0xff] %vm56, %v322
  %327 = vst.msk [vmem:[%s7 + $0x18] sm:$0xff] %vm56, %v323
  // Predicated region
  $region30: #{forward.18} parent=0 // pred_check
    _
  $region31: #{forward.18} parent=0 // pred_check_branch
    %329 = sbr.rel (0) target = $region33
  $region32: #{forward.18} parent=0 // pred_region
    _
  $region33: #{forward.18} parent=0 // pred_fallthru
    _
  // Predicated region
  $region34: #{forward.18} parent=0 // pred_check
    _
  $region35: #{forward.18} parent=0 // pred_check_branch
    %331 = sbr.rel (0) target = $region37
  $region36: #{forward.18} parent=0 // pred_region
    _
  $region37: #{forward.18} parent=0 // pred_fallthru
    _

</llo_original>
